<compile_context>
chip_gen: v7x
topology: tpu7x:2x2x1
jax: 0.10.0
libtpu: 0.0.40
codegen_flags: <defaults>
</compile_context>

<pallas_src>
import functools
import math

import jax
import jax.numpy as jnp
from jax import lax
from jax.experimental import pallas as pl
from jax.experimental.pallas import tpu as pltpu

ACT_DTYPE = jnp.bfloat16   # matmul-operand / residual-stream dtype
LN_EPS = 1e-5
NEG_INF = -1e9
TILE_M = 512               # row tile for token-parallel kernels
TILE_F = 512               # d_ff tile for the FFN kernel
ATTN_TQ = 256              # flash-attention q tile cap (256-wide MXU on v6e/v7x)
ATTN_TK = 256              # flash-attention k tile cap

# Chip-aware scoped-VMEM limit: above the 16/32 MiB defaults, below v7x's 64 MiB.
try:
    _VMEM_CAP = pltpu.get_tpu_info().vmem_capacity_bytes
except Exception:
    _VMEM_CAP = 128 * 1024 * 1024
VMEM_LIMIT = int(min(64 * 1024 * 1024, _VMEM_CAP * 3 // 4))


def _cparams(sems):
    return pltpu.CompilerParams(dimension_semantics=sems,
                                vmem_limit_bytes=VMEM_LIMIT)


def _const_spec(block_shape):
    """BlockSpec for a grid-invariant operand (weights/bias/gamma/beta): constant
    index_map + single buffering so it is not double-buffered in VMEM."""
    idx_map = lambda *_: (0,) * len(block_shape)
    try:
        return pl.BlockSpec(block_shape, idx_map, pipeline_mode=pl.Buffered(1))
    except TypeError:  # older jax without the pipeline_mode kwarg
        return pl.BlockSpec(block_shape, idx_map)


def _row_tile(m):
    # TODO(synk): for v7x (2 TCs) ensure the resulting parallel grid has >=2 steps
    # at moderate M (e.g. add an N-tile parallel axis).
    return m if m <= TILE_M else TILE_M


def _lane_tile(n, cap):
    """Tile for a dim that appears as the LAST dim of some block: must be a
    multiple of 128 or the full extent."""
    if n <= cap:
        return n
    t = (cap // 128) * 128
    while t >= 128:
        if n % t == 0:
            return t
        t -= 128
    return n


def _sublane_tile(n, cap):
    """Tile for a dim that only appears as a second-to-last block dim (mult of 8)."""
    if n <= cap:
        return n
    t = cap
    while t >= 8:
        if n % t == 0:
            return t
        t -= 8
    return n


# ----------------------------- kernel bodies --------------------------------


def _ln_matmul_kernel(x_ref, g_ref, b_ref, w_ref, bias_ref, *o_refs):
    """o_0..o_{n-1} = even column-splits of LayerNorm(x) @ w + bias."""
    x = x_ref[...].astype(jnp.float32)
    mu = jnp.mean(x, axis=-1, keepdims=True)
    var = jnp.mean(jnp.square(x - mu), axis=-1, keepdims=True)
    z = (x - mu) * lax.rsqrt(var + LN_EPS) * g_ref[...] + b_ref[...]
    y = jnp.dot(z.astype(ACT_DTYPE), w_ref[...], preferred_element_type=jnp.float32)
    y = y + bias_ref[...]
    n = y.shape[-1] // len(o_refs)
    for idx, o_ref in enumerate(o_refs):
        o_ref[...] = y[:, idx * n:(idx + 1) * n].astype(o_ref.dtype)


def _matmul_split_kernel(x_ref, w_ref, bias_ref, *o_refs):
    """o_0..o_{n-1} = even column-splits of x @ w + bias."""
    y = jnp.dot(x_ref[...].astype(ACT_DTYPE), w_ref[...],
                preferred_element_type=jnp.float32)
    y = y + bias_ref[...]
    n = y.shape[-1] // len(o_refs)
    for idx, o_ref in enumerate(o_refs):
        o_ref[...] = y[:, idx * n:(idx + 1) * n].astype(o_ref.dtype)


def _matmul_res_kernel(x_ref, w_ref, bias_ref, r_ref, o_ref):
    """o = residual + x @ w + bias (fused output projection + residual add)."""
    y = jnp.dot(x_ref[...].astype(ACT_DTYPE), w_ref[...],
                preferred_element_type=jnp.float32)
    o_ref[...] = (r_ref[...].astype(jnp.float32) + y + bias_ref[...]).astype(o_ref.dtype)


def _ln_ffn_res_kernel(x_ref, g_ref, b_ref, w1_ref, b1_ref, w2_ref, b2_ref, o_ref,
                       z_sc, acc_sc):
    """o = x + relu(LN(x) @ w1 + b1) @ w2 + b2, with d_ff tiled over grid axis 1."""
    f = pl.program_id(1)

    @pl.when(f == 0)
    def _init():
        x = x_ref[...].astype(jnp.float32)
        mu = jnp.mean(x, axis=-1, keepdims=True)
        var = jnp.mean(jnp.square(x - mu), axis=-1, keepdims=True)
        z = (x - mu) * lax.rsqrt(var + LN_EPS) * g_ref[...] + b_ref[...]
        z_sc[...] = z.astype(ACT_DTYPE)
        acc_sc[...] = jnp.zeros_like(acc_sc)

    h = jnp.dot(z_sc[...], w1_ref[...], preferred_element_type=jnp.float32) + b1_ref[...]
    h = jnp.maximum(h, 0.0)
    acc_sc[...] += jnp.dot(h.astype(ACT_DTYPE), w2_ref[...],
                           preferred_element_type=jnp.float32)

    @pl.when(f == pl.num_programs(1) - 1)
    def _finalize():
        o_ref[...] = (x_ref[...].astype(jnp.float32) + acc_sc[...]
                      + b2_ref[...]).astype(o_ref.dtype)


def _layernorm_kernel(x_ref, g_ref, b_ref, o_ref):
    x = x_ref[...].astype(jnp.float32)
    mu = jnp.mean(x, axis=-1, keepdims=True)
    var = jnp.mean(jnp.square(x - mu), axis=-1, keepdims=True)
    o_ref[...] = ((x - mu) * lax.rsqrt(var + LN_EPS) * g_ref[...]
                  + b_ref[...]).astype(o_ref.dtype)


def _flash_attn_kernel(kmask_ref, q_ref, k_ref, v_ref, o_ref,
                       m_sc, l_sc, acc_sc, *, heads, dk, causal):
    """Online-softmax attention over Sk tiles.  q/k/v blocks are lane-dense
    (t, H*dk); heads are split once per block and all heads use one batched
    einsum; the key-padding mask is a (1,1,tk) block and the causal mask is
    generated in-kernel (no dense O(S^2) bias in HBM)."""
    qi = pl.program_id(1)
    ki = pl.program_id(2)
    tq = q_ref.shape[1]
    tk = k_ref.shape[1]

    @pl.when(ki == 0)
    def _init():
        m_sc[...] = jnp.full(m_sc.shape, -jnp.inf, jnp.float32)
        l_sc[...] = jnp.zeros(l_sc.shape, jnp.float32)
        acc_sc[...] = jnp.zeros(acc_sc.shape, jnp.float32)

    def _split_heads(x2d):
        # (t, H*dk) -> (H, t, dk): one reshuffle per block, not per head per matmul.
        return jnp.stack([x2d[:, h * dk:(h + 1) * dk] for h in range(heads)], axis=0)

    def _update():
        qh = _split_heads(q_ref[0])          # (H, tq, dk) bf16 (1/sqrt(dk) in wq)
        kh = _split_heads(k_ref[0])          # (H, tk, dk)
        vh = _split_heads(v_ref[0])          # (H, tk, dk)
        s = jnp.einsum('hqd,hkd->hqk', qh, kh,
                       preferred_element_type=jnp.float32)        # (H, tq, tk)
        # additive key-padding bias, built in-kernel from the (1, tk) mask block
        s = s + (kmask_ref[0] - 1.0) * (-NEG_INF)
        if causal:
            row = qi * tq + lax.broadcasted_iota(jnp.int32, (tq, tk), 0)
            col = ki * tk + lax.broadcasted_iota(jnp.int32, (tq, tk), 1)
            s = s + jnp.where(col > row, NEG_INF, 0.0).astype(jnp.float32)

        m_prev = m_sc[...]                                        # (H, tq)
        m_new = jnp.maximum(m_prev, jnp.max(s, axis=-1))
        alpha = jnp.exp(m_prev - m_new)
        # TODO(synk): on v6e/v7x compute exp in bf16 (EUP throughput) once validated.
        p = jnp.exp(s - m_new[..., None])                         # (H, tq, tk) f32
        l_sc[...] = alpha * l_sc[...] + jnp.sum(p, axis=-1)
        acc_sc[...] = alpha[..., None] * acc_sc[...] + jnp.einsum(
            'hqk,hkd->hqd', p.astype(ACT_DTYPE), vh,
            preferred_element_type=jnp.float32)
        m_sc[...] = m_new

    if causal:
        # Skip fully-masked (above-diagonal) k-tiles.
        # TODO(synk): drive the K extent per q-tile via scalar prefetch so the
        # K/V DMA for skipped tiles is avoided as well.
        pl.when(ki * tk <= qi * tq + tq - 1)(_update)
    else:
        _update()

    @pl.when(ki == pl.num_programs(2) - 1)
    def _finalize():
        inv_l = pl.reciprocal(l_sc[...], approx=True)             # (H, tq)
        out = acc_sc[...] * inv_l[..., None]                      # (H, tq, dk)
        merged = jnp.concatenate([out[h] for h in range(heads)], axis=-1)
        o_ref[0] = merged.astype(o_ref.dtype)                     # one lane-dense store


# ------------------------------ kernel wrappers ------------------------------


def ln_matmul(x2d, gamma, beta, w, b, n_out, out_dtype):
    M, K = x2d.shape
    N = w.shape[1]
    n_each = N // n_out
    tm = _row_tile(M)
    out_shape = tuple(jax.ShapeDtypeStruct((M, n_each), out_dtype) for _ in range(n_out))
    out_specs = tuple(pl.BlockSpec((tm, n_each), lambda i: (i, 0)) for _ in range(n_out))
    return pl.pallas_call(
        _ln_matmul_kernel,
        out_shape=out_shape if n_out > 1 else out_shape[0],
        grid_spec=pltpu.PrefetchScalarGridSpec(
            num_scalar_prefetch=0,
            grid=(pl.cdiv(M, tm),),
            in_specs=[
                pl.BlockSpec((tm, K), lambda i: (i, 0)),
                _const_spec((1, K)),
                _const_spec((1, K)),
                _const_spec((K, N)),   # TODO(synk): tile N for very large d_model on v7x
                _const_spec((1, N)),
            ],
            out_specs=out_specs if n_out > 1 else out_specs[0],
        ),
        compiler_params=_cparams(("parallel",)),
    )(x2d, gamma.reshape(1, K), beta.reshape(1, K), w, b.reshape(1, N))


def matmul_split(x2d, w, b, n_out, out_dtype):
    M, K = x2d.shape
    N = w.shape[1]
    n_each = N // n_out
    tm = _row_tile(M)
    out_shape = tuple(jax.ShapeDtypeStruct((M, n_each), out_dtype) for _ in range(n_out))
    out_specs = tuple(pl.BlockSpec((tm, n_each), lambda i: (i, 0)) for _ in range(n_out))
    return pl.pallas_call(
        _matmul_split_kernel,
        out_shape=out_shape if n_out > 1 else out_shape[0],
        grid_spec=pltpu.PrefetchScalarGridSpec(
            num_scalar_prefetch=0,
            grid=(pl.cdiv(M, tm),),
            in_specs=[
                pl.BlockSpec((tm, K), lambda i: (i, 0)),
                _const_spec((K, N)),
                _const_spec((1, N)),
            ],
            out_specs=out_specs if n_out > 1 else out_specs[0],
        ),
        compiler_params=_cparams(("parallel",)),
    )(x2d, w, b.reshape(1, N))


def matmul_res(x2d, w, b, res2d):
    M, K = x2d.shape
    N = w.shape[1]
    tm = _row_tile(M)
    return pl.pallas_call(
        _matmul_res_kernel,
        out_shape=jax.ShapeDtypeStruct((M, N), ACT_DTYPE),
        grid_spec=pltpu.PrefetchScalarGridSpec(
            num_scalar_prefetch=0,
            grid=(pl.cdiv(M, tm),),
            in_specs=[
                pl.BlockSpec((tm, K), lambda i: (i, 0)),
                _const_spec((K, N)),
                _const_spec((1, N)),
                pl.BlockSpec((tm, N), lambda i: (i, 0)),
            ],
            out_specs=pl.BlockSpec((tm, N), lambda i: (i, 0)),
        ),
        compiler_params=_cparams(("parallel",)),
    )(x2d, w, b.reshape(1, N), res2d)


def ln_ffn_res(x2d, gamma, beta, w1, b1, w2, b2):
    M, D = x2d.shape
    F = w1.shape[1]
    tm = _row_tile(M)
    tf = _lane_tile(F, TILE_F)
    return pl.pallas_call(
        _ln_ffn_res_kernel,
        out_shape=jax.ShapeDtypeStruct((M, D), ACT_DTYPE),
        grid_spec=pltpu.PrefetchScalarGridSpec(
            num_scalar_prefetch=0,
            grid=(pl.cdiv(M, tm), pl.cdiv(F, tf)),
            in_specs=[
                pl.BlockSpec((tm, D), lambda i, f: (i, 0)),
                _const_spec((1, D)),
                _const_spec((1, D)),
                pl.BlockSpec((D, tf), lambda i, f: (0, f)),
                pl.BlockSpec((1, tf), lambda i, f: (0, f)),
                pl.BlockSpec((tf, D), lambda i, f: (f, 0)),
                _const_spec((1, D)),
            ],
            out_specs=pl.BlockSpec((tm, D), lambda i, f: (i, 0)),
            scratch_shapes=[
                pltpu.VMEM((tm, D), ACT_DTYPE),    # normalized input (reused per f)
                pltpu.VMEM((tm, D), jnp.float32),  # FFN output accumulator
            ],
        ),
        compiler_params=_cparams(("parallel", "arbitrary")),
    )(x2d, gamma.reshape(1, D), beta.reshape(1, D), w1, b1.reshape(1, F),
      w2, b2.reshape(1, D))


def layernorm(x2d, gamma, beta):
    M, D = x2d.shape
    tm = _row_tile(M)
    return pl.pallas_call(
        _layernorm_kernel,
        out_shape=jax.ShapeDtypeStruct((M, D), jnp.float32),
        grid_spec=pltpu.PrefetchScalarGridSpec(
            num_scalar_prefetch=0,
            grid=(pl.cdiv(M, tm),),
            in_specs=[
                pl.BlockSpec((tm, D), lambda i: (i, 0)),
                _const_spec((1, D)),
                _const_spec((1, D)),
            ],
            out_specs=pl.BlockSpec((tm, D), lambda i: (i, 0)),
        ),
        compiler_params=_cparams(("parallel",)),
    )(x2d, gamma.reshape(1, D), beta.reshape(1, D))


def flash_attention(q, k, v, key_mask, heads, causal=False):
    """q: (B,Sq,D) bf16, k/v: (B,Sk,D) bf16, key_mask: (B,1,Sk) f32 (1 keep / 0 drop)."""
    B, Sq, D = q.shape
    Sk = k.shape[1]
    dk = D // heads
    tq = _sublane_tile(Sq, ATTN_TQ)
    tk = _lane_tile(Sk, ATTN_TK)
    # TODO(synk): ragged Sq/Sk (non-divisible by chosen tile) falls back to a full
    # extent tile; proper partial-tile masking not implemented.
    grid = (B, Sq // tq, Sk // tk)
    kernel = functools.partial(_flash_attn_kernel, heads=heads, dk=dk, causal=causal)
    return pl.pallas_call(
        kernel,
        out_shape=jax.ShapeDtypeStruct((B, Sq, D), ACT_DTYPE),
        grid_spec=pltpu.PrefetchScalarGridSpec(
            num_scalar_prefetch=0,
            grid=grid,
            in_specs=[
                pl.BlockSpec((1, 1, tk), lambda b, qi, ki: (b, 0, ki)),   # key mask
                pl.BlockSpec((1, tq, D), lambda b, qi, ki: (b, qi, 0)),   # q
                pl.BlockSpec((1, tk, D), lambda b, qi, ki: (b, ki, 0)),   # k
                pl.BlockSpec((1, tk, D), lambda b, qi, ki: (b, ki, 0)),   # v
            ],
            out_specs=pl.BlockSpec((1, tq, D), lambda b, qi, ki: (b, qi, 0)),
            scratch_shapes=[
                pltpu.VMEM((heads, tq), jnp.float32),       # running max
                pltpu.VMEM((heads, tq), jnp.float32),       # running sum
                pltpu.VMEM((heads, tq, dk), jnp.float32),   # output accumulator
            ],
        ),
        compiler_params=_cparams(("parallel", "parallel", "arbitrary")),
    )(key_mask, q, k, v)


# ------------------------------- model (JAX glue) -----------------------------


def self_attention_block(p, x, key_mask, heads, causal):
    B, S, D = x.shape
    x2d = x.reshape(B * S, D)
    q, k, v = ln_matmul(x2d, p["ln_g"], p["ln_b"], p["wqkv"], p["bqkv"],
                        n_out=3, out_dtype=ACT_DTYPE)
    attn = flash_attention(q.reshape(B, S, D), k.reshape(B, S, D),
                           v.reshape(B, S, D), key_mask, heads, causal)
    out = matmul_res(attn.reshape(B * S, D), p["wo"], p["bo"], x2d)
    return out.reshape(B, S, D)


def cross_attention_block(p, x, memory, key_mask, heads):
    B, St, D = x.shape
    Ss = memory.shape[1]
    x2d = x.reshape(B * St, D)
    q = ln_matmul(x2d, p["ln_g"], p["ln_b"], p["wq"], p["bq"],
                  n_out=1, out_dtype=ACT_DTYPE)
    k, v = matmul_split(memory.reshape(B * Ss, D), p["wkv"], p["bkv"],
                        n_out=2, out_dtype=ACT_DTYPE)
    attn = flash_attention(q.reshape(B, St, D), k.reshape(B, Ss, D),
                           v.reshape(B, Ss, D), key_mask, heads, causal=False)
    out = matmul_res(attn.reshape(B * St, D), p["wo"], p["bo"], x2d)
    return out.reshape(B, St, D)


def ffn_block(p, x):
    B, S, D = x.shape
    out = ln_ffn_res(x.reshape(B * S, D), p["ln_g"], p["ln_b"],
                     p["w1"], p["b1"], p["w2"], p["b2"])
    return out.reshape(B, S, D)


def transformer_layer(p, x, key_mask, heads, causal, src=None, src_key_mask=None):
    x = self_attention_block(p["self_attn"], x, key_mask, heads, causal)
    if src is not None:
        x = cross_attention_block(p["src_attn"], x, src, src_key_mask, heads)
    x = ffn_block(p["ffn"], x)
    return x


def encoder(params, x, key_mask, heads):
    for lp in params["layers"]:
        x = transformer_layer(lp, x, key_mask, heads, causal=False)
    B, S, D = x.shape
    return layernorm(x.reshape(B * S, D),
                     params["norm_g"], params["norm_b"]).reshape(B, S, D)


def decoder(params, x, memory, src_key_mask, tgt_key_mask, heads):
    for lp in params["layers"]:
        x = transformer_layer(lp, x, tgt_key_mask, heads, causal=True,
                              src=memory, src_key_mask=src_key_mask)
    B, S, D = x.shape
    return layernorm(x.reshape(B * S, D),
                     params["norm_g"], params["norm_b"]).reshape(B, S, D)


def embed(p, tokens, d_model):
    # TODO(synk): src_embed/tgt_embed are unspecified nn.Modules in the reference;
    # we use Embedding * sqrt(d_model) + interleaved sinusoidal positional encoding.
    x = p["table"][tokens] * math.sqrt(d_model)
    S = tokens.shape[1]
    pos = jnp.arange(S, dtype=jnp.float32)[:, None]
    div = jnp.exp(jnp.arange(0, d_model, 2, dtype=jnp.float32)
                  * (-math.log(10000.0) / d_model))
    pe = jnp.zeros((S, d_model), jnp.float32)
    pe = pe.at[:, 0::2].set(jnp.sin(pos * div))
    pe = pe.at[:, 1::2].set(jnp.cos(pos * div))
    return (x + pe[None, :, :]).astype(ACT_DTYPE)


def transformer_forward(params, src, tgt, src_mask, tgt_mask, heads, d_model):
    # src_mask: (B, 1, Ssrc) key-padding mask.  tgt_mask: (B, St, St) causal mask
    # (optionally combined with target key padding); the causal structure is
    # generated in-kernel and the key-padding component is recovered from its
    # last row so no dense O(S^2) bias is ever materialized.
    # TODO(synk): a fully general (non-causal) dense tgt_mask would need a dense
    # additive-bias attention path.
    src_key_mask = src_mask.astype(jnp.float32)
    tgt_key_mask = tgt_mask[:, -1:, :].astype(jnp.float32)
    memory = encoder(params["encoder"], embed(params["src_embed"], src, d_model),
                     src_key_mask, heads)
    out = decoder(params["decoder"], embed(params["tgt_embed"], tgt, d_model),
                  memory, src_key_mask, tgt_key_mask, heads)
    return out  # Generator is NOT applied in Transformer.forward (matches reference)


# ---------------------------- parameter init / packing ------------------------


def xavier(key, shape):
    a = math.sqrt(6.0 / (shape[0] + shape[1]))
    return jax.random.uniform(key, shape, jnp.float32, minval=-a, maxval=a)


def init_mha(key, d_model):
    ks = jax.random.split(key, 4)
    return {
        "wq": xavier(ks[0], (d_model, d_model)), "bq": jnp.zeros((d_model,), jnp.float32),
        "wk": xavier(ks[1], (d_model, d_model)), "bk": jnp.zeros((d_model,), jnp.float32),
        "wv": xavier(ks[2], (d_model, d_model)), "bv": jnp.zeros((d_model,), jnp.float32),
        "wo": xavier(ks[3], (d_model, d_model)), "bo": jnp.zeros((d_model,), jnp.float32),
    }


def init_layer(key, d_model, d_ff, with_src_attn):
    ks = jax.random.split(key, 4)
    p = {
        "self_attn": init_mha(ks[0], d_model),
        "ffn_w1": xavier(ks[1], (d_model, d_ff)), "ffn_b1": jnp.zeros((d_ff,), jnp.float32),
        "ffn_w2": xavier(ks[2], (d_ff, d_model)), "ffn_b2": jnp.zeros((d_model,), jnp.float32),
        "ln_sa_g": jnp.ones((d_model,), jnp.float32), "ln_sa_b": jnp.zeros((d_model,), jnp.float32),
        "ln_ff_g": jnp.ones((d_model,), jnp.float32), "ln_ff_b": jnp.zeros((d_model,), jnp.float32),
    }
    if with_src_attn:
        p["src_attn"] = init_mha(ks[3], d_model)
        p["ln_src_g"] = jnp.ones((d_model,), jnp.float32)
        p["ln_src_b"] = jnp.zeros((d_model,), jnp.float32)
    return p


def init_stack(key, d_model, d_ff, n_layers, with_src_attn):
    ks = jax.random.split(key, n_layers)
    return {
        "layers": [init_layer(k, d_model, d_ff, with_src_attn) for k in ks],
        "norm_g": jnp.ones((d_model,), jnp.float32),
        "norm_b": jnp.zeros((d_model,), jnp.float32),
    }


def init_transformer(key, n_vocab, d_model, d_ff, n_layers):
    k_enc, k_dec, k_se, k_te, k_gen = jax.random.split(key, 5)
    return {
        "encoder": init_stack(k_enc, d_model, d_ff, n_layers, with_src_attn=False),
        "decoder": init_stack(k_dec, d_model, d_ff, n_layers, with_src_attn=True),
        "src_embed": {"table": xavier(k_se, (n_vocab, d_model))},
        "tgt_embed": {"table": xavier(k_te, (n_vocab, d_model))},
        # Generator params exist in the module but forward() never applies them.
        "generator": {"w": xavier(k_gen, (d_model, n_vocab)),
                      "b": jnp.zeros((n_vocab,), jnp.float32)},
    }


def pack_mha(p, scale, fuse_qkv):
    """Fold 1/sqrt(dk) into the Q projection, concat QKV (or KV), cast weights to bf16."""
    packed = {"wo": p["wo"].astype(ACT_DTYPE), "bo": p["bo"]}
    if fuse_qkv:
        packed["wqkv"] = jnp.concatenate(
            [p["wq"] * scale, p["wk"], p["wv"]], axis=1).astype(ACT_DTYPE)
        packed["bqkv"] = jnp.concatenate([p["bq"] * scale, p["bk"], p["bv"]], axis=0)
    else:
        packed["wq"] = (p["wq"] * scale).astype(ACT_DTYPE)
        packed["bq"] = p["bq"] * scale
        packed["wkv"] = jnp.concatenate([p["wk"], p["wv"]], axis=1).astype(ACT_DTYPE)
        packed["bkv"] = jnp.concatenate([p["bk"], p["bv"]], axis=0)
    return packed


def pack_layer(lp, scale, with_src):
    packed = {
        "self_attn": {**pack_mha(lp["self_attn"], scale, True),
                      "ln_g": lp["ln_sa_g"], "ln_b": lp["ln_sa_b"]},
        "ffn": {"w1": lp["ffn_w1"].astype(ACT_DTYPE), "b1": lp["ffn_b1"],
                "w2": lp["ffn_w2"].astype(ACT_DTYPE), "b2": lp["ffn_b2"],
                "ln_g": lp["ln_ff_g"], "ln_b": lp["ln_ff_b"]},
    }
    if with_src:
        packed["src_attn"] = {**pack_mha(lp["src_attn"], scale, False),
                              "ln_g": lp["ln_src_g"], "ln_b": lp["ln_src_b"]}
    return packed


def pack_params(params, heads, d_model):
    scale = 1.0 / math.sqrt(d_model // heads)

    def pack_stack(sp, with_src):
        return {"layers": [pack_layer(lp, scale, with_src) for lp in sp["layers"]],
                "norm_g": sp["norm_g"], "norm_b": sp["norm_b"]}

    return {
        "encoder": pack_stack(params["encoder"], False),
        "decoder": pack_stack(params["decoder"], True),
        "src_embed": params["src_embed"],
        "tgt_embed": params["tgt_embed"],
        "generator": params["generator"],
    }


# ---------------------------------- main --------------------------------------

if __name__ == "__main__":
    B, S_SRC, S_TGT = 2, 8, 8
    D_MODEL, HEADS, D_FF = 32, 4, 64
    N_LAYERS, N_VOCAB = 2, 16

    root = jax.random.PRNGKey(0)
    k_params, k_src, k_tgt = jax.random.split(root, 3)

    raw_params = init_transformer(k_params, N_VOCAB, D_MODEL, D_FF, N_LAYERS)
    params = pack_params(raw_params, HEADS, D_MODEL)

    src = jax.random.randint(k_src, (B, S_SRC), 0, N_VOCAB, dtype=jnp.int32)
    tgt = jax.random.randint(k_tgt, (B, S_TGT), 0, N_VOCAB, dtype=jnp.int32)

    # src_mask: (B, 1, S_src) all ones; tgt_mask: (B, S_tgt, S_tgt) causal.
    src_mask = jnp.ones((B, 1, S_SRC), jnp.float32)
    tgt_mask = jnp.broadcast_to(
        jnp.tril(jnp.ones((S_TGT, S_TGT), jnp.float32))[None, :, :],
        (B, S_TGT, S_TGT))

    fwd = jax.jit(functools.partial(transformer_forward, heads=HEADS, d_model=D_MODEL))
    out = fwd(params, src, tgt, src_mask, tgt_mask)
    out = jax.block_until_ready(out)

    assert out.shape == (B, S_TGT, D_MODEL)
    assert bool(jnp.all(jnp.isfinite(out)))
    print("KERNEL_OK")
</pallas_src>

<mosaic_0001>
module attributes {stable_mosaic.version = 11 : i64} {
  func.func @_ln_matmul_kernel(%arg0: i32, %arg1: memref<16x32xbf16, #tpu.memory_space<vmem>>, %arg2: memref<1x32xf32, #tpu.memory_space<vmem>>, %arg3: memref<1x32xf32, #tpu.memory_space<vmem>>, %arg4: memref<32x96xbf16, #tpu.memory_space<vmem>>, %arg5: memref<1x96xf32, #tpu.memory_space<vmem>>, %arg6: memref<16x32xbf16, #tpu.memory_space<vmem>>, %arg7: memref<16x32xbf16, #tpu.memory_space<vmem>>, %arg8: memref<16x32xbf16, #tpu.memory_space<vmem>>) attributes {dimension_semantics = [#tpu.dimension_semantics<parallel>], iteration_bounds = array<i64: 1>, scalar_prefetch = 0 : i64, scratch_operands = 0 : i64, tpu.core_type = #tpu.core_type<tc>, window_params = [{transform_indices = @transform_0, window_bounds = array<i64: 16, 32>}, {pipeline_mode = #tpu.pipeline_mode<synchronous>, transform_indices = @transform_1, window_bounds = array<i64: 1, 32>}, {pipeline_mode = #tpu.pipeline_mode<synchronous>, transform_indices = @transform_2, window_bounds = array<i64: 1, 32>}, {pipeline_mode = #tpu.pipeline_mode<synchronous>, transform_indices = @transform_3, window_bounds = array<i64: 32, 96>}, {pipeline_mode = #tpu.pipeline_mode<synchronous>, transform_indices = @transform_4, window_bounds = array<i64: 1, 96>}, {transform_indices = @transform_5, window_bounds = array<i64: 16, 32>}, {transform_indices = @transform_6, window_bounds = array<i64: 16, 32>}, {transform_indices = @transform_7, window_bounds = array<i64: 16, 32>}]} {
    %c0 = arith.constant 0 : index
    %c0_0 = arith.constant 0 : index
    %0 = vector.load %arg1[%c0, %c0_0] : memref<16x32xbf16, #tpu.memory_space<vmem>>, vector<16x32xbf16>
    %1 = arith.extf %0 : vector<16x32xbf16> to vector<16x32xf32>
    %cst = arith.constant dense<0.000000e+00> : vector<16xf32>
    %2 = vector.multi_reduction <add>, %1, %cst [1] : vector<16x32xf32> to vector<16xf32>
    %3 = vector.shape_cast %2 : vector<16xf32> to vector<16x1xf32>
    %cst_1 = arith.constant 3.200000e+01 : f32
    %4 = vector.broadcast %cst_1 : f32 to vector<16x1xf32>
    %5 = arith.divf %3, %4 : vector<16x1xf32>
    %6 = vector.broadcast %5 : vector<16x1xf32> to vector<16x32xf32>
    %7 = arith.subf %1, %6 : vector<16x32xf32>
    %8 = arith.mulf %7, %7 : vector<16x32xf32>
    %cst_2 = arith.constant dense<0.000000e+00> : vector<16xf32>
    %9 = vector.multi_reduction <add>, %8, %cst_2 [1] : vector<16x32xf32> to vector<16xf32>
    %10 = vector.shape_cast %9 : vector<16xf32> to vector<16x1xf32>
    %cst_3 = arith.constant 3.200000e+01 : f32
    %11 = vector.broadcast %cst_3 : f32 to vector<16x1xf32>
    %12 = arith.divf %10, %11 : vector<16x1xf32>
    %13 = vector.broadcast %5 : vector<16x1xf32> to vector<16x32xf32>
    %14 = arith.subf %1, %13 : vector<16x32xf32>
    %cst_4 = arith.constant 9.99999974E-6 : f32
    %15 = vector.broadcast %cst_4 : f32 to vector<16x1xf32>
    %16 = arith.addf %12, %15 : vector<16x1xf32>
    %17 = math.rsqrt %16 : vector<16x1xf32>
    %18 = vector.broadcast %17 : vector<16x1xf32> to vector<16x32xf32>
    %19 = arith.mulf %14, %18 : vector<16x32xf32>
    %c0_5 = arith.constant 0 : index
    %c0_6 = arith.constant 0 : index
    %20 = vector.load %arg2[%c0_5, %c0_6] : memref<1x32xf32, #tpu.memory_space<vmem>>, vector<1x32xf32>
    %21 = vector.broadcast %20 : vector<1x32xf32> to vector<16x32xf32>
    %22 = arith.mulf %19, %21 : vector<16x32xf32>
    %c0_7 = arith.constant 0 : index
    %c0_8 = arith.constant 0 : index
    %23 = vector.load %arg3[%c0_7, %c0_8] : memref<1x32xf32, #tpu.memory_space<vmem>>, vector<1x32xf32>
    %24 = vector.broadcast %23 : vector<1x32xf32> to vector<16x32xf32>
    %25 = arith.addf %22, %24 : vector<16x32xf32>
    %26 = arith.truncf %25 : vector<16x32xf32> to vector<16x32xbf16>
    %c0_9 = arith.constant 0 : index
    %c0_10 = arith.constant 0 : index
    %27 = vector.load %arg4[%c0_9, %c0_10] : memref<32x96xbf16, #tpu.memory_space<vmem>>, vector<32x96xbf16>
    %cst_11 = arith.constant dense<0.000000e+00> : vector<16x96xf32>
    %28 = tpu.matmul %26, %27, %cst_11 {dimension_numbers = #tpu.dot_dimension_numbers<[1], [0], [0], [1], [0, 0, 1, 1], [], []>} : vector<16x32xbf16>, vector<32x96xbf16>, vector<16x96xf32> -> vector<16x96xf32>
    %c0_12 = arith.constant 0 : index
    %c0_13 = arith.constant 0 : index
    %29 = vector.load %arg5[%c0_12, %c0_13] : memref<1x96xf32, #tpu.memory_space<vmem>>, vector<1x96xf32>
    %30 = vector.broadcast %29 : vector<1x96xf32> to vector<16x96xf32>
    %31 = arith.addf %28, %30 : vector<16x96xf32>
    %32 = vector.extract_strided_slice %31 {offsets = [0, 0], sizes = [16, 32], strides = [1, 1]} : vector<16x96xf32> to vector<16x32xf32>
    %33 = arith.truncf %32 : vector<16x32xf32> to vector<16x32xbf16>
    %c0_14 = arith.constant 0 : index
    %c0_15 = arith.constant 0 : index
    %34 = vector.load %arg6[%c0_14, %c0_15] : memref<16x32xbf16, #tpu.memory_space<vmem>>, vector<16x32xbf16>
    tpu.vector_store %arg6[%c0_14, %c0_15], %33 {strides = array<i32>} : memref<16x32xbf16, #tpu.memory_space<vmem>>, vector<16x32xbf16>,
    %35 = vector.extract_strided_slice %31 {offsets = [0, 32], sizes = [16, 32], strides = [1, 1]} : vector<16x96xf32> to vector<16x32xf32>
    %36 = arith.truncf %35 : vector<16x32xf32> to vector<16x32xbf16>
    %c0_16 = arith.constant 0 : index
    %c0_17 = arith.constant 0 : index
    %37 = vector.load %arg7[%c0_16, %c0_17] : memref<16x32xbf16, #tpu.memory_space<vmem>>, vector<16x32xbf16>
    tpu.vector_store %arg7[%c0_16, %c0_17], %36 {strides = array<i32>} : memref<16x32xbf16, #tpu.memory_space<vmem>>, vector<16x32xbf16>,
    %38 = vector.extract_strided_slice %31 {offsets = [0, 64], sizes = [16, 32], strides = [1, 1]} : vector<16x96xf32> to vector<16x32xf32>
    %39 = arith.truncf %38 : vector<16x32xf32> to vector<16x32xbf16>
    %c0_18 = arith.constant 0 : index
    %c0_19 = arith.constant 0 : index
    %40 = vector.load %arg8[%c0_18, %c0_19] : memref<16x32xbf16, #tpu.memory_space<vmem>>, vector<16x32xbf16>
    tpu.vector_store %arg8[%c0_18, %c0_19], %39 {strides = array<i32>} : memref<16x32xbf16, #tpu.memory_space<vmem>>, vector<16x32xbf16>,
    return
  }
  func.func @transform_0(%arg0: i32) -> (i32, i32) {
    %c0_i32 = arith.constant 0 : i32
    %c0_i32_0 = arith.constant 0 : i32
    return %arg0, %c0_i32 : i32, i32
  }
  func.func @transform_1(%arg0: i32) -> (i32, i32) {
    %c0_i32 = arith.constant 0 : i32
    %c0_i32_0 = arith.constant 0 : i32
    %c0_i32_1 = arith.constant 0 : i32
    return %c0_i32, %c0_i32_0 : i32, i32
  }
  func.func @transform_2(%arg0: i32) -> (i32, i32) {
    %c0_i32 = arith.constant 0 : i32
    %c0_i32_0 = arith.constant 0 : i32
    %c0_i32_1 = arith.constant 0 : i32
    return %c0_i32, %c0_i32_0 : i32, i32
  }
  func.func @transform_3(%arg0: i32) -> (i32, i32) {
    %c0_i32 = arith.constant 0 : i32
    %c0_i32_0 = arith.constant 0 : i32
    %c0_i32_1 = arith.constant 0 : i32
    return %c0_i32, %c0_i32_0 : i32, i32
  }
  func.func @transform_4(%arg0: i32) -> (i32, i32) {
    %c0_i32 = arith.constant 0 : i32
    %c0_i32_0 = arith.constant 0 : i32
    %c0_i32_1 = arith.constant 0 : i32
    return %c0_i32, %c0_i32_0 : i32, i32
  }
  func.func @transform_5(%arg0: i32) -> (i32, i32) {
    %c0_i32 = arith.constant 0 : i32
    %c0_i32_0 = arith.constant 0 : i32
    return %arg0, %c0_i32 : i32, i32
  }
  func.func @transform_6(%arg0: i32) -> (i32, i32) {
    %c0_i32 = arith.constant 0 : i32
    %c0_i32_0 = arith.constant 0 : i32
    return %arg0, %c0_i32 : i32, i32
  }
  func.func @transform_7(%arg0: i32) -> (i32, i32) {
    %c0_i32 = arith.constant 0 : i32
    %c0_i32_0 = arith.constant 0 : i32
    return %arg0, %c0_i32 : i32, i32
  }
}

module attributes {stable_mosaic.version = 11 : i64} {
  func.func @_flash_attn_kernel(%arg0: i32, %arg1: i32, %arg2: i32, %arg3: memref<1x1x8xf32, #tpu.memory_space<vmem>>, %arg4: memref<1x8x32xbf16, #tpu.memory_space<vmem>>, %arg5: memref<1x8x32xbf16, #tpu.memory_space<vmem>>, %arg6: memref<1x8x32xbf16, #tpu.memory_space<vmem>>, %arg7: memref<1x8x32xbf16, #tpu.memory_space<vmem>>, %arg8: memref<4x8xf32, #tpu.memory_space<vmem>>, %arg9: memref<4x8xf32, #tpu.memory_space<vmem>>, %arg10: memref<4x8x8xf32, #tpu.memory_space<vmem>>) attributes {dimension_semantics = [#tpu.dimension_semantics<parallel>, #tpu.dimension_semantics<parallel>, #tpu.dimension_semantics<arbitrary>], iteration_bounds = array<i64: 2, 1, 1>, scalar_prefetch = 0 : i64, scratch_operands = 3 : i64, tpu.core_type = #tpu.core_type<tc>, window_params = [{transform_indices = @transform_0, window_bounds = array<i64: 1, 1, 8>}, {transform_indices = @transform_1, window_bounds = array<i64: 1, 8, 32>}, {transform_indices = @transform_2, window_bounds = array<i64: 1, 8, 32>}, {transform_indices = @transform_3, window_bounds = array<i64: 1, 8, 32>}, {transform_indices = @transform_4, window_bounds = array<i64: 1, 8, 32>}]} {
    %c0_i32 = arith.constant 0 : i32
    %0 = arith.cmpi eq, %arg2, %c0_i32 : i32
    %1 = arith.extui %0 : i1 to i32
    %c0_i32_0 = arith.constant 0 : i32
    %2 = arith.cmpi ne, %1, %c0_i32_0 : i32
    scf.if %2 {
      %cst_33 = arith.constant 0xFF800000 : f32
      %72 = vector.broadcast %cst_33 : f32 to vector<4x8xf32>
      %c0_34 = arith.constant 0 : index
      %c0_35 = arith.constant 0 : index
      %73 = vector.load %arg8[%c0_34, %c0_35] : memref<4x8xf32, #tpu.memory_space<vmem>>, vector<4x8xf32>
      tpu.vector_store %arg8[%c0_34, %c0_35], %72 {strides = array<i32>} : memref<4x8xf32, #tpu.memory_space<vmem>>, vector<4x8xf32>,
      %cst_36 = arith.constant 0.000000e+00 : f32
      %74 = vector.broadcast %cst_36 : f32 to vector<4x8xf32>
      %c0_37 = arith.constant 0 : index
      %c0_38 = arith.constant 0 : index
      %75 = vector.load %arg9[%c0_37, %c0_38] : memref<4x8xf32, #tpu.memory_space<vmem>>, vector<4x8xf32>
      tpu.vector_store %arg9[%c0_37, %c0_38], %74 {strides = array<i32>} : memref<4x8xf32, #tpu.memory_space<vmem>>, vector<4x8xf32>,
      %cst_39 = arith.constant 0.000000e+00 : f32
      %76 = vector.broadcast %cst_39 : f32 to vector<4x8x8xf32>
      %c0_40 = arith.constant 0 : index
      %c0_41 = arith.constant 0 : index
      %c0_42 = arith.constant 0 : index
      %77 = vector.load %arg10[%c0_40, %c0_41, %c0_42] : memref<4x8x8xf32, #tpu.memory_space<vmem>>, vector<4x8x8xf32>
      tpu.vector_store %arg10[%c0_40, %c0_41, %c0_42], %76 {strides = array<i32>} : memref<4x8x8xf32, #tpu.memory_space<vmem>>, vector<4x8x8xf32>,
    } else {
    }
    %c0 = arith.constant 0 : index
    %c0_1 = arith.constant 0 : index
    %c0_2 = arith.constant 0 : index
    %3 = vector.load %arg4[%c0, %c0_1, %c0_2] : memref<1x8x32xbf16, #tpu.memory_space<vmem>>, vector<1x8x32xbf16>
    %4 = vector.shape_cast %3 : vector<1x8x32xbf16> to vector<8x32xbf16>
    %5 = vector.extract_strided_slice %4 {offsets = [0, 0], sizes = [8, 8], strides = [1, 1]} : vector<8x32xbf16> to vector<8x8xbf16>
    %6 = vector.extract_strided_slice %4 {offsets = [0, 8], sizes = [8, 8], strides = [1, 1]} : vector<8x32xbf16> to vector<8x8xbf16>
    %7 = vector.extract_strided_slice %4 {offsets = [0, 16], sizes = [8, 8], strides = [1, 1]} : vector<8x32xbf16> to vector<8x8xbf16>
    %8 = vector.extract_strided_slice %4 {offsets = [0, 24], sizes = [8, 8], strides = [1, 1]} : vector<8x32xbf16> to vector<8x8xbf16>
    %9 = vector.shape_cast %5 : vector<8x8xbf16> to vector<1x8x8xbf16>
    %10 = vector.shape_cast %6 : vector<8x8xbf16> to vector<1x8x8xbf16>
    %11 = vector.shape_cast %7 : vector<8x8xbf16> to vector<1x8x8xbf16>
    %12 = vector.shape_cast %8 : vector<8x8xbf16> to vector<1x8x8xbf16>
    %13 = tpu.concatenate %9, %10, %11, %12 in 0 : vector<1x8x8xbf16>, vector<1x8x8xbf16>, vector<1x8x8xbf16>, vector<1x8x8xbf16> -> vector<4x8x8xbf16>
    %c0_3 = arith.constant 0 : index
    %c0_4 = arith.constant 0 : index
    %c0_5 = arith.constant 0 : index
    %14 = vector.load %arg5[%c0_3, %c0_4, %c0_5] : memref<1x8x32xbf16, #tpu.memory_space<vmem>>, vector<1x8x32xbf16>
    %15 = vector.shape_cast %14 : vector<1x8x32xbf16> to vector<8x32xbf16>
    %16 = vector.extract_strided_slice %15 {offsets = [0, 0], sizes = [8, 8], strides = [1, 1]} : vector<8x32xbf16> to vector<8x8xbf16>
    %17 = vector.extract_strided_slice %15 {offsets = [0, 8], sizes = [8, 8], strides = [1, 1]} : vector<8x32xbf16> to vector<8x8xbf16>
    %18 = vector.extract_strided_slice %15 {offsets = [0, 16], sizes = [8, 8], strides = [1, 1]} : vector<8x32xbf16> to vector<8x8xbf16>
    %19 = vector.extract_strided_slice %15 {offsets = [0, 24], sizes = [8, 8], strides = [1, 1]} : vector<8x32xbf16> to vector<8x8xbf16>
    %20 = vector.shape_cast %16 : vector<8x8xbf16> to vector<1x8x8xbf16>
    %21 = vector.shape_cast %17 : vector<8x8xbf16> to vector<1x8x8xbf16>
    %22 = vector.shape_cast %18 : vector<8x8xbf16> to vector<1x8x8xbf16>
    %23 = vector.shape_cast %19 : vector<8x8xbf16> to vector<1x8x8xbf16>
    %24 = tpu.concatenate %20, %21, %22, %23 in 0 : vector<1x8x8xbf16>, vector<1x8x8xbf16>, vector<1x8x8xbf16>, vector<1x8x8xbf16> -> vector<4x8x8xbf16>
    %c0_6 = arith.constant 0 : index
    %c0_7 = arith.constant 0 : index
    %c0_8 = arith.constant 0 : index
    %25 = vector.load %arg6[%c0_6, %c0_7, %c0_8] : memref<1x8x32xbf16, #tpu.memory_space<vmem>>, vector<1x8x32xbf16>
    %26 = vector.shape_cast %25 : vector<1x8x32xbf16> to vector<8x32xbf16>
    %27 = vector.extract_strided_slice %26 {offsets = [0, 0], sizes = [8, 8], strides = [1, 1]} : vector<8x32xbf16> to vector<8x8xbf16>
    %28 = vector.extract_strided_slice %26 {offsets = [0, 8], sizes = [8, 8], strides = [1, 1]} : vector<8x32xbf16> to vector<8x8xbf16>
    %29 = vector.extract_strided_slice %26 {offsets = [0, 16], sizes = [8, 8], strides = [1, 1]} : vector<8x32xbf16> to vector<8x8xbf16>
    %30 = vector.extract_strided_slice %26 {offsets = [0, 24], sizes = [8, 8], strides = [1, 1]} : vector<8x32xbf16> to vector<8x8xbf16>
    %31 = vector.shape_cast %27 : vector<8x8xbf16> to vector<1x8x8xbf16>
    %32 = vector.shape_cast %28 : vector<8x8xbf16> to vector<1x8x8xbf16>
    %33 = vector.shape_cast %29 : vector<8x8xbf16> to vector<1x8x8xbf16>
    %34 = vector.shape_cast %30 : vector<8x8xbf16> to vector<1x8x8xbf16>
    %35 = tpu.concatenate %31, %32, %33, %34 in 0 : vector<1x8x8xbf16>, vector<1x8x8xbf16>, vector<1x8x8xbf16>, vector<1x8x8xbf16> -> vector<4x8x8xbf16>
    "tpu.trace_start"() <{level = 10 : i32, message = "hqd,hkd->hqk"}> : () -> ()
    %cst = arith.constant dense<0.000000e+00> : vector<4x8x8xf32>
    %36 = tpu.matmul %13, %24, %cst {dimension_numbers = #tpu.dot_dimension_numbers<[2], [2], [1], [1], [0, 0, 0, 1, 1, 1], [0], [0]>} : vector<4x8x8xbf16>, vector<4x8x8xbf16>, vector<4x8x8xf32> -> vector<4x8x8xf32>
    "tpu.trace_stop"() : () -> ()
    %c0_9 = arith.constant 0 : index
    %c0_10 = arith.constant 0 : index
    %c0_11 = arith.constant 0 : index
    %37 = vector.load %arg3[%c0_9, %c0_10, %c0_11] : memref<1x1x8xf32, #tpu.memory_space<vmem>>, vector<1x1x8xf32>
    %38 = vector.shape_cast %37 : vector<1x1x8xf32> to vector<1x8xf32>
    %cst_12 = arith.constant 1.000000e+00 : f32
    %39 = vector.broadcast %cst_12 : f32 to vector<1x8xf32>
    %40 = arith.subf %38, %39 : vector<1x8xf32>
    %cst_13 = arith.constant 1.000000e+09 : f32
    %41 = vector.broadcast %cst_13 : f32 to vector<1x8xf32>
    %42 = arith.mulf %40, %41 : vector<1x8xf32>
    %43 = vector.shape_cast %42 : vector<1x8xf32> to vector<1x1x8xf32>
    %44 = vector.broadcast %43 : vector<1x1x8xf32> to vector<4x8x8xf32>
    %45 = arith.addf %36, %44 : vector<4x8x8xf32>
    %c0_14 = arith.constant 0 : index
    %c0_15 = arith.constant 0 : index
    %46 = vector.load %arg8[%c0_14, %c0_15] : memref<4x8xf32, #tpu.memory_space<vmem>>, vector<4x8xf32>
    %cst_16 = arith.constant dense<0xFF800000> : vector<4x8xf32>
    %47 = vector.multi_reduction <maximumf>, %45, %cst_16 [2] : vector<4x8x8xf32> to vector<4x8xf32>
    %48 = arith.maximumf %46, %47 : vector<4x8xf32>
    %49 = arith.subf %46, %48 : vector<4x8xf32>
    %50 = math.exp %49 : vector<4x8xf32>
    %51 = vector.shape_cast %48 : vector<4x8xf32> to vector<4x8x1xf32>
    %52 = vector.broadcast %51 : vector<4x8x1xf32> to vector<4x8x8xf32>
    %53 = arith.subf %45, %52 : vector<4x8x8xf32>
    %54 = math.exp %53 : vector<4x8x8xf32>
    %c0_17 = arith.constant 0 : index
    %c0_18 = arith.constant 0 : index
    %55 = vector.load %arg9[%c0_17, %c0_18] : memref<4x8xf32, #tpu.memory_space<vmem>>, vector<4x8xf32>
    %56 = arith.mulf %50, %55 : vector<4x8xf32>
    %cst_19 = arith.constant dense<0.000000e+00> : vector<4x8xf32>
    %57 = vector.multi_reduction <add>, %54, %cst_19 [2] : vector<4x8x8xf32> to vector<4x8xf32>
    %58 = arith.addf %56, %57 : vector<4x8xf32>
    %c0_20 = arith.constant 0 : index
    %c0_21 = arith.constant 0 : index
    %59 = vector.load %arg9[%c0_20, %c0_21] : memref<4x8xf32, #tpu.memory_space<vmem>>, vector<4x8xf32>
    tpu.vector_store %arg9[%c0_20, %c0_21], %58 {strides = array<i32>} : memref<4x8xf32, #tpu.memory_space<vmem>>, vector<4x8xf32>,
    %60 = vector.shape_cast %50 : vector<4x8xf32> to vector<4x8x1xf32>
    %c0_22 = arith.constant 0 : index
    %c0_23 = arith.constant 0 : index
    %c0_24 = arith.constant 0 : index
    %61 = vector.load %arg10[%c0_22, %c0_23, %c0_24] : memref<4x8x8xf32, #tpu.memory_space<vmem>>, vector<4x8x8xf32>
    %62 = vector.broadcast %60 : vector<4x8x1xf32> to vector<4x8x8xf32>
    %63 = arith.mulf %62, %61 : vector<4x8x8xf32>
    %64 = arith.truncf %54 : vector<4x8x8xf32> to vector<4x8x8xbf16>
    "tpu.trace_start"() <{level = 10 : i32, message = "hqk,hkd->hqd"}> : () -> ()
    %cst_25 = arith.constant dense<0.000000e+00> : vector<4x8x8xf32>
    %65 = tpu.matmul %64, %35, %cst_25 {dimension_numbers = #tpu.dot_dimension_numbers<[2], [1], [1], [2], [0, 0, 0, 1, 1, 2], [0], [0]>} : vector<4x8x8xbf16>, vector<4x8x8xbf16>, vector<4x8x8xf32> -> vector<4x8x8xf32>
    "tpu.trace_stop"() : () -> ()
    %66 = arith.addf %63, %65 : vector<4x8x8xf32>
    %c0_26 = arith.constant 0 : index
    %c0_27 = arith.constant 0 : index
    %c0_28 = arith.constant 0 : index
    %67 = vector.load %arg10[%c0_26, %c0_27, %c0_28] : memref<4x8x8xf32, #tpu.memory_space<vmem>>, vector<4x8x8xf32>
    tpu.vector_store %arg10[%c0_26, %c0_27, %c0_28], %66 {strides = array<i32>} : memref<4x8x8xf32, #tpu.memory_space<vmem>>, vector<4x8x8xf32>,
    %c0_29 = arith.constant 0 : index
    %c0_30 = arith.constant 0 : index
    %68 = vector.load %arg8[%c0_29, %c0_30] : memref<4x8xf32, #tpu.memory_space<vmem>>, vector<4x8xf32>
    tpu.vector_store %arg8[%c0_29, %c0_30], %48 {strides = array<i32>} : memref<4x8xf32, #tpu.memory_space<vmem>>, vector<4x8xf32>,
    %c0_i32_31 = arith.constant 0 : i32
    %69 = arith.cmpi eq, %arg2, %c0_i32_31 : i32
    %70 = arith.extui %69 : i1 to i32
    %c0_i32_32 = arith.constant 0 : i32
    %71 = arith.cmpi ne, %70, %c0_i32_32 : i32
    scf.if %71 {
      %c0_33 = arith.constant 0 : index
      %c0_34 = arith.constant 0 : index
      %72 = vector.load %arg9[%c0_33, %c0_34] : memref<4x8xf32, #tpu.memory_space<vmem>>, vector<4x8xf32>
      %73 = tpu.reciprocal %72 {approx = true} : vector<4x8xf32> -> vector<4x8xf32>
      %c0_35 = arith.constant 0 : index
      %c0_36 = arith.constant 0 : index
      %c0_37 = arith.constant 0 : index
      %74 = vector.load %arg10[%c0_35, %c0_36, %c0_37] : memref<4x8x8xf32, #tpu.memory_space<vmem>>, vector<4x8x8xf32>
      %75 = vector.shape_cast %73 : vector<4x8xf32> to vector<4x8x1xf32>
      %76 = vector.broadcast %75 : vector<4x8x1xf32> to vector<4x8x8xf32>
      %77 = arith.mulf %74, %76 : vector<4x8x8xf32>
      %78 = vector.extract_strided_slice %77 {offsets = [0, 0, 0], sizes = [1, 8, 8], strides = [1, 1, 1]} : vector<4x8x8xf32> to vector<1x8x8xf32>
      %79 = vector.shape_cast %78 : vector<1x8x8xf32> to vector<8x8xf32>
      %80 = vector.extract_strided_slice %77 {offsets = [1, 0, 0], sizes = [1, 8, 8], strides = [1, 1, 1]} : vector<4x8x8xf32> to vector<1x8x8xf32>
      %81 = vector.shape_cast %80 : vector<1x8x8xf32> to vector<8x8xf32>
      %82 = vector.extract_strided_slice %77 {offsets = [2, 0, 0], sizes = [1, 8, 8], strides = [1, 1, 1]} : vector<4x8x8xf32> to vector<1x8x8xf32>
      %83 = vector.shape_cast %82 : vector<1x8x8xf32> to vector<8x8xf32>
      %84 = vector.extract_strided_slice %77 {offsets = [3, 0, 0], sizes = [1, 8, 8], strides = [1, 1, 1]} : vector<4x8x8xf32> to vector<1x8x8xf32>
      %85 = vector.shape_cast %84 : vector<1x8x8xf32> to vector<8x8xf32>
      %86 = tpu.concatenate %79, %81, %83, %85 in 1 : vector<8x8xf32>, vector<8x8xf32>, vector<8x8xf32>, vector<8x8xf32> -> vector<8x32xf32>
      %87 = arith.truncf %86 : vector<8x32xf32> to vector<8x32xbf16>
      %c0_38 = arith.constant 0 : index
      %c0_39 = arith.constant 0 : index
      %c0_40 = arith.constant 0 : index
      %88 = vector.load %arg7[%c0_38, %c0_39, %c0_40] : memref<1x8x32xbf16, #tpu.memory_space<vmem>>, vector<1x8x32xbf16>
      %89 = vector.shape_cast %88 : vector<1x8x32xbf16> to vector<8x32xbf16>
      %90 = vector.shape_cast %87 : vector<8x32xbf16> to vector<1x8x32xbf16>
      tpu.vector_store %arg7[%c0_38, %c0_39, %c0_40], %90 {strides = array<i32>} : memref<1x8x32xbf16, #tpu.memory_space<vmem>>, vector<1x8x32xbf16>,
    } else {
    }
    return
  }
  func.func @transform_0(%arg0: i32, %arg1: i32, %arg2: i32) -> (i32, i32, i32) {
    %c0_i32 = arith.constant 0 : i32
    %c0_i32_0 = arith.constant 0 : i32
    return %arg0, %c0_i32, %arg2 : i32, i32, i32
  }
  func.func @transform_1(%arg0: i32, %arg1: i32, %arg2: i32) -> (i32, i32, i32) {
    %c0_i32 = arith.constant 0 : i32
    %c0_i32_0 = arith.constant 0 : i32
    return %arg0, %arg1, %c0_i32 : i32, i32, i32
  }
  func.func @transform_2(%arg0: i32, %arg1: i32, %arg2: i32) -> (i32, i32, i32) {
    %c0_i32 = arith.constant 0 : i32
    %c0_i32_0 = arith.constant 0 : i32
    return %arg0, %arg2, %c0_i32 : i32, i32, i32
  }
  func.func @transform_3(%arg0: i32, %arg1: i32, %arg2: i32) -> (i32, i32, i32) {
    %c0_i32 = arith.constant 0 : i32
    %c0_i32_0 = arith.constant 0 : i32
    return %arg0, %arg2, %c0_i32 : i32, i32, i32
  }
  func.func @transform_4(%arg0: i32, %arg1: i32, %arg2: i32) -> (i32, i32, i32) {
    %c0_i32 = arith.constant 0 : i32
    %c0_i32_0 = arith.constant 0 : i32
    return %arg0, %arg1, %c0_i32 : i32, i32, i32
  }
}

module attributes {stable_mosaic.version = 11 : i64} {
  func.func @_matmul_res_kernel(%arg0: i32, %arg1: memref<16x32xbf16, #tpu.memory_space<vmem>>, %arg2: memref<32x32xbf16, #tpu.memory_space<vmem>>, %arg3: memref<1x32xf32, #tpu.memory_space<vmem>>, %arg4: memref<16x32xbf16, #tpu.memory_space<vmem>>, %arg5: memref<16x32xbf16, #tpu.memory_space<vmem>>) attributes {dimension_semantics = [#tpu.dimension_semantics<parallel>], iteration_bounds = array<i64: 1>, scalar_prefetch = 0 : i64, scratch_operands = 0 : i64, tpu.core_type = #tpu.core_type<tc>, window_params = [{transform_indices = @transform_0, window_bounds = array<i64: 16, 32>}, {pipeline_mode = #tpu.pipeline_mode<synchronous>, transform_indices = @transform_1, window_bounds = array<i64: 32, 32>}, {pipeline_mode = #tpu.pipeline_mode<synchronous>, transform_indices = @transform_2, window_bounds = array<i64: 1, 32>}, {transform_indices = @transform_3, window_bounds = array<i64: 16, 32>}, {transform_indices = @transform_4, window_bounds = array<i64: 16, 32>}]} {
    %c0 = arith.constant 0 : index
    %c0_0 = arith.constant 0 : index
    %0 = vector.load %arg1[%c0, %c0_0] : memref<16x32xbf16, #tpu.memory_space<vmem>>, vector<16x32xbf16>
    %c0_1 = arith.constant 0 : index
    %c0_2 = arith.constant 0 : index
    %1 = vector.load %arg2[%c0_1, %c0_2] : memref<32x32xbf16, #tpu.memory_space<vmem>>, vector<32x32xbf16>
    %cst = arith.constant dense<0.000000e+00> : vector<16x32xf32>
    %2 = tpu.matmul %0, %1, %cst {dimension_numbers = #tpu.dot_dimension_numbers<[1], [0], [0], [1], [0, 0, 1, 1], [], []>} : vector<16x32xbf16>, vector<32x32xbf16>, vector<16x32xf32> -> vector<16x32xf32>
    %c0_3 = arith.constant 0 : index
    %c0_4 = arith.constant 0 : index
    %3 = vector.load %arg4[%c0_3, %c0_4] : memref<16x32xbf16, #tpu.memory_space<vmem>>, vector<16x32xbf16>
    %4 = arith.extf %3 : vector<16x32xbf16> to vector<16x32xf32>
    %5 = arith.addf %4, %2 : vector<16x32xf32>
    %c0_5 = arith.constant 0 : index
    %c0_6 = arith.constant 0 : index
    %6 = vector.load %arg3[%c0_5, %c0_6] : memref<1x32xf32, #tpu.memory_space<vmem>>, vector<1x32xf32>
    %7 = vector.broadcast %6 : vector<1x32xf32> to vector<16x32xf32>
    %8 = arith.addf %5, %7 : vector<16x32xf32>
    %9 = arith.truncf %8 : vector<16x32xf32> to vector<16x32xbf16>
    %c0_7 = arith.constant 0 : index
    %c0_8 = arith.constant 0 : index
    %10 = vector.load %arg5[%c0_7, %c0_8] : memref<16x32xbf16, #tpu.memory_space<vmem>>, vector<16x32xbf16>
    tpu.vector_store %arg5[%c0_7, %c0_8], %9 {strides = array<i32>} : memref<16x32xbf16, #tpu.memory_space<vmem>>, vector<16x32xbf16>,
    return
  }
  func.func @transform_0(%arg0: i32) -> (i32, i32) {
    %c0_i32 = arith.constant 0 : i32
    %c0_i32_0 = arith.constant 0 : i32
    return %arg0, %c0_i32 : i32, i32
  }
  func.func @transform_1(%arg0: i32) -> (i32, i32) {
    %c0_i32 = arith.constant 0 : i32
    %c0_i32_0 = arith.constant 0 : i32
    %c0_i32_1 = arith.constant 0 : i32
    return %c0_i32, %c0_i32_0 : i32, i32
  }
  func.func @transform_2(%arg0: i32) -> (i32, i32) {
    %c0_i32 = arith.constant 0 : i32
    %c0_i32_0 = arith.constant 0 : i32
    %c0_i32_1 = arith.constant 0 : i32
    return %c0_i32, %c0_i32_0 : i32, i32
  }
  func.func @transform_3(%arg0: i32) -> (i32, i32) {
    %c0_i32 = arith.constant 0 : i32
    %c0_i32_0 = arith.constant 0 : i32
    return %arg0, %c0_i32 : i32, i32
  }
  func.func @transform_4(%arg0: i32) -> (i32, i32) {
    %c0_i32 = arith.constant 0 : i32
    %c0_i32_0 = arith.constant 0 : i32
    return %arg0, %c0_i32 : i32, i32
  }
}

module attributes {stable_mosaic.version = 11 : i64} {
  func.func @_ln_ffn_res_kernel(%arg0: i32, %arg1: i32, %arg2: memref<16x32xbf16, #tpu.memory_space<vmem>>, %arg3: memref<1x32xf32, #tpu.memory_space<vmem>>, %arg4: memref<1x32xf32, #tpu.memory_space<vmem>>, %arg5: memref<32x64xbf16, #tpu.memory_space<vmem>>, %arg6: memref<1x64xf32, #tpu.memory_space<vmem>>, %arg7: memref<64x32xbf16, #tpu.memory_space<vmem>>, %arg8: memref<1x32xf32, #tpu.memory_space<vmem>>, %arg9: memref<16x32xbf16, #tpu.memory_space<vmem>>, %arg10: memref<16x32xbf16, #tpu.memory_space<vmem>>, %arg11: memref<16x32xf32, #tpu.memory_space<vmem>>) attributes {dimension_semantics = [#tpu.dimension_semantics<parallel>, #tpu.dimension_semantics<arbitrary>], iteration_bounds = array<i64: 1, 1>, scalar_prefetch = 0 : i64, scratch_operands = 2 : i64, tpu.core_type = #tpu.core_type<tc>, window_params = [{transform_indices = @transform_0, window_bounds = array<i64: 16, 32>}, {pipeline_mode = #tpu.pipeline_mode<synchronous>, transform_indices = @transform_1, window_bounds = array<i64: 1, 32>}, {pipeline_mode = #tpu.pipeline_mode<synchronous>, transform_indices = @transform_2, window_bounds = array<i64: 1, 32>}, {transform_indices = @transform_3, window_bounds = array<i64: 32, 64>}, {transform_indices = @transform_4, window_bounds = array<i64: 1, 64>}, {transform_indices = @transform_5, window_bounds = array<i64: 64, 32>}, {pipeline_mode = #tpu.pipeline_mode<synchronous>, transform_indices = @transform_6, window_bounds = array<i64: 1, 32>}, {transform_indices = @transform_7, window_bounds = array<i64: 16, 32>}]} {
    %c0_i32 = arith.constant 0 : i32
    %0 = arith.cmpi eq, %arg1, %c0_i32 : i32
    %1 = arith.extui %0 : i1 to i32
    %c0_i32_0 = arith.constant 0 : i32
    %2 = arith.cmpi ne, %1, %c0_i32_0 : i32
    scf.if %2 {
      %c0_16 = arith.constant 0 : index
      %c0_17 = arith.constant 0 : index
      %20 = vector.load %arg2[%c0_16, %c0_17] : memref<16x32xbf16, #tpu.memory_space<vmem>>, vector<16x32xbf16>
      %21 = arith.extf %20 : vector<16x32xbf16> to vector<16x32xf32>
      %cst_18 = arith.constant dense<0.000000e+00> : vector<16xf32>
      %22 = vector.multi_reduction <add>, %21, %cst_18 [1] : vector<16x32xf32> to vector<16xf32>
      %23 = vector.shape_cast %22 : vector<16xf32> to vector<16x1xf32>
      %cst_19 = arith.constant 3.200000e+01 : f32
      %24 = vector.broadcast %cst_19 : f32 to vector<16x1xf32>
      %25 = arith.divf %23, %24 : vector<16x1xf32>
      %26 = vector.broadcast %25 : vector<16x1xf32> to vector<16x32xf32>
      %27 = arith.subf %21, %26 : vector<16x32xf32>
      %28 = arith.mulf %27, %27 : vector<16x32xf32>
      %cst_20 = arith.constant dense<0.000000e+00> : vector<16xf32>
      %29 = vector.multi_reduction <add>, %28, %cst_20 [1] : vector<16x32xf32> to vector<16xf32>
      %30 = vector.shape_cast %29 : vector<16xf32> to vector<16x1xf32>
      %cst_21 = arith.constant 3.200000e+01 : f32
      %31 = vector.broadcast %cst_21 : f32 to vector<16x1xf32>
      %32 = arith.divf %30, %31 : vector<16x1xf32>
      %33 = vector.broadcast %25 : vector<16x1xf32> to vector<16x32xf32>
      %34 = arith.subf %21, %33 : vector<16x32xf32>
      %cst_22 = arith.constant 9.99999974E-6 : f32
      %35 = vector.broadcast %cst_22 : f32 to vector<16x1xf32>
      %36 = arith.addf %32, %35 : vector<16x1xf32>
      %37 = math.rsqrt %36 : vector<16x1xf32>
      %38 = vector.broadcast %37 : vector<16x1xf32> to vector<16x32xf32>
      %39 = arith.mulf %34, %38 : vector<16x32xf32>
      %c0_23 = arith.constant 0 : index
      %c0_24 = arith.constant 0 : index
      %40 = vector.load %arg3[%c0_23, %c0_24] : memref<1x32xf32, #tpu.memory_space<vmem>>, vector<1x32xf32>
      %41 = vector.broadcast %40 : vector<1x32xf32> to vector<16x32xf32>
      %42 = arith.mulf %39, %41 : vector<16x32xf32>
      %c0_25 = arith.constant 0 : index
      %c0_26 = arith.constant 0 : index
      %43 = vector.load %arg4[%c0_25, %c0_26] : memref<1x32xf32, #tpu.memory_space<vmem>>, vector<1x32xf32>
      %44 = vector.broadcast %43 : vector<1x32xf32> to vector<16x32xf32>
      %45 = arith.addf %42, %44 : vector<16x32xf32>
      %46 = arith.truncf %45 : vector<16x32xf32> to vector<16x32xbf16>
      %c0_27 = arith.constant 0 : index
      %c0_28 = arith.constant 0 : index
      %47 = vector.load %arg10[%c0_27, %c0_28] : memref<16x32xbf16, #tpu.memory_space<vmem>>, vector<16x32xbf16>
      tpu.vector_store %arg10[%c0_27, %c0_28], %46 {strides = array<i32>} : memref<16x32xbf16, #tpu.memory_space<vmem>>, vector<16x32xbf16>,
      %cst_29 = arith.constant 0.000000e+00 : f32
      %48 = vector.broadcast %cst_29 : f32 to vector<16x32xf32>
      %c0_30 = arith.constant 0 : index
      %c0_31 = arith.constant 0 : index
      %49 = vector.load %arg11[%c0_30, %c0_31] : memref<16x32xf32, #tpu.memory_space<vmem>>, vector<16x32xf32>
      tpu.vector_store %arg11[%c0_30, %c0_31], %48 {strides = array<i32>} : memref<16x32xf32, #tpu.memory_space<vmem>>, vector<16x32xf32>,
    } else {
    }
    %c0 = arith.constant 0 : index
    %c0_1 = arith.constant 0 : index
    %3 = vector.load %arg10[%c0, %c0_1] : memref<16x32xbf16, #tpu.memory_space<vmem>>, vector<16x32xbf16>
    %c0_2 = arith.constant 0 : index
    %c0_3 = arith.constant 0 : index
    %4 = vector.load %arg5[%c0_2, %c0_3] : memref<32x64xbf16, #tpu.memory_space<vmem>>, vector<32x64xbf16>
    %cst = arith.constant dense<0.000000e+00> : vector<16x64xf32>
    %5 = tpu.matmul %3, %4, %cst {dimension_numbers = #tpu.dot_dimension_numbers<[1], [0], [0], [1], [0, 0, 1, 1], [], []>} : vector<16x32xbf16>, vector<32x64xbf16>, vector<16x64xf32> -> vector<16x64xf32>
    %c0_4 = arith.constant 0 : index
    %c0_5 = arith.constant 0 : index
    %6 = vector.load %arg6[%c0_4, %c0_5] : memref<1x64xf32, #tpu.memory_space<vmem>>, vector<1x64xf32>
    %7 = vector.broadcast %6 : vector<1x64xf32> to vector<16x64xf32>
    %8 = arith.addf %5, %7 : vector<16x64xf32>
    %cst_6 = arith.constant 0.000000e+00 : f32
    %9 = vector.broadcast %cst_6 : f32 to vector<16x64xf32>
    %10 = arith.maximumf %8, %9 : vector<16x64xf32>
    %c0_7 = arith.constant 0 : index
    %c0_8 = arith.constant 0 : index
    %11 = vector.load %arg11[%c0_7, %c0_8] : memref<16x32xf32, #tpu.memory_space<vmem>>, vector<16x32xf32>
    %12 = arith.truncf %10 : vector<16x64xf32> to vector<16x64xbf16>
    %c0_9 = arith.constant 0 : index
    %c0_10 = arith.constant 0 : index
    %13 = vector.load %arg7[%c0_9, %c0_10] : memref<64x32xbf16, #tpu.memory_space<vmem>>, vector<64x32xbf16>
    %cst_11 = arith.constant dense<0.000000e+00> : vector<16x32xf32>
    %14 = tpu.matmul %12, %13, %cst_11 {dimension_numbers = #tpu.dot_dimension_numbers<[1], [0], [0], [1], [0, 0, 1, 1], [], []>} : vector<16x64xbf16>, vector<64x32xbf16>, vector<16x32xf32> -> vector<16x32xf32>
    %15 = arith.addf %11, %14 : vector<16x32xf32>
    %c0_12 = arith.constant 0 : index
    %c0_13 = arith.constant 0 : index
    %16 = vector.load %arg11[%c0_12, %c0_13] : memref<16x32xf32, #tpu.memory_space<vmem>>, vector<16x32xf32>
    tpu.vector_store %arg11[%c0_12, %c0_13], %15 {strides = array<i32>} : memref<16x32xf32, #tpu.memory_space<vmem>>, vector<16x32xf32>,
    %c0_i32_14 = arith.constant 0 : i32
    %17 = arith.cmpi eq, %arg1, %c0_i32_14 : i32
    %18 = arith.extui %17 : i1 to i32
    %c0_i32_15 = arith.constant 0 : i32
    %19 = arith.cmpi ne, %18, %c0_i32_15 : i32
    scf.if %19 {
      %c0_16 = arith.constant 0 : index
      %c0_17 = arith.constant 0 : index
      %20 = vector.load %arg2[%c0_16, %c0_17] : memref<16x32xbf16, #tpu.memory_space<vmem>>, vector<16x32xbf16>
      %21 = arith.extf %20 : vector<16x32xbf16> to vector<16x32xf32>
      %c0_18 = arith.constant 0 : index
      %c0_19 = arith.constant 0 : index
      %22 = vector.load %arg11[%c0_18, %c0_19] : memref<16x32xf32, #tpu.memory_space<vmem>>, vector<16x32xf32>
      %23 = arith.addf %21, %22 : vector<16x32xf32>
      %c0_20 = arith.constant 0 : index
      %c0_21 = arith.constant 0 : index
      %24 = vector.load %arg8[%c0_20, %c0_21] : memref<1x32xf32, #tpu.memory_space<vmem>>, vector<1x32xf32>
      %25 = vector.broadcast %24 : vector<1x32xf32> to vector<16x32xf32>
      %26 = arith.addf %23, %25 : vector<16x32xf32>
      %27 = arith.truncf %26 : vector<16x32xf32> to vector<16x32xbf16>
      %c0_22 = arith.constant 0 : index
      %c0_23 = arith.constant 0 : index
      %28 = vector.load %arg9[%c0_22, %c0_23] : memref<16x32xbf16, #tpu.memory_space<vmem>>, vector<16x32xbf16>
      tpu.vector_store %arg9[%c0_22, %c0_23], %27 {strides = array<i32>} : memref<16x32xbf16, #tpu.memory_space<vmem>>, vector<16x32xbf16>,
    } else {
    }
    return
  }
  func.func @transform_0(%arg0: i32, %arg1: i32) -> (i32, i32) {
    %c0_i32 = arith.constant 0 : i32
    %c0_i32_0 = arith.constant 0 : i32
    return %arg0, %c0_i32 : i32, i32
  }
  func.func @transform_1(%arg0: i32, %arg1: i32) -> (i32, i32) {
    %c0_i32 = arith.constant 0 : i32
    %c0_i32_0 = arith.constant 0 : i32
    %c0_i32_1 = arith.constant 0 : i32
    return %c0_i32, %c0_i32_0 : i32, i32
  }
  func.func @transform_2(%arg0: i32, %arg1: i32) -> (i32, i32) {
    %c0_i32 = arith.constant 0 : i32
    %c0_i32_0 = arith.constant 0 : i32
    %c0_i32_1 = arith.constant 0 : i32
    return %c0_i32, %c0_i32_0 : i32, i32
  }
  func.func @transform_3(%arg0: i32, %arg1: i32) -> (i32, i32) {
    %c0_i32 = arith.constant 0 : i32
    %c0_i32_0 = arith.constant 0 : i32
    return %c0_i32, %arg1 : i32, i32
  }
  func.func @transform_4(%arg0: i32, %arg1: i32) -> (i32, i32) {
    %c0_i32 = arith.constant 0 : i32
    %c0_i32_0 = arith.constant 0 : i32
    return %c0_i32, %arg1 : i32, i32
  }
  func.func @transform_5(%arg0: i32, %arg1: i32) -> (i32, i32) {
    %c0_i32 = arith.constant 0 : i32
    %c0_i32_0 = arith.constant 0 : i32
    return %arg1, %c0_i32 : i32, i32
  }
  func.func @transform_6(%arg0: i32, %arg1: i32) -> (i32, i32) {
    %c0_i32 = arith.constant 0 : i32
    %c0_i32_0 = arith.constant 0 : i32
    %c0_i32_1 = arith.constant 0 : i32
    return %c0_i32, %c0_i32_0 : i32, i32
  }
  func.func @transform_7(%arg0: i32, %arg1: i32) -> (i32, i32) {
    %c0_i32 = arith.constant 0 : i32
    %c0_i32_0 = arith.constant 0 : i32
    return %arg0, %c0_i32 : i32, i32
  }
}

module attributes {stable_mosaic.version = 11 : i64} {
  func.func @_layernorm_kernel(%arg0: i32, %arg1: memref<16x32xbf16, #tpu.memory_space<vmem>>, %arg2: memref<1x32xf32, #tpu.memory_space<vmem>>, %arg3: memref<1x32xf32, #tpu.memory_space<vmem>>, %arg4: memref<16x32xf32, #tpu.memory_space<vmem>>) attributes {dimension_semantics = [#tpu.dimension_semantics<parallel>], iteration_bounds = array<i64: 1>, scalar_prefetch = 0 : i64, scratch_operands = 0 : i64, tpu.core_type = #tpu.core_type<tc>, window_params = [{transform_indices = @transform_0, window_bounds = array<i64: 16, 32>}, {pipeline_mode = #tpu.pipeline_mode<synchronous>, transform_indices = @transform_1, window_bounds = array<i64: 1, 32>}, {pipeline_mode = #tpu.pipeline_mode<synchronous>, transform_indices = @transform_2, window_bounds = array<i64: 1, 32>}, {transform_indices = @transform_3, window_bounds = array<i64: 16, 32>}]} {
    %c0 = arith.constant 0 : index
    %c0_0 = arith.constant 0 : index
    %0 = vector.load %arg1[%c0, %c0_0] : memref<16x32xbf16, #tpu.memory_space<vmem>>, vector<16x32xbf16>
    %1 = arith.extf %0 : vector<16x32xbf16> to vector<16x32xf32>
    %cst = arith.constant dense<0.000000e+00> : vector<16xf32>
    %2 = vector.multi_reduction <add>, %1, %cst [1] : vector<16x32xf32> to vector<16xf32>
    %3 = vector.shape_cast %2 : vector<16xf32> to vector<16x1xf32>
    %cst_1 = arith.constant 3.200000e+01 : f32
    %4 = vector.broadcast %cst_1 : f32 to vector<16x1xf32>
    %5 = arith.divf %3, %4 : vector<16x1xf32>
    %6 = vector.broadcast %5 : vector<16x1xf32> to vector<16x32xf32>
    %7 = arith.subf %1, %6 : vector<16x32xf32>
    %8 = arith.mulf %7, %7 : vector<16x32xf32>
    %cst_2 = arith.constant dense<0.000000e+00> : vector<16xf32>
    %9 = vector.multi_reduction <add>, %8, %cst_2 [1] : vector<16x32xf32> to vector<16xf32>
    %10 = vector.shape_cast %9 : vector<16xf32> to vector<16x1xf32>
    %cst_3 = arith.constant 3.200000e+01 : f32
    %11 = vector.broadcast %cst_3 : f32 to vector<16x1xf32>
    %12 = arith.divf %10, %11 : vector<16x1xf32>
    %13 = vector.broadcast %5 : vector<16x1xf32> to vector<16x32xf32>
    %14 = arith.subf %1, %13 : vector<16x32xf32>
    %cst_4 = arith.constant 9.99999974E-6 : f32
    %15 = vector.broadcast %cst_4 : f32 to vector<16x1xf32>
    %16 = arith.addf %12, %15 : vector<16x1xf32>
    %17 = math.rsqrt %16 : vector<16x1xf32>
    %18 = vector.broadcast %17 : vector<16x1xf32> to vector<16x32xf32>
    %19 = arith.mulf %14, %18 : vector<16x32xf32>
    %c0_5 = arith.constant 0 : index
    %c0_6 = arith.constant 0 : index
    %20 = vector.load %arg2[%c0_5, %c0_6] : memref<1x32xf32, #tpu.memory_space<vmem>>, vector<1x32xf32>
    %21 = vector.broadcast %20 : vector<1x32xf32> to vector<16x32xf32>
    %22 = arith.mulf %19, %21 : vector<16x32xf32>
    %c0_7 = arith.constant 0 : index
    %c0_8 = arith.constant 0 : index
    %23 = vector.load %arg3[%c0_7, %c0_8] : memref<1x32xf32, #tpu.memory_space<vmem>>, vector<1x32xf32>
    %24 = vector.broadcast %23 : vector<1x32xf32> to vector<16x32xf32>
    %25 = arith.addf %22, %24 : vector<16x32xf32>
    %c0_9 = arith.constant 0 : index
    %c0_10 = arith.constant 0 : index
    %26 = vector.load %arg4[%c0_9, %c0_10] : memref<16x32xf32, #tpu.memory_space<vmem>>, vector<16x32xf32>
    tpu.vector_store %arg4[%c0_9, %c0_10], %25 {strides = array<i32>} : memref<16x32xf32, #tpu.memory_space<vmem>>, vector<16x32xf32>,
    return
  }
  func.func @transform_0(%arg0: i32) -> (i32, i32) {
    %c0_i32 = arith.constant 0 : i32
    %c0_i32_0 = arith.constant 0 : i32
    return %arg0, %c0_i32 : i32, i32
  }
  func.func @transform_1(%arg0: i32) -> (i32, i32) {
    %c0_i32 = arith.constant 0 : i32
    %c0_i32_0 = arith.constant 0 : i32
    %c0_i32_1 = arith.constant 0 : i32
    return %c0_i32, %c0_i32_0 : i32, i32
  }
  func.func @transform_2(%arg0: i32) -> (i32, i32) {
    %c0_i32 = arith.constant 0 : i32
    %c0_i32_0 = arith.constant 0 : i32
    %c0_i32_1 = arith.constant 0 : i32
    return %c0_i32, %c0_i32_0 : i32, i32
  }
  func.func @transform_3(%arg0: i32) -> (i32, i32) {
    %c0_i32 = arith.constant 0 : i32
    %c0_i32_0 = arith.constant 0 : i32
    return %arg0, %c0_i32 : i32, i32
  }
}

module attributes {stable_mosaic.version = 11 : i64} {
  func.func @_matmul_split_kernel(%arg0: i32, %arg1: memref<16x32xf32, #tpu.memory_space<vmem>>, %arg2: memref<32x64xbf16, #tpu.memory_space<vmem>>, %arg3: memref<1x64xf32, #tpu.memory_space<vmem>>, %arg4: memref<16x32xbf16, #tpu.memory_space<vmem>>, %arg5: memref<16x32xbf16, #tpu.memory_space<vmem>>) attributes {dimension_semantics = [#tpu.dimension_semantics<parallel>], iteration_bounds = array<i64: 1>, scalar_prefetch = 0 : i64, scratch_operands = 0 : i64, tpu.core_type = #tpu.core_type<tc>, window_params = [{transform_indices = @transform_0, window_bounds = array<i64: 16, 32>}, {pipeline_mode = #tpu.pipeline_mode<synchronous>, transform_indices = @transform_1, window_bounds = array<i64: 32, 64>}, {pipeline_mode = #tpu.pipeline_mode<synchronous>, transform_indices = @transform_2, window_bounds = array<i64: 1, 64>}, {transform_indices = @transform_3, window_bounds = array<i64: 16, 32>}, {transform_indices = @transform_4, window_bounds = array<i64: 16, 32>}]} {
    %c0 = arith.constant 0 : index
    %c0_0 = arith.constant 0 : index
    %0 = vector.load %arg1[%c0, %c0_0] : memref<16x32xf32, #tpu.memory_space<vmem>>, vector<16x32xf32>
    %1 = arith.truncf %0 : vector<16x32xf32> to vector<16x32xbf16>
    %c0_1 = arith.constant 0 : index
    %c0_2 = arith.constant 0 : index
    %2 = vector.load %arg2[%c0_1, %c0_2] : memref<32x64xbf16, #tpu.memory_space<vmem>>, vector<32x64xbf16>
    %cst = arith.constant dense<0.000000e+00> : vector<16x64xf32>
    %3 = tpu.matmul %1, %2, %cst {dimension_numbers = #tpu.dot_dimension_numbers<[1], [0], [0], [1], [0, 0, 1, 1], [], []>} : vector<16x32xbf16>, vector<32x64xbf16>, vector<16x64xf32> -> vector<16x64xf32>
    %c0_3 = arith.constant 0 : index
    %c0_4 = arith.constant 0 : index
    %4 = vector.load %arg3[%c0_3, %c0_4] : memref<1x64xf32, #tpu.memory_space<vmem>>, vector<1x64xf32>
    %5 = vector.broadcast %4 : vector<1x64xf32> to vector<16x64xf32>
    %6 = arith.addf %3, %5 : vector<16x64xf32>
    %7 = vector.extract_strided_slice %6 {offsets = [0, 0], sizes = [16, 32], strides = [1, 1]} : vector<16x64xf32> to vector<16x32xf32>
    %8 = arith.truncf %7 : vector<16x32xf32> to vector<16x32xbf16>
    %c0_5 = arith.constant 0 : index
    %c0_6 = arith.constant 0 : index
    %9 = vector.load %arg4[%c0_5, %c0_6] : memref<16x32xbf16, #tpu.memory_space<vmem>>, vector<16x32xbf16>
    tpu.vector_store %arg4[%c0_5, %c0_6], %8 {strides = array<i32>} : memref<16x32xbf16, #tpu.memory_space<vmem>>, vector<16x32xbf16>,
    %10 = vector.extract_strided_slice %6 {offsets = [0, 32], sizes = [16, 32], strides = [1, 1]} : vector<16x64xf32> to vector<16x32xf32>
    %11 = arith.truncf %10 : vector<16x32xf32> to vector<16x32xbf16>
    %c0_7 = arith.constant 0 : index
    %c0_8 = arith.constant 0 : index
    %12 = vector.load %arg5[%c0_7, %c0_8] : memref<16x32xbf16, #tpu.memory_space<vmem>>, vector<16x32xbf16>
    tpu.vector_store %arg5[%c0_7, %c0_8], %11 {strides = array<i32>} : memref<16x32xbf16, #tpu.memory_space<vmem>>, vector<16x32xbf16>,
    return
  }
  func.func @transform_0(%arg0: i32) -> (i32, i32) {
    %c0_i32 = arith.constant 0 : i32
    %c0_i32_0 = arith.constant 0 : i32
    return %arg0, %c0_i32 : i32, i32
  }
  func.func @transform_1(%arg0: i32) -> (i32, i32) {
    %c0_i32 = arith.constant 0 : i32
    %c0_i32_0 = arith.constant 0 : i32
    %c0_i32_1 = arith.constant 0 : i32
    return %c0_i32, %c0_i32_0 : i32, i32
  }
  func.func @transform_2(%arg0: i32) -> (i32, i32) {
    %c0_i32 = arith.constant 0 : i32
    %c0_i32_0 = arith.constant 0 : i32
    %c0_i32_1 = arith.constant 0 : i32
    return %c0_i32, %c0_i32_0 : i32, i32
  }
  func.func @transform_3(%arg0: i32) -> (i32, i32) {
    %c0_i32 = arith.constant 0 : i32
    %c0_i32_0 = arith.constant 0 : i32
    return %arg0, %c0_i32 : i32, i32
  }
  func.func @transform_4(%arg0: i32) -> (i32, i32) {
    %c0_i32 = arith.constant 0 : i32
    %c0_i32_0 = arith.constant 0 : i32
    return %arg0, %c0_i32 : i32, i32
  }
}

module attributes {stable_mosaic.version = 11 : i64} {
  func.func @_ln_matmul_kernel(%arg0: i32, %arg1: memref<16x32xbf16, #tpu.memory_space<vmem>>, %arg2: memref<1x32xf32, #tpu.memory_space<vmem>>, %arg3: memref<1x32xf32, #tpu.memory_space<vmem>>, %arg4: memref<32x32xbf16, #tpu.memory_space<vmem>>, %arg5: memref<1x32xf32, #tpu.memory_space<vmem>>, %arg6: memref<16x32xbf16, #tpu.memory_space<vmem>>) attributes {dimension_semantics = [#tpu.dimension_semantics<parallel>], iteration_bounds = array<i64: 1>, scalar_prefetch = 0 : i64, scratch_operands = 0 : i64, tpu.core_type = #tpu.core_type<tc>, window_params = [{transform_indices = @transform_0, window_bounds = array<i64: 16, 32>}, {pipeline_mode = #tpu.pipeline_mode<synchronous>, transform_indices = @transform_1, window_bounds = array<i64: 1, 32>}, {pipeline_mode = #tpu.pipeline_mode<synchronous>, transform_indices = @transform_2, window_bounds = array<i64: 1, 32>}, {pipeline_mode = #tpu.pipeline_mode<synchronous>, transform_indices = @transform_3, window_bounds = array<i64: 32, 32>}, {pipeline_mode = #tpu.pipeline_mode<synchronous>, transform_indices = @transform_4, window_bounds = array<i64: 1, 32>}, {transform_indices = @transform_5, window_bounds = array<i64: 16, 32>}]} {
    %c0 = arith.constant 0 : index
    %c0_0 = arith.constant 0 : index
    %0 = vector.load %arg1[%c0, %c0_0] : memref<16x32xbf16, #tpu.memory_space<vmem>>, vector<16x32xbf16>
    %1 = arith.extf %0 : vector<16x32xbf16> to vector<16x32xf32>
    %cst = arith.constant dense<0.000000e+00> : vector<16xf32>
    %2 = vector.multi_reduction <add>, %1, %cst [1] : vector<16x32xf32> to vector<16xf32>
    %3 = vector.shape_cast %2 : vector<16xf32> to vector<16x1xf32>
    %cst_1 = arith.constant 3.200000e+01 : f32
    %4 = vector.broadcast %cst_1 : f32 to vector<16x1xf32>
    %5 = arith.divf %3, %4 : vector<16x1xf32>
    %6 = vector.broadcast %5 : vector<16x1xf32> to vector<16x32xf32>
    %7 = arith.subf %1, %6 : vector<16x32xf32>
    %8 = arith.mulf %7, %7 : vector<16x32xf32>
    %cst_2 = arith.constant dense<0.000000e+00> : vector<16xf32>
    %9 = vector.multi_reduction <add>, %8, %cst_2 [1] : vector<16x32xf32> to vector<16xf32>
    %10 = vector.shape_cast %9 : vector<16xf32> to vector<16x1xf32>
    %cst_3 = arith.constant 3.200000e+01 : f32
    %11 = vector.broadcast %cst_3 : f32 to vector<16x1xf32>
    %12 = arith.divf %10, %11 : vector<16x1xf32>
    %13 = vector.broadcast %5 : vector<16x1xf32> to vector<16x32xf32>
    %14 = arith.subf %1, %13 : vector<16x32xf32>
    %cst_4 = arith.constant 9.99999974E-6 : f32
    %15 = vector.broadcast %cst_4 : f32 to vector<16x1xf32>
    %16 = arith.addf %12, %15 : vector<16x1xf32>
    %17 = math.rsqrt %16 : vector<16x1xf32>
    %18 = vector.broadcast %17 : vector<16x1xf32> to vector<16x32xf32>
    %19 = arith.mulf %14, %18 : vector<16x32xf32>
    %c0_5 = arith.constant 0 : index
    %c0_6 = arith.constant 0 : index
    %20 = vector.load %arg2[%c0_5, %c0_6] : memref<1x32xf32, #tpu.memory_space<vmem>>, vector<1x32xf32>
    %21 = vector.broadcast %20 : vector<1x32xf32> to vector<16x32xf32>
    %22 = arith.mulf %19, %21 : vector<16x32xf32>
    %c0_7 = arith.constant 0 : index
    %c0_8 = arith.constant 0 : index
    %23 = vector.load %arg3[%c0_7, %c0_8] : memref<1x32xf32, #tpu.memory_space<vmem>>, vector<1x32xf32>
    %24 = vector.broadcast %23 : vector<1x32xf32> to vector<16x32xf32>
    %25 = arith.addf %22, %24 : vector<16x32xf32>
    %26 = arith.truncf %25 : vector<16x32xf32> to vector<16x32xbf16>
    %c0_9 = arith.constant 0 : index
    %c0_10 = arith.constant 0 : index
    %27 = vector.load %arg4[%c0_9, %c0_10] : memref<32x32xbf16, #tpu.memory_space<vmem>>, vector<32x32xbf16>
    %cst_11 = arith.constant dense<0.000000e+00> : vector<16x32xf32>
    %28 = tpu.matmul %26, %27, %cst_11 {dimension_numbers = #tpu.dot_dimension_numbers<[1], [0], [0], [1], [0, 0, 1, 1], [], []>} : vector<16x32xbf16>, vector<32x32xbf16>, vector<16x32xf32> -> vector<16x32xf32>
    %c0_12 = arith.constant 0 : index
    %c0_13 = arith.constant 0 : index
    %29 = vector.load %arg5[%c0_12, %c0_13] : memref<1x32xf32, #tpu.memory_space<vmem>>, vector<1x32xf32>
    %30 = vector.broadcast %29 : vector<1x32xf32> to vector<16x32xf32>
    %31 = arith.addf %28, %30 : vector<16x32xf32>
    %32 = arith.truncf %31 : vector<16x32xf32> to vector<16x32xbf16>
    %c0_14 = arith.constant 0 : index
    %c0_15 = arith.constant 0 : index
    %33 = vector.load %arg6[%c0_14, %c0_15] : memref<16x32xbf16, #tpu.memory_space<vmem>>, vector<16x32xbf16>
    tpu.vector_store %arg6[%c0_14, %c0_15], %32 {strides = array<i32>} : memref<16x32xbf16, #tpu.memory_space<vmem>>, vector<16x32xbf16>,
    return
  }
  func.func @transform_0(%arg0: i32) -> (i32, i32) {
    %c0_i32 = arith.constant 0 : i32
    %c0_i32_0 = arith.constant 0 : i32
    return %arg0, %c0_i32 : i32, i32
  }
  func.func @transform_1(%arg0: i32) -> (i32, i32) {
    %c0_i32 = arith.constant 0 : i32
    %c0_i32_0 = arith.constant 0 : i32
    %c0_i32_1 = arith.constant 0 : i32
    return %c0_i32, %c0_i32_0 : i32, i32
  }
  func.func @transform_2(%arg0: i32) -> (i32, i32) {
    %c0_i32 = arith.constant 0 : i32
    %c0_i32_0 = arith.constant 0 : i32
    %c0_i32_1 = arith.constant 0 : i32
    return %c0_i32, %c0_i32_0 : i32, i32
  }
  func.func @transform_3(%arg0: i32) -> (i32, i32) {
    %c0_i32 = arith.constant 0 : i32
    %c0_i32_0 = arith.constant 0 : i32
    %c0_i32_1 = arith.constant 0 : i32
    return %c0_i32, %c0_i32_0 : i32, i32
  }
  func.func @transform_4(%arg0: i32) -> (i32, i32) {
    %c0_i32 = arith.constant 0 : i32
    %c0_i32_0 = arith.constant 0 : i32
    %c0_i32_1 = arith.constant 0 : i32
    return %c0_i32, %c0_i32_0 : i32, i32
  }
  func.func @transform_5(%arg0: i32) -> (i32, i32) {
    %c0_i32 = arith.constant 0 : i32
    %c0_i32_0 = arith.constant 0 : i32
    return %arg0, %c0_i32 : i32, i32
  }
}

module attributes {stable_mosaic.version = 11 : i64} {
  func.func @_flash_attn_kernel(%arg0: i32, %arg1: i32, %arg2: i32, %arg3: memref<1x1x8xf32, #tpu.memory_space<vmem>>, %arg4: memref<1x8x32xbf16, #tpu.memory_space<vmem>>, %arg5: memref<1x8x32xbf16, #tpu.memory_space<vmem>>, %arg6: memref<1x8x32xbf16, #tpu.memory_space<vmem>>, %arg7: memref<1x8x32xbf16, #tpu.memory_space<vmem>>, %arg8: memref<4x8xf32, #tpu.memory_space<vmem>>, %arg9: memref<4x8xf32, #tpu.memory_space<vmem>>, %arg10: memref<4x8x8xf32, #tpu.memory_space<vmem>>) attributes {dimension_semantics = [#tpu.dimension_semantics<parallel>, #tpu.dimension_semantics<parallel>, #tpu.dimension_semantics<arbitrary>], iteration_bounds = array<i64: 2, 1, 1>, scalar_prefetch = 0 : i64, scratch_operands = 3 : i64, tpu.core_type = #tpu.core_type<tc>, window_params = [{transform_indices = @transform_0, window_bounds = array<i64: 1, 1, 8>}, {transform_indices = @transform_1, window_bounds = array<i64: 1, 8, 32>}, {transform_indices = @transform_2, window_bounds = array<i64: 1, 8, 32>}, {transform_indices = @transform_3, window_bounds = array<i64: 1, 8, 32>}, {transform_indices = @transform_4, window_bounds = array<i64: 1, 8, 32>}]} {
    %c0_i32 = arith.constant 0 : i32
    %0 = arith.cmpi eq, %arg2, %c0_i32 : i32
    %1 = arith.extui %0 : i1 to i32
    %c0_i32_0 = arith.constant 0 : i32
    %2 = arith.cmpi ne, %1, %c0_i32_0 : i32
    scf.if %2 {
      %cst = arith.constant 0xFF800000 : f32
      %13 = vector.broadcast %cst : f32 to vector<4x8xf32>
      %c0 = arith.constant 0 : index
      %c0_6 = arith.constant 0 : index
      %14 = vector.load %arg8[%c0, %c0_6] : memref<4x8xf32, #tpu.memory_space<vmem>>, vector<4x8xf32>
      tpu.vector_store %arg8[%c0, %c0_6], %13 {strides = array<i32>} : memref<4x8xf32, #tpu.memory_space<vmem>>, vector<4x8xf32>,
      %cst_7 = arith.constant 0.000000e+00 : f32
      %15 = vector.broadcast %cst_7 : f32 to vector<4x8xf32>
      %c0_8 = arith.constant 0 : index
      %c0_9 = arith.constant 0 : index
      %16 = vector.load %arg9[%c0_8, %c0_9] : memref<4x8xf32, #tpu.memory_space<vmem>>, vector<4x8xf32>
      tpu.vector_store %arg9[%c0_8, %c0_9], %15 {strides = array<i32>} : memref<4x8xf32, #tpu.memory_space<vmem>>, vector<4x8xf32>,
      %cst_10 = arith.constant 0.000000e+00 : f32
      %17 = vector.broadcast %cst_10 : f32 to vector<4x8x8xf32>
      %c0_11 = arith.constant 0 : index
      %c0_12 = arith.constant 0 : index
      %c0_13 = arith.constant 0 : index
      %18 = vector.load %arg10[%c0_11, %c0_12, %c0_13] : memref<4x8x8xf32, #tpu.memory_space<vmem>>, vector<4x8x8xf32>
      tpu.vector_store %arg10[%c0_11, %c0_12, %c0_13], %17 {strides = array<i32>} : memref<4x8x8xf32, #tpu.memory_space<vmem>>, vector<4x8x8xf32>,
    } else {
    }
    %c8_i32 = arith.constant 8 : i32
    %3 = arith.muli %arg2, %c8_i32 : i32
    %c8_i32_1 = arith.constant 8 : i32
    %4 = arith.muli %arg1, %c8_i32_1 : i32
    %c8_i32_2 = arith.constant 8 : i32
    %5 = arith.addi %4, %c8_i32_2 : i32
    %c1_i32 = arith.constant 1 : i32
    %6 = arith.subi %5, %c1_i32 : i32
    %7 = arith.cmpi sle, %3, %6 : i32
    %8 = arith.extui %7 : i1 to i32
    %c0_i32_3 = arith.constant 0 : i32
    %9 = arith.cmpi ne, %8, %c0_i32_3 : i32
    scf.if %9 {
      %c0 = arith.constant 0 : index
      %c0_6 = arith.constant 0 : index
      %c0_7 = arith.constant 0 : index
      %13 = vector.load %arg4[%c0, %c0_6, %c0_7] : memref<1x8x32xbf16, #tpu.memory_space<vmem>>, vector<1x8x32xbf16>
      %14 = vector.shape_cast %13 : vector<1x8x32xbf16> to vector<8x32xbf16>
      %15 = vector.extract_strided_slice %14 {offsets = [0, 0], sizes = [8, 8], strides = [1, 1]} : vector<8x32xbf16> to vector<8x8xbf16>
      %16 = vector.extract_strided_slice %14 {offsets = [0, 8], sizes = [8, 8], strides = [1, 1]} : vector<8x32xbf16> to vector<8x8xbf16>
      %17 = vector.extract_strided_slice %14 {offsets = [0, 16], sizes = [8, 8], strides = [1, 1]} : vector<8x32xbf16> to vector<8x8xbf16>
      %18 = vector.extract_strided_slice %14 {offsets = [0, 24], sizes = [8, 8], strides = [1, 1]} : vector<8x32xbf16> to vector<8x8xbf16>
      %19 = vector.shape_cast %15 : vector<8x8xbf16> to vector<1x8x8xbf16>
      %20 = vector.shape_cast %16 : vector<8x8xbf16> to vector<1x8x8xbf16>
      %21 = vector.shape_cast %17 : vector<8x8xbf16> to vector<1x8x8xbf16>
      %22 = vector.shape_cast %18 : vector<8x8xbf16> to vector<1x8x8xbf16>
      %23 = tpu.concatenate %19, %20, %21, %22 in 0 : vector<1x8x8xbf16>, vector<1x8x8xbf16>, vector<1x8x8xbf16>, vector<1x8x8xbf16> -> vector<4x8x8xbf16>
      %c0_8 = arith.constant 0 : index
      %c0_9 = arith.constant 0 : index
      %c0_10 = arith.constant 0 : index
      %24 = vector.load %arg5[%c0_8, %c0_9, %c0_10] : memref<1x8x32xbf16, #tpu.memory_space<vmem>>, vector<1x8x32xbf16>
      %25 = vector.shape_cast %24 : vector<1x8x32xbf16> to vector<8x32xbf16>
      %26 = vector.extract_strided_slice %25 {offsets = [0, 0], sizes = [8, 8], strides = [1, 1]} : vector<8x32xbf16> to vector<8x8xbf16>
      %27 = vector.extract_strided_slice %25 {offsets = [0, 8], sizes = [8, 8], strides = [1, 1]} : vector<8x32xbf16> to vector<8x8xbf16>
      %28 = vector.extract_strided_slice %25 {offsets = [0, 16], sizes = [8, 8], strides = [1, 1]} : vector<8x32xbf16> to vector<8x8xbf16>
      %29 = vector.extract_strided_slice %25 {offsets = [0, 24], sizes = [8, 8], strides = [1, 1]} : vector<8x32xbf16> to vector<8x8xbf16>
      %30 = vector.shape_cast %26 : vector<8x8xbf16> to vector<1x8x8xbf16>
      %31 = vector.shape_cast %27 : vector<8x8xbf16> to vector<1x8x8xbf16>
      %32 = vector.shape_cast %28 : vector<8x8xbf16> to vector<1x8x8xbf16>
      %33 = vector.shape_cast %29 : vector<8x8xbf16> to vector<1x8x8xbf16>
      %34 = tpu.concatenate %30, %31, %32, %33 in 0 : vector<1x8x8xbf16>, vector<1x8x8xbf16>, vector<1x8x8xbf16>, vector<1x8x8xbf16> -> vector<4x8x8xbf16>
      %c0_11 = arith.constant 0 : index
      %c0_12 = arith.constant 0 : index
      %c0_13 = arith.constant 0 : index
      %35 = vector.load %arg6[%c0_11, %c0_12, %c0_13] : memref<1x8x32xbf16, #tpu.memory_space<vmem>>, vector<1x8x32xbf16>
      %36 = vector.shape_cast %35 : vector<1x8x32xbf16> to vector<8x32xbf16>
      %37 = vector.extract_strided_slice %36 {offsets = [0, 0], sizes = [8, 8], strides = [1, 1]} : vector<8x32xbf16> to vector<8x8xbf16>
      %38 = vector.extract_strided_slice %36 {offsets = [0, 8], sizes = [8, 8], strides = [1, 1]} : vector<8x32xbf16> to vector<8x8xbf16>
      %39 = vector.extract_strided_slice %36 {offsets = [0, 16], sizes = [8, 8], strides = [1, 1]} : vector<8x32xbf16> to vector<8x8xbf16>
      %40 = vector.extract_strided_slice %36 {offsets = [0, 24], sizes = [8, 8], strides = [1, 1]} : vector<8x32xbf16> to vector<8x8xbf16>
      %41 = vector.shape_cast %37 : vector<8x8xbf16> to vector<1x8x8xbf16>
      %42 = vector.shape_cast %38 : vector<8x8xbf16> to vector<1x8x8xbf16>
      %43 = vector.shape_cast %39 : vector<8x8xbf16> to vector<1x8x8xbf16>
      %44 = vector.shape_cast %40 : vector<8x8xbf16> to vector<1x8x8xbf16>
      %45 = tpu.concatenate %41, %42, %43, %44 in 0 : vector<1x8x8xbf16>, vector<1x8x8xbf16>, vector<1x8x8xbf16>, vector<1x8x8xbf16> -> vector<4x8x8xbf16>
      "tpu.trace_start"() <{level = 10 : i32, message = "hqd,hkd->hqk"}> : () -> ()
      %cst = arith.constant dense<0.000000e+00> : vector<4x8x8xf32>
      %46 = tpu.matmul %23, %34, %cst {dimension_numbers = #tpu.dot_dimension_numbers<[2], [2], [1], [1], [0, 0, 0, 1, 1, 1], [0], [0]>} : vector<4x8x8xbf16>, vector<4x8x8xbf16>, vector<4x8x8xf32> -> vector<4x8x8xf32>
      "tpu.trace_stop"() : () -> ()
      %c0_14 = arith.constant 0 : index
      %c0_15 = arith.constant 0 : index
      %c0_16 = arith.constant 0 : index
      %47 = vector.load %arg3[%c0_14, %c0_15, %c0_16] : memref<1x1x8xf32, #tpu.memory_space<vmem>>, vector<1x1x8xf32>
      %48 = vector.shape_cast %47 : vector<1x1x8xf32> to vector<1x8xf32>
      %cst_17 = arith.constant 1.000000e+00 : f32
      %49 = vector.broadcast %cst_17 : f32 to vector<1x8xf32>
      %50 = arith.subf %48, %49 : vector<1x8xf32>
      %cst_18 = arith.constant 1.000000e+09 : f32
      %51 = vector.broadcast %cst_18 : f32 to vector<1x8xf32>
      %52 = arith.mulf %50, %51 : vector<1x8xf32>
      %53 = vector.shape_cast %52 : vector<1x8xf32> to vector<1x1x8xf32>
      %54 = vector.broadcast %53 : vector<1x1x8xf32> to vector<4x8x8xf32>
      %55 = arith.addf %46, %54 : vector<4x8x8xf32>
      %c8_i32_19 = arith.constant 8 : i32
      %56 = arith.muli %arg1, %c8_i32_19 : i32
      %57 = tpu.iota {dimensions = array<i32: 0>} : vector<8x8xi32>
      %58 = vector.broadcast %56 : i32 to vector<8x8xi32>
      %59 = arith.addi %58, %57 : vector<8x8xi32>
      %c8_i32_20 = arith.constant 8 : i32
      %60 = arith.muli %arg2, %c8_i32_20 : i32
      %61 = tpu.iota {dimensions = array<i32: 1>} : vector<8x8xi32>
      %62 = vector.broadcast %60 : i32 to vector<8x8xi32>
      %63 = arith.addi %62, %61 : vector<8x8xi32>
      %64 = arith.cmpi sgt, %63, %59 : vector<8x8xi32>
      %cst_21 = arith.constant -1.000000e+09 : f32
      %cst_22 = arith.constant 0.000000e+00 : f32
      %65 = vector.broadcast %cst_21 : f32 to vector<8x8xf32>
      %66 = vector.broadcast %cst_22 : f32 to vector<8x8xf32>
      %67 = arith.select %64, %65, %66 : vector<8x8xi1>, vector<8x8xf32>
      %68 = vector.shape_cast %67 : vector<8x8xf32> to vector<1x8x8xf32>
      %69 = vector.broadcast %68 : vector<1x8x8xf32> to vector<4x8x8xf32>
      %70 = arith.addf %55, %69 : vector<4x8x8xf32>
      %c0_23 = arith.constant 0 : index
      %c0_24 = arith.constant 0 : index
      %71 = vector.load %arg8[%c0_23, %c0_24] : memref<4x8xf32, #tpu.memory_space<vmem>>, vector<4x8xf32>
      %cst_25 = arith.constant dense<0xFF800000> : vector<4x8xf32>
      %72 = vector.multi_reduction <maximumf>, %70, %cst_25 [2] : vector<4x8x8xf32> to vector<4x8xf32>
      %73 = arith.maximumf %71, %72 : vector<4x8xf32>
      %74 = arith.subf %71, %73 : vector<4x8xf32>
      %75 = math.exp %74 : vector<4x8xf32>
      %76 = vector.shape_cast %73 : vector<4x8xf32> to vector<4x8x1xf32>
      %77 = vector.broadcast %76 : vector<4x8x1xf32> to vector<4x8x8xf32>
      %78 = arith.subf %70, %77 : vector<4x8x8xf32>
      %79 = math.exp %78 : vector<4x8x8xf32>
      %c0_26 = arith.constant 0 : index
      %c0_27 = arith.constant 0 : index
      %80 = vector.load %arg9[%c0_26, %c0_27] : memref<4x8xf32, #tpu.memory_space<vmem>>, vector<4x8xf32>
      %81 = arith.mulf %75, %80 : vector<4x8xf32>
      %cst_28 = arith.constant dense<0.000000e+00> : vector<4x8xf32>
      %82 = vector.multi_reduction <add>, %79, %cst_28 [2] : vector<4x8x8xf32> to vector<4x8xf32>
      %83 = arith.addf %81, %82 : vector<4x8xf32>
      %c0_29 = arith.constant 0 : index
      %c0_30 = arith.constant 0 : index
      %84 = vector.load %arg9[%c0_29, %c0_30] : memref<4x8xf32, #tpu.memory_space<vmem>>, vector<4x8xf32>
      tpu.vector_store %arg9[%c0_29, %c0_30], %83 {strides = array<i32>} : memref<4x8xf32, #tpu.memory_space<vmem>>, vector<4x8xf32>,
      %85 = vector.shape_cast %75 : vector<4x8xf32> to vector<4x8x1xf32>
      %c0_31 = arith.constant 0 : index
      %c0_32 = arith.constant 0 : index
      %c0_33 = arith.constant 0 : index
      %86 = vector.load %arg10[%c0_31, %c0_32, %c0_33] : memref<4x8x8xf32, #tpu.memory_space<vmem>>, vector<4x8x8xf32>
      %87 = vector.broadcast %85 : vector<4x8x1xf32> to vector<4x8x8xf32>
      %88 = arith.mulf %87, %86 : vector<4x8x8xf32>
      %89 = arith.truncf %79 : vector<4x8x8xf32> to vector<4x8x8xbf16>
      "tpu.trace_start"() <{level = 10 : i32, message = "hqk,hkd->hqd"}> : () -> ()
      %cst_34 = arith.constant dense<0.000000e+00> : vector<4x8x8xf32>
      %90 = tpu.matmul %89, %45, %cst_34 {dimension_numbers = #tpu.dot_dimension_numbers<[2], [1], [1], [2], [0, 0, 0, 1, 1, 2], [0], [0]>} : vector<4x8x8xbf16>, vector<4x8x8xbf16>, vector<4x8x8xf32> -> vector<4x8x8xf32>
      "tpu.trace_stop"() : () -> ()
      %91 = arith.addf %88, %90 : vector<4x8x8xf32>
      %c0_35 = arith.constant 0 : index
      %c0_36 = arith.constant 0 : index
      %c0_37 = arith.constant 0 : index
      %92 = vector.load %arg10[%c0_35, %c0_36, %c0_37] : memref<4x8x8xf32, #tpu.memory_space<vmem>>, vector<4x8x8xf32>
      tpu.vector_store %arg10[%c0_35, %c0_36, %c0_37], %91 {strides = array<i32>} : memref<4x8x8xf32, #tpu.memory_space<vmem>>, vector<4x8x8xf32>,
      %c0_38 = arith.constant 0 : index
      %c0_39 = arith.constant 0 : index
      %93 = vector.load %arg8[%c0_38, %c0_39] : memref<4x8xf32, #tpu.memory_space<vmem>>, vector<4x8xf32>
      tpu.vector_store %arg8[%c0_38, %c0_39], %73 {strides = array<i32>} : memref<4x8xf32, #tpu.memory_space<vmem>>, vector<4x8xf32>,
    } else {
    }
    %c0_i32_4 = arith.constant 0 : i32
    %10 = arith.cmpi eq, %arg2, %c0_i32_4 : i32
    %11 = arith.extui %10 : i1 to i32
    %c0_i32_5 = arith.constant 0 : i32
    %12 = arith.cmpi ne, %11, %c0_i32_5 : i32
    scf.if %12 {
      %c0 = arith.constant 0 : index
      %c0_6 = arith.constant 0 : index
      %13 = vector.load %arg9[%c0, %c0_6] : memref<4x8xf32, #tpu.memory_space<vmem>>, vector<4x8xf32>
      %14 = tpu.reciprocal %13 {approx = true} : vector<4x8xf32> -> vector<4x8xf32>
      %c0_7 = arith.constant 0 : index
      %c0_8 = arith.constant 0 : index
      %c0_9 = arith.constant 0 : index
      %15 = vector.load %arg10[%c0_7, %c0_8, %c0_9] : memref<4x8x8xf32, #tpu.memory_space<vmem>>, vector<4x8x8xf32>
      %16 = vector.shape_cast %14 : vector<4x8xf32> to vector<4x8x1xf32>
      %17 = vector.broadcast %16 : vector<4x8x1xf32> to vector<4x8x8xf32>
      %18 = arith.mulf %15, %17 : vector<4x8x8xf32>
      %19 = vector.extract_strided_slice %18 {offsets = [0, 0, 0], sizes = [1, 8, 8], strides = [1, 1, 1]} : vector<4x8x8xf32> to vector<1x8x8xf32>
      %20 = vector.shape_cast %19 : vector<1x8x8xf32> to vector<8x8xf32>
      %21 = vector.extract_strided_slice %18 {offsets = [1, 0, 0], sizes = [1, 8, 8], strides = [1, 1, 1]} : vector<4x8x8xf32> to vector<1x8x8xf32>
      %22 = vector.shape_cast %21 : vector<1x8x8xf32> to vector<8x8xf32>
      %23 = vector.extract_strided_slice %18 {offsets = [2, 0, 0], sizes = [1, 8, 8], strides = [1, 1, 1]} : vector<4x8x8xf32> to vector<1x8x8xf32>
      %24 = vector.shape_cast %23 : vector<1x8x8xf32> to vector<8x8xf32>
      %25 = vector.extract_strided_slice %18 {offsets = [3, 0, 0], sizes = [1, 8, 8], strides = [1, 1, 1]} : vector<4x8x8xf32> to vector<1x8x8xf32>
      %26 = vector.shape_cast %25 : vector<1x8x8xf32> to vector<8x8xf32>
      %27 = tpu.concatenate %20, %22, %24, %26 in 1 : vector<8x8xf32>, vector<8x8xf32>, vector<8x8xf32>, vector<8x8xf32> -> vector<8x32xf32>
      %28 = arith.truncf %27 : vector<8x32xf32> to vector<8x32xbf16>
      %c0_10 = arith.constant 0 : index
      %c0_11 = arith.constant 0 : index
      %c0_12 = arith.constant 0 : index
      %29 = vector.load %arg7[%c0_10, %c0_11, %c0_12] : memref<1x8x32xbf16, #tpu.memory_space<vmem>>, vector<1x8x32xbf16>
      %30 = vector.shape_cast %29 : vector<1x8x32xbf16> to vector<8x32xbf16>
      %31 = vector.shape_cast %28 : vector<8x32xbf16> to vector<1x8x32xbf16>
      tpu.vector_store %arg7[%c0_10, %c0_11, %c0_12], %31 {strides = array<i32>} : memref<1x8x32xbf16, #tpu.memory_space<vmem>>, vector<1x8x32xbf16>,
    } else {
    }
    return
  }
  func.func @transform_0(%arg0: i32, %arg1: i32, %arg2: i32) -> (i32, i32, i32) {
    %c0_i32 = arith.constant 0 : i32
    %c0_i32_0 = arith.constant 0 : i32
    return %arg0, %c0_i32, %arg2 : i32, i32, i32
  }
  func.func @transform_1(%arg0: i32, %arg1: i32, %arg2: i32) -> (i32, i32, i32) {
    %c0_i32 = arith.constant 0 : i32
    %c0_i32_0 = arith.constant 0 : i32
    return %arg0, %arg1, %c0_i32 : i32, i32, i32
  }
  func.func @transform_2(%arg0: i32, %arg1: i32, %arg2: i32) -> (i32, i32, i32) {
    %c0_i32 = arith.constant 0 : i32
    %c0_i32_0 = arith.constant 0 : i32
    return %arg0, %arg2, %c0_i32 : i32, i32, i32
  }
  func.func @transform_3(%arg0: i32, %arg1: i32, %arg2: i32) -> (i32, i32, i32) {
    %c0_i32 = arith.constant 0 : i32
    %c0_i32_0 = arith.constant 0 : i32
    return %arg0, %arg2, %c0_i32 : i32, i32, i32
  }
  func.func @transform_4(%arg0: i32, %arg1: i32, %arg2: i32) -> (i32, i32, i32) {
    %c0_i32 = arith.constant 0 : i32
    %c0_i32_0 = arith.constant 0 : i32
    return %arg0, %arg1, %c0_i32 : i32, i32, i32
  }
}

</mosaic_0001>

<llo_original>
// kernel: transformer_forward.26
$region0: #{transformer_forward.26}
  #allocation0 [shape = 'u32[]', space=smem, size = 0x4, offset = 0x4, fixed_abs, tag = 'smem constant byte address 0x4 - core index']
  #allocation1 [shape = 'u32[144,128]{1,0:T(1,128)}', space=vmem, size = 0x12000, scoped, tag = 'internal scratch']
  %s0 = inlined_call_operand.hbm [shape: bf16[16,32], index: 0, kind: input, shape index: {}]
  %s1 = inlined_call_operand.hbm [shape: f32[1,32], index: 1, kind: input, shape index: {}]
  %s2 = inlined_call_operand.hbm [shape: f32[1,32], index: 2, kind: input, shape index: {}]
  %s3 = inlined_call_operand.hbm [shape: bf16[32,96], index: 3, kind: input, shape index: {}]
  %s4 = inlined_call_operand.hbm [shape: f32[1,96], index: 4, kind: input, shape index: {}]
  %s5 = inlined_call_operand.hbm [shape: bf16[16,32], index: 5, kind: output, shape index: {0}]
  %s6 = inlined_call_operand.hbm [shape: bf16[16,32], index: 6, kind: output, shape index: {1}]
  %s7 = inlined_call_operand.hbm [shape: bf16[16,32], index: 7, kind: output, shape index: {2}]
  %8 = xla_tuple %s5, %s6, %s7
  %s9 = sld [smem:[#allocation0]]
  $region66: #{transformer_forward.26} parent=0
    _
  %s11 = ssub.s32 1, %s9
  %s12 = scalar_select 0, %s11, %s9
  $region1: #{transformer_forward.26} parent=0
    #allocation2 [shape = 'u8[4096]{0}', space=vmem, size = 0x1000, scoped, tag = 'input window, operand 0, single buffered']
    #allocation3 [shape = 's32[1]{0}', space=sflag, size = 0x4, scoped, tag = 'scoped memory for transformer_forward.26']
    #allocation4 [shape = 's32[1]{0}', space=sflag, size = 0x4, scoped, tag = 'scoped memory for transformer_forward.26']
    #allocation5 [shape = 'u8[512]{0}', space=vmem, size = 0x400, scoped, tag = 'input window, operand 1, single buffered']
    #allocation6 [shape = 's32[1]{0}', space=sflag, size = 0x4, scoped, tag = 'scoped memory for transformer_forward.26']
    #allocation7 [shape = 'u8[512]{0}', space=vmem, size = 0x400, scoped, tag = 'input window, operand 2, single buffered']
    #allocation8 [shape = 'u8[8192]{0}', space=vmem, size = 0x2000, scoped, tag = 'input window, operand 3, single buffered']
    #allocation9 [shape = 's32[1]{0}', space=sflag, size = 0x4, scoped, tag = 'scoped memory for transformer_forward.26']
    #allocation10 [shape = 'u8[512]{0}', space=vmem, size = 0x400, scoped, tag = 'input window, operand 4, single buffered']
    #allocation11 [shape = 'u8[4096]{0}', space=vmem, size = 0x1000, scoped, tag = 'output window, operand 0, single buffered']
    #allocation12 [shape = 'u8[4096]{0}', space=vmem, size = 0x1000, scoped, tag = 'output window, operand 1, single buffered']
    #allocation13 [shape = 's32[1]{0}', space=sflag, size = 0x4, scoped, tag = 'scoped memory for transformer_forward.26']
    #allocation14 [shape = 'u8[4096]{0}', space=vmem, size = 0x1000, scoped, tag = 'output window, operand 2, single buffered']
    %13 = vsyncpa [#allocation3], 0
    %14 = vsyncpa [#allocation6], 0
    %15 = vsyncpa [#allocation9], 0
    %16 = vsyncpa [#allocation4], 0
    %17 = vsyncpa [#allocation13], 0
    // Predicated region
    $region2: #{transformer_forward.26} parent=1 // pred_check
      _
    $region3: #{transformer_forward.26} parent=1 // pred_check_branch
      %19 = sbr.rel (0) target = $region5
    $region4: #{transformer_forward.26} parent=1 // pred_region
      %s21 = ssub.s32 128, 128
      %22 = vsyncadd [#allocation3], %s21
      %s23 = sshll.u32 [#allocation2], 4
      %s24 = int_to_ptr.vmem [resolvable:$true] %s23
      %29 = dma.hbm_to_vmem [thread:$0]  %s0, 128, %s24, [#allocation3], 64, 64, 4
    $region5: #{transformer_forward.26} parent=1 // pred_fallthru
      _
    // Predicated region
    $region6: #{transformer_forward.26} parent=1 // pred_check
      _
    $region7: #{transformer_forward.26} parent=1 // pred_check_branch
      %31 = sbr.rel (0) target = $region9
    $region8: #{transformer_forward.26} parent=1 // pred_region
      %s33 = ssub.s32 16, 16
      %34 = vsyncadd [#allocation6], %s33
      %s36 = sshll.u32 [#allocation5], 4
      %s37 = int_to_ptr.vmem [resolvable:$true] %s36
      %39 = dma.hbm_to_vmem [thread:$0]  %s1, 16, %s37, [#allocation6]
    $region9: #{transformer_forward.26} parent=1 // pred_fallthru
      _
    // Predicated region
    $region10: #{transformer_forward.26} parent=1 // pred_check
      _
    $region11: #{transformer_forward.26} parent=1 // pred_check_branch
      %41 = sbr.rel (0) target = $region13
    $region12: #{transformer_forward.26} parent=1 // pred_region
      %s43 = ssub.s32 16, 16
      %44 = vsyncadd [#allocation6], %s43
      %s46 = sshll.u32 [#allocation7], 4
      %s47 = int_to_ptr.vmem [resolvable:$true] %s46
      %49 = dma.hbm_to_vmem [thread:$0]  %s2, 16, %s47, [#allocation6]
    $region13: #{transformer_forward.26} parent=1 // pred_fallthru
      _
    // Predicated region
    $region14: #{transformer_forward.26} parent=1 // pred_check
      _
    $region15: #{transformer_forward.26} parent=1 // pred_check_branch
      %51 = sbr.rel (0) target = $region17
    $region16: #{transformer_forward.26} parent=1 // pred_region
      %s53 = ssub.s32 256, 256
      %54 = vsyncadd [#allocation9], %s53
      %s55 = sshll.u32 [#allocation8], 4
      %s56 = int_to_ptr.vmem [resolvable:$true] %s55
      %61 = dma.hbm_to_vmem [thread:$0]  %s3, 256, %s56, [#allocation9], 64, 64, 4
    $region17: #{transformer_forward.26} parent=1 // pred_fallthru
      _
    // Predicated region
    $region18: #{transformer_forward.26} parent=1 // pred_check
      _
    $region19: #{transformer_forward.26} parent=1 // pred_check_branch
      %63 = sbr.rel (0) target = $region21
    $region20: #{transformer_forward.26} parent=1 // pred_region
      %s65 = ssub.s32 16, 16
      %66 = vsyncadd [#allocation9], %s65
      %s68 = sshll.u32 [#allocation10], 4
      %s69 = int_to_ptr.vmem [resolvable:$true] %s68
      %71 = dma.hbm_to_vmem [thread:$0]  %s4, 16, %s69, [#allocation9]
    $region21: #{transformer_forward.26} parent=1 // pred_fallthru
      _
    // Predicated region
    $region22: #{transformer_forward.26} parent=1 // pred_check
      _
    $region23: #{transformer_forward.26} parent=1 // pred_check_branch
      %73 = sbr.rel (0) target = $region25
    $region24: #{transformer_forward.26} parent=1 // pred_region
      %74 = dma.done [#allocation3], 128
    $region25: #{transformer_forward.26} parent=1 // pred_fallthru
      _
    // Predicated region
    $region26: #{transformer_forward.26} parent=1 // pred_check
      _
    $region27: #{transformer_forward.26} parent=1 // pred_check_branch
      %76 = sbr.rel (0) target = $region29
    $region28: #{transformer_forward.26} parent=1 // pred_region
      %77 = dma.done [#allocation6], 16
    $region29: #{transformer_forward.26} parent=1 // pred_fallthru
      _
    // Predicated region
    $region30: #{transformer_forward.26} parent=1 // pred_check
      _
    $region31: #{transformer_forward.26} parent=1 // pred_check_branch
      %79 = sbr.rel (0) target = $region33
    $region32: #{transformer_forward.26} parent=1 // pred_region
      %80 = dma.done [#allocation6], 16
    $region33: #{transformer_forward.26} parent=1 // pred_fallthru
      _
    // Predicated region
    $region34: #{transformer_forward.26} parent=1 // pred_check
      _
    $region35: #{transformer_forward.26} parent=1 // pred_check_branch
      %82 = sbr.rel (0) target = $region37
    $region36: #{transformer_forward.26} parent=1 // pred_region
      %83 = dma.done [#allocation9], 256
    $region37: #{transformer_forward.26} parent=1 // pred_fallthru
      _
    // Predicated region
    $region38: #{transformer_forward.26} parent=1 // pred_check
      _
    $region39: #{transformer_forward.26} parent=1 // pred_check_branch
      %85 = sbr.rel (0) target = $region41
    $region40: #{transformer_forward.26} parent=1 // pred_region
      %86 = dma.done [#allocation9], 16
    $region41: #{transformer_forward.26} parent=1 // pred_fallthru
      _
    %v88 = vld [vmem:[#allocation2] sm:$0xf]
    %v89 = vld [vmem:[#allocation2 + $0x4] sm:$0xf]
    %v90 = vunpack.c.l.bf16 %v88
    %v91 = vunpack.c.l.bf16 %v89
    %vm92 = vcmask 261120
    %v93 = vsel %vm92, %v90, 0.0
    %94 = vadd.xlane.f32.xlu0 %v93
    %v95 = vpop.xlane.xlu0 %94
    %v96 = vsel %vm92, %v91, 0.0
    %97 = vadd.xlane.f32.xlu0 %v96
    %v98 = vpop.xlane.xlu0 %97
    %v99 = vrcp.pop 32.0
    %v100 = vmul.f32 %v95, %v99
    %v101 = vmul.f32 %v98, %v99
    %v102 = vsub.f32 %v90, %v100
    %v103 = vsub.f32 %v91, %v101
    %v104 = vmul.f32 %v102, %v102
    %v105 = vmul.f32 %v103, %v103
    %v106 = vsel %vm92, %v104, 0.0
    %107 = vadd.xlane.f32.xlu0 %v106
    %v108 = vpop.xlane.xlu0 %107
    %v109 = vsel %vm92, %v105, 0.0
    %110 = vadd.xlane.f32.xlu0 %v109
    %v111 = vpop.xlane.xlu0 %110
    %v112 = vmul.f32 %v108, %v99
    %v113 = vmul.f32 %v111, %v99
    %v114 = vadd.f32 %v112, 1e-05
    %v115 = vadd.f32 %v113, 1e-05
    %v116 = vrsqrt.pop %v114
    %v117 = vrsqrt.pop %v115
    %v118 = vmul.f32 %v102, %v116
    %v119 = vmul.f32 %v103, %v117
    %v120 = vld [vmem:[#allocation5] sm:$0x1]
    %v122 = vlaneseq
    %v123 = vshrl.u32 %v122, 7
    %v124 = vsub.s32 0, %v123
    %v125 = vrot.slane %v120, %v124
    %v127 = vmul.f32 %v118, %v125
    %v128 = vmul.f32 %v119, %v125
    %v129 = vld [vmem:[#allocation7] sm:$0x1]
    %v131 = vlaneseq
    %v132 = vshrl.u32 %v131, 7
    %v133 = vsub.s32 0, %v132
    %v134 = vrot.slane %v129, %v133
    %v136 = vadd.f32 %v127, %v134
    %v137 = vadd.f32 %v128, %v134
    %v138 = vpack.c.bf16 %v137, %v136
    %v139 = vld [vmem:[#allocation8] sm:$0xf]
    %v140 = vld [vmem:[#allocation8 + $0x4] sm:$0xf]
    %v141 = vld [vmem:[#allocation8 + $0x8] sm:$0xf]
    %v142 = vld [vmem:[#allocation8 + $0xc] sm:$0xf]
    %v143 = vld [vmem:[#allocation10] sm:$0x1]
    %v145 = vlaneseq
    %v146 = vshrl.u32 %v145, 7
    %v147 = vsub.s32 0, %v146
    %v148 = vrot.slane %v143, %v147
    %v154 = vunpack.c.l.b16 %v139
    %v155 = vunpack.c.l.b16 %v140
    %v156 = vunpack.c.l.b16 %v141
    %v157 = vunpack.c.l.b16 %v142
    %v158 = vpack.c.b16 %v155, %v154
    %v159 = vpack.c.b16 %v157, %v156
    %v163 = vsel %vm92, %v138, 0
    %165 = vmatprep.subr.bf16.mxu0 0
    %166 = vmatpush1.bf16.msra.mxu0 %v158
    %167 = vmatprep.subr.bf16.mxu0 0
    %168 = vmatpush1.bf16.msra.mxu0 %v159
    %169 = vmatprep.subr.bf16.mxu0 0
    %170 = vmatpush1.bf16.msra.mxu0 0
    %171 = vmatprep.subr.bf16.mxu0 0
    %172 = vmatpush1.bf16.msra.mxu0 0
    %173 = vmatprep.subr.bf16.mxu0 0
    %174 = vmatpush1.bf16.msra.mxu0 0
    %175 = vmatprep.subr.bf16.mxu0 0
    %176 = vmatpush1.bf16.msra.mxu0 0
    %177 = vmatprep.subr.bf16.mxu0 0
    %178 = vmatpush1.bf16.msra.mxu0 0
    %179 = vmatprep.subr.bf16.mxu0 0
    %180 = vmatpush1.bf16.msra.mxu0 0
    %181 = vmatprep.subr.bf16.mxu0 0
    %182 = vmatpush1.bf16.msra.mxu0 0
    %183 = vmatprep.subr.bf16.mxu0 0
    %184 = vmatpush1.bf16.msra.mxu0 0
    %185 = vmatprep.subr.bf16.mxu0 0
    %186 = vmatpush1.bf16.msra.mxu0 0
    %187 = vmatprep.subr.bf16.mxu0 0
    %188 = vmatpush1.bf16.msra.mxu0 0
    %189 = vmatprep.subr.bf16.mxu0 0
    %190 = vmatpush1.bf16.msra.mxu0 0
    %191 = vmatprep.subr.bf16.mxu0 0
    %192 = vmatpush1.bf16.msra.mxu0 0
    %193 = vmatprep.subr.bf16.mxu0 0
    %194 = vmatpush1.bf16.msra.mxu0 0
    %195 = vmatprep.subr.bf16.mxu0 0
    %196 = vmatpush1.bf16.msra.mxu0 0
    %197 = vmatprep.mubr.bf16.mxu0 0
    %198 = vmatmul.mubr.bf16.gmra.mrb[0].mxu0 %v163
    %v199 = vpop.f32.mrb[0].mxu0
    %v200 = vadd.f32 %v148, %v199
    %v201 = vpop.f32.mrb[0].mxu0
    %v202 = vpop.f32.mrb[0].mxu0
    %v203 = vadd.f32 %v148, %v202
    %v204 = vpop.f32.mrb[0].mxu0
    %205 = vdwg.mxu0
    %v206 = vpack.c.bf16 %v203, %v200
    %v208 = vunpack.c.l.b16 %v206
    %v209 = vunpack.c.h.b16 %v206
    %v210 = vpack.c.b16 %v208, %v208
    %v211 = vpack.c.b16 %v209, %v209
    %vm214 = vcmask 257024
    %215 = vst.msk [vmem:[#allocation11] sm:$0xf] %vm214, %v210
    %216 = vst.msk [vmem:[#allocation11 + $0x4] sm:$0xf] %vm214, %v211
    %217 = vrot.lane.b32.xlu0 %v210, 96
    %v218 = vpop.permute.xlu0 %217
    %219 = vrot.lane.b32.xlu0 %v211, 96
    %v220 = vpop.permute.xlu0 %219
    %223 = vst.msk [vmem:[#allocation12] sm:$0xf] %vm214, %v218
    %224 = vst.msk [vmem:[#allocation12 + $0x4] sm:$0xf] %vm214, %v220
    %225 = vrot.lane.b32.xlu0 %v210, 64
    %v226 = vpop.permute.xlu0 %225
    %227 = vrot.lane.b32.xlu0 %v211, 64
    %v228 = vpop.permute.xlu0 %227
    %231 = vst.msk [vmem:[#allocation14] sm:$0xf] %vm214, %v226
    %232 = vst.msk [vmem:[#allocation14 + $0x4] sm:$0xf] %vm214, %v228
    // Predicated region
    $region42: #{transformer_forward.26} parent=1 // pred_check
      _
    $region43: #{transformer_forward.26} parent=1 // pred_check_branch
      %234 = sbr.rel (0) target = $region45
    $region44: #{transformer_forward.26} parent=1 // pred_region
      %s236 = ssub.s32 128, 128
      %237 = vsyncadd [#allocation4], %s236
      %s238 = sshll.u32 [#allocation11], 4
      %s239 = int_to_ptr.vmem [resolvable:$true] %s238
      %244 = dma.vmem_to_hbm [thread:$0]  %s239, 128, %s5, [#allocation4], 64, 64, 4
    $region45: #{transformer_forward.26} parent=1 // pred_fallthru
      _
    // Predicated region
    $region46: #{transformer_forward.26} parent=1 // pred_check
      _
    $region47: #{transformer_forward.26} parent=1 // pred_check_branch
      %246 = sbr.rel (0) target = $region49
    $region48: #{transformer_forward.26} parent=1 // pred_region
      %s248 = ssub.s32 128, 128
      %249 = vsyncadd [#allocation13], %s248
      %s250 = sshll.u32 [#allocation12], 4
      %s251 = int_to_ptr.vmem [resolvable:$true] %s250
      %256 = dma.vmem_to_hbm [thread:$0]  %s251, 128, %s6, [#allocation13], 64, 64, 4
    $region49: #{transformer_forward.26} parent=1 // pred_fallthru
      _
    // Predicated region
    $region50: #{transformer_forward.26} parent=1 // pred_check
      _
    $region51: #{transformer_forward.26} parent=1 // pred_check_branch
      %258 = sbr.rel (0) target = $region53
    $region52: #{transformer_forward.26} parent=1 // pred_region
      %s260 = ssub.s32 128, 128
      %261 = vsyncadd [#allocation13], %s260
      %s262 = sshll.u32 [#allocation14], 4
      %s263 = int_to_ptr.vmem [resolvable:$true] %s262
      %268 = dma.vmem_to_hbm [thread:$0]  %s263, 128, %s7, [#allocation13], 64, 64, 4
    $region53: #{transformer_forward.26} parent=1 // pred_fallthru
      _
    // Predicated region
    $region54: #{transformer_forward.26} parent=1 // pred_check
      _
    $region55: #{transformer_forward.26} parent=1 // pred_check_branch
      %270 = sbr.rel (0) target = $region57
    $region56: #{transformer_forward.26} parent=1 // pred_region
      %271 = dma.done [#allocation4], 128
    $region57: #{transformer_forward.26} parent=1 // pred_fallthru
      _
    // Predicated region
    $region58: #{transformer_forward.26} parent=1 // pred_check
      _
    $region59: #{transformer_forward.26} parent=1 // pred_check_branch
      %273 = sbr.rel (0) target = $region61
    $region60: #{transformer_forward.26} parent=1 // pred_region
      %274 = dma.done [#allocation13], 128
    $region61: #{transformer_forward.26} parent=1 // pred_fallthru
      _
    // Predicated region
    $region62: #{transformer_forward.26} parent=1 // pred_check
      _
    $region63: #{transformer_forward.26} parent=1 // pred_check_branch
      %276 = sbr.rel (0) target = $region65
    $region64: #{transformer_forward.26} parent=1 // pred_region
      %277 = dma.done [#allocation13], 128
    $region65: #{transformer_forward.26} parent=1 // pred_fallthru
      _
    %278 = vsyncpa [#allocation3], 1
    %279 = vsyncpa [#allocation6], 1
    %280 = vsyncpa [#allocation9], 1
    %281 = vsyncpa [#allocation4], 1
    %282 = vsyncpa [#allocation13], 1

// kernel: transformer_forward.28
$region0: #{transformer_forward.28}
  #allocation0 [shape = 'u32[]', space=smem, size = 0x4, offset = 0x4, fixed_abs, tag = 'smem constant byte address 0x4 - core index']
  #allocation1 [shape = 'u32[144,128]{1,0:T(1,128)}', space=vmem, size = 0x12000, scoped, tag = 'internal scratch']
  %s0 = inlined_call_operand.hbm [shape: bf16[16,32], index: 0, kind: input, shape index: {}]
  %s1 = inlined_call_operand.hbm [shape: bf16[32,32], index: 1, kind: input, shape index: {}]
  %s2 = inlined_call_operand.hbm [shape: f32[1,32], index: 2, kind: input, shape index: {}]
  %s3 = inlined_call_operand.hbm [shape: bf16[16,32], index: 3, kind: input, shape index: {}]
  %s4 = inlined_call_operand.hbm [shape: bf16[16,32], index: 4, kind: output, shape index: {}]
  %s5 = sld [smem:[#allocation0]]
  $region42: #{transformer_forward.28} parent=0
    _
  %s7 = ssub.s32 1, %s5
  %s8 = scalar_select 0, %s7, %s5
  $region1: #{transformer_forward.28} parent=0
    #allocation2 [shape = 'u8[4096]{0}', space=vmem, size = 0x1000, scoped, tag = 'input window, operand 0, single buffered']
    #allocation3 [shape = 's32[1]{0}', space=sflag, size = 0x4, scoped, tag = 'scoped memory for transformer_forward.28']
    #allocation4 [shape = 's32[1]{0}', space=sflag, size = 0x4, scoped, tag = 'scoped memory for transformer_forward.28']
    #allocation5 [shape = 'u8[8192]{0}', space=vmem, size = 0x2000, scoped, tag = 'input window, operand 1, single buffered']
    #allocation6 [shape = 's32[1]{0}', space=sflag, size = 0x4, scoped, tag = 'scoped memory for transformer_forward.28']
    #allocation7 [shape = 'u8[512]{0}', space=vmem, size = 0x400, scoped, tag = 'input window, operand 2, single buffered']
    #allocation8 [shape = 'u8[4096]{0}', space=vmem, size = 0x1000, scoped, tag = 'input window, operand 3, single buffered']
    #allocation9 [shape = 's32[1]{0}', space=sflag, size = 0x4, scoped, tag = 'scoped memory for transformer_forward.28']
    #allocation10 [shape = 'u8[4096]{0}', space=vmem, size = 0x1000, scoped, tag = 'output window, operand 0, single buffered']
    %9 = vsyncpa [#allocation3], 0
    %10 = vsyncpa [#allocation6], 0
    %11 = vsyncpa [#allocation9], 0
    %12 = vsyncpa [#allocation4], 0
    // Predicated region
    $region2: #{transformer_forward.28} parent=1 // pred_check
      _
    $region3: #{transformer_forward.28} parent=1 // pred_check_branch
      %14 = sbr.rel (0) target = $region5
    $region4: #{transformer_forward.28} parent=1 // pred_region
      %s16 = ssub.s32 128, 128
      %17 = vsyncadd [#allocation3], %s16
      %s18 = sshll.u32 [#allocation2], 4
      %s19 = int_to_ptr.vmem [resolvable:$true] %s18
      %24 = dma.hbm_to_vmem [thread:$0]  %s0, 128, %s19, [#allocation3], 64, 64, 4
    $region5: #{transformer_forward.28} parent=1 // pred_fallthru
      _
    // Predicated region
    $region6: #{transformer_forward.28} parent=1 // pred_check
      _
    $region7: #{transformer_forward.28} parent=1 // pred_check_branch
      %26 = sbr.rel (0) target = $region9
    $region8: #{transformer_forward.28} parent=1 // pred_region
      %s28 = ssub.s32 256, 256
      %29 = vsyncadd [#allocation6], %s28
      %s30 = sshll.u32 [#allocation5], 4
      %s31 = int_to_ptr.vmem [resolvable:$true] %s30
      %36 = dma.hbm_to_vmem [thread:$0]  %s1, 256, %s31, [#allocation6], 64, 64, 4
    $region9: #{transformer_forward.28} parent=1 // pred_fallthru
      _
    // Predicated region
    $region10: #{transformer_forward.28} parent=1 // pred_check
      _
    $region11: #{transformer_forward.28} parent=1 // pred_check_branch
      %38 = sbr.rel (0) target = $region13
    $region12: #{transformer_forward.28} parent=1 // pred_region
      %s40 = ssub.s32 16, 16
      %41 = vsyncadd [#allocation6], %s40
      %s43 = sshll.u32 [#allocation7], 4
      %s44 = int_to_ptr.vmem [resolvable:$true] %s43
      %46 = dma.hbm_to_vmem [thread:$0]  %s2, 16, %s44, [#allocation6]
    $region13: #{transformer_forward.28} parent=1 // pred_fallthru
      _
    // Predicated region
    $region14: #{transformer_forward.28} parent=1 // pred_check
      _
    $region15: #{transformer_forward.28} parent=1 // pred_check_branch
      %48 = sbr.rel (0) target = $region17
    $region16: #{transformer_forward.28} parent=1 // pred_region
      %s50 = ssub.s32 128, 128
      %51 = vsyncadd [#allocation9], %s50
      %s52 = sshll.u32 [#allocation8], 4
      %s53 = int_to_ptr.vmem [resolvable:$true] %s52
      %58 = dma.hbm_to_vmem [thread:$0]  %s3, 128, %s53, [#allocation9], 64, 64, 4
    $region17: #{transformer_forward.28} parent=1 // pred_fallthru
      _
    // Predicated region
    $region18: #{transformer_forward.28} parent=1 // pred_check
      _
    $region19: #{transformer_forward.28} parent=1 // pred_check_branch
      %60 = sbr.rel (0) target = $region21
    $region20: #{transformer_forward.28} parent=1 // pred_region
      %61 = dma.done [#allocation3], 128
    $region21: #{transformer_forward.28} parent=1 // pred_fallthru
      _
    // Predicated region
    $region22: #{transformer_forward.28} parent=1 // pred_check
      _
    $region23: #{transformer_forward.28} parent=1 // pred_check_branch
      %63 = sbr.rel (0) target = $region25
    $region24: #{transformer_forward.28} parent=1 // pred_region
      %64 = dma.done [#allocation6], 256
    $region25: #{transformer_forward.28} parent=1 // pred_fallthru
      _
    // Predicated region
    $region26: #{transformer_forward.28} parent=1 // pred_check
      _
    $region27: #{transformer_forward.28} parent=1 // pred_check_branch
      %66 = sbr.rel (0) target = $region29
    $region28: #{transformer_forward.28} parent=1 // pred_region
      %67 = dma.done [#allocation6], 16
    $region29: #{transformer_forward.28} parent=1 // pred_fallthru
      _
    // Predicated region
    $region30: #{transformer_forward.28} parent=1 // pred_check
      _
    $region31: #{transformer_forward.28} parent=1 // pred_check_branch
      %69 = sbr.rel (0) target = $region33
    $region32: #{transformer_forward.28} parent=1 // pred_region
      %70 = dma.done [#allocation9], 128
    $region33: #{transformer_forward.28} parent=1 // pred_fallthru
      _
    %v72 = vld [vmem:[#allocation2] sm:$0xf]
    %v73 = vld [vmem:[#allocation2 + $0x4] sm:$0xf]
    %v74 = vld [vmem:[#allocation5] sm:$0xf]
    %v75 = vld [vmem:[#allocation5 + $0x4] sm:$0xf]
    %v76 = vld [vmem:[#allocation5 + $0x8] sm:$0xf]
    %v77 = vld [vmem:[#allocation5 + $0xc] sm:$0xf]
    %v80 = vunpack.c.l.b16 %v72
    %v81 = vunpack.c.l.b16 %v73
    %v82 = vpack.c.b16 %v81, %v80
    %v87 = vunpack.c.l.b16 %v74
    %v88 = vunpack.c.l.b16 %v75
    %v89 = vunpack.c.l.b16 %v76
    %v90 = vunpack.c.l.b16 %v77
    %v91 = vpack.c.b16 %v88, %v87
    %v92 = vpack.c.b16 %v90, %v89
    %vm95 = vcmask 261120
    %v97 = vsel %vm95, %v82, 0
    %99 = vmatprep.subr.bf16.mxu0 0
    %100 = vmatpush1.bf16.msra.mxu0 %v91
    %101 = vmatprep.subr.bf16.mxu0 0
    %102 = vmatpush1.bf16.msra.mxu0 %v92
    %103 = vmatprep.subr.bf16.mxu0 0
    %104 = vmatpush1.bf16.msra.mxu0 0
    %105 = vmatprep.subr.bf16.mxu0 0
    %106 = vmatpush1.bf16.msra.mxu0 0
    %107 = vmatprep.subr.bf16.mxu0 0
    %108 = vmatpush1.bf16.msra.mxu0 0
    %109 = vmatprep.subr.bf16.mxu0 0
    %110 = vmatpush1.bf16.msra.mxu0 0
    %111 = vmatprep.subr.bf16.mxu0 0
    %112 = vmatpush1.bf16.msra.mxu0 0
    %113 = vmatprep.subr.bf16.mxu0 0
    %114 = vmatpush1.bf16.msra.mxu0 0
    %115 = vmatprep.subr.bf16.mxu0 0
    %116 = vmatpush1.bf16.msra.mxu0 0
    %117 = vmatprep.subr.bf16.mxu0 0
    %118 = vmatpush1.bf16.msra.mxu0 0
    %119 = vmatprep.subr.bf16.mxu0 0
    %120 = vmatpush1.bf16.msra.mxu0 0
    %121 = vmatprep.subr.bf16.mxu0 0
    %122 = vmatpush1.bf16.msra.mxu0 0
    %123 = vmatprep.subr.bf16.mxu0 0
    %124 = vmatpush1.bf16.msra.mxu0 0
    %125 = vmatprep.subr.bf16.mxu0 0
    %126 = vmatpush1.bf16.msra.mxu0 0
    %127 = vmatprep.subr.bf16.mxu0 0
    %128 = vmatpush1.bf16.msra.mxu0 0
    %129 = vmatprep.subr.bf16.mxu0 0
    %130 = vmatpush1.bf16.msra.mxu0 0
    %131 = vmatprep.mubr.bf16.mxu0 0
    %132 = vmatmul.mubr.bf16.gmra.mrb[0].mxu0 %v97
    %v133 = vpop.f32.mrb[0].mxu0
    %v134 = vadd.f32 0.0, %v133
    %v135 = vpop.f32.mrb[0].mxu0
    %v136 = vpop.f32.mrb[0].mxu0
    %v137 = vadd.f32 0.0, %v136
    %v138 = vpop.f32.mrb[0].mxu0
    %139 = vdwg.mxu0
    %v140 = vld [vmem:[#allocation8] sm:$0xf]
    %v141 = vld [vmem:[#allocation8 + $0x4] sm:$0xf]
    %v142 = vunpack.c.l.bf16 %v140
    %v143 = vunpack.c.l.bf16 %v141
    %v144 = vadd.f32 %v142, %v134
    %v145 = vadd.f32 %v143, %v137
    %v146 = vld [vmem:[#allocation7] sm:$0x1]
    %v148 = vlaneseq
    %v149 = vshrl.u32 %v148, 7
    %v150 = vsub.s32 0, %v149
    %v151 = vrot.slane %v146, %v150
    %v153 = vadd.f32 %v144, %v151
    %v154 = vadd.f32 %v145, %v151
    %v155 = vpack.c.bf16 %v154, %v153
    %v157 = vunpack.c.l.b16 %v155
    %v158 = vunpack.c.h.b16 %v155
    %v159 = vpack.c.b16 %v157, %v157
    %v160 = vpack.c.b16 %v158, %v158
    %vm163 = vcmask 257024
    %164 = vst.msk [vmem:[#allocation10] sm:$0xf] %vm163, %v159
    %165 = vst.msk [vmem:[#allocation10 + $0x4] sm:$0xf] %vm163, %v160
    // Predicated region
    $region34: #{transformer_forward.28} parent=1 // pred_check
      _
    $region35: #{transformer_forward.28} parent=1 // pred_check_branch
      %167 = sbr.rel (0) target = $region37
    $region36: #{transformer_forward.28} parent=1 // pred_region
      %s169 = ssub.s32 128, 128
      %170 = vsyncadd [#allocation4], %s169
      %s171 = sshll.u32 [#allocation10], 4
      %s172 = int_to_ptr.vmem [resolvable:$true] %s171
      %177 = dma.vmem_to_hbm [thread:$0]  %s172, 128, %s4, [#allocation4], 64, 64, 4
    $region37: #{transformer_forward.28} parent=1 // pred_fallthru
      _
    // Predicated region
    $region38: #{transformer_forward.28} parent=1 // pred_check
      _
    $region39: #{transformer_forward.28} parent=1 // pred_check_branch
      %179 = sbr.rel (0) target = $region41
    $region40: #{transformer_forward.28} parent=1 // pred_region
      %180 = dma.done [#allocation4], 128
    $region41: #{transformer_forward.28} parent=1 // pred_fallthru
      _
    %181 = vsyncpa [#allocation3], 1
    %182 = vsyncpa [#allocation6], 1
    %183 = vsyncpa [#allocation9], 1
    %184 = vsyncpa [#allocation4], 1

// kernel: transformer_forward.27
$region0: #{transformer_forward.27}
  #allocation0 [shape = 'u32[]', space=smem, size = 0x4, offset = 0x4, fixed_abs, tag = 'smem constant byte address 0x4 - core index']
  #allocation1 [shape = 'u32[144,128]{1,0:T(1,128)}', space=vmem, size = 0x12000, scoped, tag = 'internal scratch']
  #allocation2 [shape = 'f32[4,8]{1,0:T(4,128)}', space=vmem, size = 0x800, scoped, tag = 'scratch operand']
  #allocation3 [shape = 'f32[4,8]{1,0:T(4,128)}', space=vmem, size = 0x800, scoped, tag = 'scratch operand']
  #allocation4 [shape = 'f32[4,8,8]{2,1,0:T(8,128)}', space=vmem, size = 0x4000, scoped, tag = 'scratch operand']
  %s0 = inlined_call_operand.hbm [shape: f32[2,1,8], index: 0, kind: input, shape index: {}]
  %s1 = inlined_call_operand.hbm [shape: bf16[2,8,32], index: 1, kind: input, shape index: {}]
  %s2 = inlined_call_operand.hbm [shape: bf16[2,8,32], index: 2, kind: input, shape index: {}]
  %s3 = inlined_call_operand.hbm [shape: bf16[2,8,32], index: 3, kind: input, shape index: {}]
  %s4 = inlined_call_operand.hbm [shape: bf16[2,8,32], index: 4, kind: output, shape index: {}]
  %s5 = sld [smem:[#allocation0]]
  $region73: #{transformer_forward.27} parent=0
    _
  %s7 = ssub.s32 1, %s5
  %s8 = scalar_select 0, %s7, %s5
  $region1: #{transformer_forward.27} parent=0
    #allocation5 [shape = 'u8[1024]{0}', space=vmem, size = 0x400, scoped, tag = 'input window, operand 0']
    #allocation6 [shape = 's32[2]{0}', space=sflag, size = 0x8, scoped, tag = 'scoped memory for transformer_forward.27']
    #allocation7 [shape = 's32[2]{0}', space=sflag, size = 0x8, scoped, tag = 'scoped memory for transformer_forward.27']
    #allocation8 [shape = 'u8[4096]{0}', space=vmem, size = 0x1000, scoped, tag = 'input window, operand 1']
    #allocation9 [shape = 's32[2]{0}', space=sflag, size = 0x8, scoped, tag = 'scoped memory for transformer_forward.27']
    #allocation10 [shape = 'u8[4096]{0}', space=vmem, size = 0x1000, scoped, tag = 'input window, operand 2']
    #allocation11 [shape = 'u8[4096]{0}', space=vmem, size = 0x1000, scoped, tag = 'input window, operand 3']
    #allocation12 [shape = 's32[2]{0}', space=sflag, size = 0x8, scoped, tag = 'scoped memory for transformer_forward.27']
    #allocation13 [shape = 'u8[4096]{0}', space=vmem, size = 0x1000, scoped, tag = 'output window, operand 0']
    %9 = vsyncpa [#allocation6], 0
    %s10 = scalar_lea.sflag [#allocation6], 1
    %11 = vsyncpa %s10, 0
    %12 = vsyncpa [#allocation9], 0
    %s13 = scalar_lea.sflag [#allocation9], 1
    %14 = vsyncpa %s13, 0
    %15 = vsyncpa [#allocation12], 0
    %s16 = scalar_lea.sflag [#allocation12], 1
    %17 = vsyncpa %s16, 0
    %18 = vsyncpa [#allocation7], 0
    %s19 = scalar_lea.sflag [#allocation7], 1
    %20 = vsyncpa %s19, 0
    loop: start=0, step=1, limit=4
    $region2: #{transformer_forward.27} parent=1 // loop_pre_header
      _
    $region3: #{transformer_forward.27} parent=1 // loop_header
      %s22 = sphi 0, %s26
      %p23 = scmp.ge.s32.totalorder %s22, 4
      %s29 = sphi 0, %s48
      %s30 = sphi 0, %s44
      %s31 = sphi 0, %s40
      %s32 = sphi 0, %s29
      %s33 = sphi 0, %s30
      %s34 = sphi 0, %s31
      %s35 = sphi 0, %s32
      %s36 = sphi 0, %s33
      %s37 = sphi 0, %s34
      %s53 = sphi 0, %s55
      %s56 = sphi 0, %s53
      %s57 = sphi 0, %s56
      %s73 = sphi 0, %s57
      %s81 = sphi 0, %s83
      %s84 = sphi 0, %s81
      %s85 = sphi 0, %s84
      %s101 = sphi 0, %s85
      %s109 = sphi 0, %s111
      %s112 = sphi 0, %s109
      %s113 = sphi 0, %s112
      %s129 = sphi 0, %s113
      %s137 = sphi 0, %s139
      %s140 = sphi 0, %s137
      %s141 = sphi 0, %s140
      %s157 = sphi 0, %s141
      %s165 = sphi 0, %s167
      %s168 = sphi 0, %s165
      %s169 = sphi 0, %s168
      %s185 = sphi 0, %s169
    $region4: #{transformer_forward.27} parent=1 // loop_header_branch
      %25 = sbr.rel (%p23) target = $region8
    $region5: #{transformer_forward.27} parent=1 // loop_body
      %s27 = ssub.s32 %s22, 1
      %s28 = ssub.s32 %s22, 2
      %s38 = sadd.s32 1, %s31
      %p39 = scmp.ge.s32.totalorder %s38, 1
      %s40 = scalar_select %p39, 0, %s38
      %s41 = sadd.s32 1, %s30
      %s42 = scalar_select %p39, %s41, %s30
      %p43 = scmp.ge.s32.totalorder %s42, 1
      %s44 = scalar_select %p43, 0, %s42
      %s45 = sadd.s32 1, %s29
      %s46 = scalar_select %p43, %s45, %s29
      %p47 = scmp.ge.s32.totalorder %s46, 2
      %s48 = scalar_select %p47, 0, %s46
      %s49 = ssub.s32 %s29, %s48
      %s50 = ssub.s32 %s31, %s40
      %s51 = sor.u32 %s49, %s50
      %p52 = scmp.eq.s32.totalorder %s51, 0
      %s54 = sadd.s32 %s53, 1
      %s55 = scalar_select %p52, %s53, %s54
      %p58 = pneg %p52
      %p59 = scmp.eq.s32.totalorder %s22, 1
      %p60 = por %p58, %p59
      %p61 = scmp.ne.s32.totalorder %s53, %s56
      %p62 = scmp.eq.s32.totalorder %s22, 0
      %p63 = por %p61, %p62
      %p64 = scmp.ne.s32.totalorder %s53, %s56
      %p65 = scmp.eq.s32.totalorder %s27, 1
      %p66 = por %p64, %p65
      %p67 = scmp.ne.s32.totalorder %s56, %s57
      %p68 = scmp.eq.s32.totalorder %s27, 0
      %p69 = por %p67, %p68
      %p70 = scmp.ne.s32.totalorder %s56, %s57
      %p71 = scmp.eq.s32.totalorder %s28, 1
      %p72 = por %p70, %p71
      %p74 = scmp.ne.s32.totalorder %s57, %s73
      %p75 = scmp.eq.s32.totalorder %s28, 0
      %p76 = por %p74, %p75
      %s77 = ssub.s32 %s29, %s48
      %s78 = ssub.s32 %s30, %s44
      %s79 = sor.u32 %s77, %s78
      %p80 = scmp.eq.s32.totalorder %s79, 0
      %s82 = sadd.s32 %s81, 1
      %s83 = scalar_select %p80, %s81, %s82
      %p86 = pneg %p80
      %p87 = scmp.eq.s32.totalorder %s22, 1
      %p88 = por %p86, %p87
      %p89 = scmp.ne.s32.totalorder %s81, %s84
      %p90 = scmp.eq.s32.totalorder %s22, 0
      %p91 = por %p89, %p90
      %p92 = scmp.ne.s32.totalorder %s81, %s84
      %p93 = scmp.eq.s32.totalorder %s27, 1
      %p94 = por %p92, %p93
      %p95 = scmp.ne.s32.totalorder %s84, %s85
      %p96 = scmp.eq.s32.totalorder %s27, 0
      %p97 = por %p95, %p96
      %p98 = scmp.ne.s32.totalorder %s84, %s85
      %p99 = scmp.eq.s32.totalorder %s28, 1
      %p100 = por %p98, %p99
      %p102 = scmp.ne.s32.totalorder %s85, %s101
      %p103 = scmp.eq.s32.totalorder %s28, 0
      %p104 = por %p102, %p103
      %s105 = ssub.s32 %s29, %s48
      %s106 = ssub.s32 %s31, %s40
      %s107 = sor.u32 %s105, %s106
      %p108 = scmp.eq.s32.totalorder %s107, 0
      %s110 = sadd.s32 %s109, 1
      %s111 = scalar_select %p108, %s109, %s110
      %p114 = pneg %p108
      %p115 = scmp.eq.s32.totalorder %s22, 1
      %p116 = por %p114, %p115
      %p117 = scmp.ne.s32.totalorder %s109, %s112
      %p118 = scmp.eq.s32.totalorder %s22, 0
      %p119 = por %p117, %p118
      %p120 = scmp.ne.s32.totalorder %s109, %s112
      %p121 = scmp.eq.s32.totalorder %s27, 1
      %p122 = por %p120, %p121
      %p123 = scmp.ne.s32.totalorder %s112, %s113
      %p124 = scmp.eq.s32.totalorder %s27, 0
      %p125 = por %p123, %p124
      %p126 = scmp.ne.s32.totalorder %s112, %s113
      %p127 = scmp.eq.s32.totalorder %s28, 1
      %p128 = por %p126, %p127
      %p130 = scmp.ne.s32.totalorder %s113, %s129
      %p131 = scmp.eq.s32.totalorder %s28, 0
      %p132 = por %p130, %p131
      %s133 = ssub.s32 %s29, %s48
      %s134 = ssub.s32 %s31, %s40
      %s135 = sor.u32 %s133, %s134
      %p136 = scmp.eq.s32.totalorder %s135, 0
      %s138 = sadd.s32 %s137, 1
      %s139 = scalar_select %p136, %s137, %s138
      %p142 = pneg %p136
      %p143 = scmp.eq.s32.totalorder %s22, 1
      %p144 = por %p142, %p143
      %p145 = scmp.ne.s32.totalorder %s137, %s140
      %p146 = scmp.eq.s32.totalorder %s22, 0
      %p147 = por %p145, %p146
      %p148 = scmp.ne.s32.totalorder %s137, %s140
      %p149 = scmp.eq.s32.totalorder %s27, 1
      %p150 = por %p148, %p149
      %p151 = scmp.ne.s32.totalorder %s140, %s141
      %p152 = scmp.eq.s32.totalorder %s27, 0
      %p153 = por %p151, %p152
      %p154 = scmp.ne.s32.totalorder %s140, %s141
      %p155 = scmp.eq.s32.totalorder %s28, 1
      %p156 = por %p154, %p155
      %p158 = scmp.ne.s32.totalorder %s141, %s157
      %p159 = scmp.eq.s32.totalorder %s28, 0
      %p160 = por %p158, %p159
      %s161 = ssub.s32 %s29, %s48
      %s162 = ssub.s32 %s30, %s44
      %s163 = sor.u32 %s161, %s162
      %p164 = scmp.eq.s32.totalorder %s163, 0
      %s166 = sadd.s32 %s165, 1
      %s167 = scalar_select %p164, %s165, %s166
      %p170 = pneg %p164
      %p171 = scmp.eq.s32.totalorder %s22, 1
      %p172 = por %p170, %p171
      %p173 = scmp.ne.s32.totalorder %s165, %s168
      %p174 = scmp.eq.s32.totalorder %s22, 0
      %p175 = por %p173, %p174
      %p176 = scmp.ne.s32.totalorder %s165, %s168
      %p177 = scmp.eq.s32.totalorder %s27, 1
      %p178 = por %p176, %p177
      %p179 = scmp.ne.s32.totalorder %s168, %s169
      %p180 = scmp.eq.s32.totalorder %s27, 0
      %p181 = por %p179, %p180
      %p182 = scmp.ne.s32.totalorder %s168, %s169
      %p183 = scmp.eq.s32.totalorder %s28, 1
      %p184 = por %p182, %p183
      %p186 = scmp.ne.s32.totalorder %s169, %s185
      %p187 = scmp.eq.s32.totalorder %s28, 0
      %p188 = por %p186, %p187
      %p189 = scmp.le.s32.totalorder 1, %s22
      %p190 = scmp.lt.s32.totalorder %s22, 3
      %p191 = pnand %p189, %p190
      %p192 = pneg %p191
      // Predicated region
      $region9: #{transformer_forward.27} parent=5 // pred_check
        _
      $region10: #{transformer_forward.27} parent=5 // pred_check_branch
        %194 = sbr.rel (%p191) target = $region12
      $region11: #{transformer_forward.27} parent=5 // pred_region
        %s195 = ssub.s32 %s22, 1
      $region12: #{transformer_forward.27} parent=5 // pred_fallthru
        _
      %p196 = scmp.lt.s32.totalorder %s22, 2
      // Predicated region
      $region13: #{transformer_forward.27} parent=5 // pred_check
        %p197 = pneg %p196
      $region14: #{transformer_forward.27} parent=5 // pred_check_branch
        %199 = sbr.rel (%p197) target = $region16
      $region15: #{transformer_forward.27} parent=5 // pred_region
        // Predicated region
        $region17: #{transformer_forward.27} parent=15 // pred_check
          %p200 = pneg %p63
        $region18: #{transformer_forward.27} parent=15 // pred_check_branch
          %202 = sbr.rel (%p200) target = $region20
        $region19: #{transformer_forward.27} parent=15 // pred_region
          %s203 = sand.u32 %s53, 1
          %s204 = scalar_lea.sflag [#allocation6], %s203
          %s205 = sand.u32 %s53, 1
          %s206 = scalar_lea.vmem [#allocation5], %s205
          %s208 = ssub.s32 16, 16
          %209 = vsyncadd %s204, %s208
          %s210 = sadd.s32 %s31, %s29
          %s211 = smul.addr %s210, 16
          %s212 = scalar_lea.hbm %s0, %s211
          %s214 = sshll.u32 %s206, 4
          %s215 = int_to_ptr.vmem [resolvable:$true] %s214
          %217 = dma.hbm_to_vmem [thread:$0]  %s212, 16, %s215, %s204
        $region20: #{transformer_forward.27} parent=15 // pred_fallthru
          _
        // Predicated region
        $region21: #{transformer_forward.27} parent=15 // pred_check
          %p218 = pneg %p91
        $region22: #{transformer_forward.27} parent=15 // pred_check_branch
          %220 = sbr.rel (%p218) target = $region24
        $region23: #{transformer_forward.27} parent=15 // pred_region
          %s221 = sand.u32 %s22, 1
          %s222 = scalar_lea.sflag [#allocation9], %s221
          %s223 = sand.u32 %s81, 1
          %s224 = smul.addr %s223, 4
          %s225 = scalar_lea.vmem [#allocation8], %s224
          %s227 = ssub.s32 64, 64
          %228 = vsyncadd %s222, %s227
          %s229 = sadd.s32 %s30, %s29
          %s230 = smul.addr %s229, 64
          %s231 = scalar_lea.hbm %s1, %s230
          %s233 = sshll.u32 %s225, 4
          %s234 = int_to_ptr.vmem [resolvable:$true] %s233
          %236 = dma.hbm_to_vmem [thread:$0]  %s231, 64, %s234, %s222
        $region24: #{transformer_forward.27} parent=15 // pred_fallthru
          _
        // Predicated region
        $region25: #{transformer_forward.27} parent=15 // pred_check
          %p237 = pneg %p119
        $region26: #{transformer_forward.27} parent=15 // pred_check_branch
          %239 = sbr.rel (%p237) target = $region28
        $region27: #{transformer_forward.27} parent=15 // pred_region
          %s240 = sand.u32 %s22, 1
          %s241 = scalar_lea.sflag [#allocation9], %s240
          %s242 = sand.u32 %s109, 1
          %s243 = smul.addr %s242, 4
          %s244 = scalar_lea.vmem [#allocation10], %s243
          %s246 = ssub.s32 64, 64
          %247 = vsyncadd %s241, %s246
          %s248 = sadd.s32 %s31, %s29
          %s249 = smul.addr %s248, 64
          %s250 = scalar_lea.hbm %s2, %s249
          %s252 = sshll.u32 %s244, 4
          %s253 = int_to_ptr.vmem [resolvable:$true] %s252
          %255 = dma.hbm_to_vmem [thread:$0]  %s250, 64, %s253, %s241
        $region28: #{transformer_forward.27} parent=15 // pred_fallthru
          _
        // Predicated region
        $region29: #{transformer_forward.27} parent=15 // pred_check
          %p256 = pneg %p147
        $region30: #{transformer_forward.27} parent=15 // pred_check_branch
          %258 = sbr.rel (%p256) target = $region32
        $region31: #{transformer_forward.27} parent=15 // pred_region
          %s259 = sand.u32 %s137, 1
          %s260 = scalar_lea.sflag [#allocation12], %s259
          %s261 = sand.u32 %s137, 1
          %s262 = smul.addr %s261, 4
          %s263 = scalar_lea.vmem [#allocation11], %s262
          %s265 = ssub.s32 64, 64
          %266 = vsyncadd %s260, %s265
          %s267 = sadd.s32 %s31, %s29
          %s268 = smul.addr %s267, 64
          %s269 = scalar_lea.hbm %s3, %s268
          %s271 = sshll.u32 %s263, 4
          %s272 = int_to_ptr.vmem [resolvable:$true] %s271
          %274 = dma.hbm_to_vmem [thread:$0]  %s269, 64, %s272, %s260
        $region32: #{transformer_forward.27} parent=15 // pred_fallthru
          _
      $region16: #{transformer_forward.27} parent=5 // pred_fallthru
        _
      %p275 = scmp.le.s32.totalorder 1, %s22
      %p276 = scmp.lt.s32.totalorder %s22, 3
      %p277 = pnand %p275, %p276
      %p278 = pneg %p277
      // Predicated region
      $region33: #{transformer_forward.27} parent=5 // pred_check
        _
      $region34: #{transformer_forward.27} parent=5 // pred_check_branch
        %280 = sbr.rel (%p277) target = $region36
      $region35: #{transformer_forward.27} parent=5 // pred_region
        %s281 = ssub.s32 %s22, 1
        %s282 = sand.u32 %s56, 1
        %s283 = scalar_lea.sflag [#allocation6], %s282
        %s284 = sand.u32 %s56, 1
        %s285 = scalar_lea.vmem [#allocation5], %s284
        // Predicated region
        $region37: #{transformer_forward.27} parent=35 // pred_check
          %p286 = pneg %p69
        $region38: #{transformer_forward.27} parent=35 // pred_check_branch
          %288 = sbr.rel (%p286) target = $region40
        $region39: #{transformer_forward.27} parent=35 // pred_region
          %289 = dma.done %s283, 16
        $region40: #{transformer_forward.27} parent=35 // pred_fallthru
          _
        %s290 = sand.u32 %s27, 1
        %s291 = scalar_lea.sflag [#allocation9], %s290
        %s292 = sand.u32 %s84, 1
        %s293 = smul.addr %s292, 4
        %s294 = scalar_lea.vmem [#allocation8], %s293
        // Predicated region
        $region41: #{transformer_forward.27} parent=35 // pred_check
          %p295 = pneg %p97
        $region42: #{transformer_forward.27} parent=35 // pred_check_branch
          %297 = sbr.rel (%p295) target = $region44
        $region43: #{transformer_forward.27} parent=35 // pred_region
          %298 = dma.done %s291, 64
        $region44: #{transformer_forward.27} parent=35 // pred_fallthru
          _
        %s299 = sand.u32 %s27, 1
        %s300 = scalar_lea.sflag [#allocation9], %s299
        %s301 = sand.u32 %s112, 1
        %s302 = smul.addr %s301, 4
        %s303 = scalar_lea.vmem [#allocation10], %s302
        // Predicated region
        $region45: #{transformer_forward.27} parent=35 // pred_check
          %p304 = pneg %p125
        $region46: #{transformer_forward.27} parent=35 // pred_check_branch
          %306 = sbr.rel (%p304) target = $region48
        $region47: #{transformer_forward.27} parent=35 // pred_region
          %307 = dma.done %s300, 64
        $region48: #{transformer_forward.27} parent=35 // pred_fallthru
          _
        %s308 = sand.u32 %s140, 1
        %s309 = scalar_lea.sflag [#allocation12], %s308
        %s310 = sand.u32 %s140, 1
        %s311 = smul.addr %s310, 4
        %s312 = scalar_lea.vmem [#allocation11], %s311
        // Predicated region
        $region49: #{transformer_forward.27} parent=35 // pred_check
          %p313 = pneg %p153
        $region50: #{transformer_forward.27} parent=35 // pred_check_branch
          %315 = sbr.rel (%p313) target = $region52
        $region51: #{transformer_forward.27} parent=35 // pred_region
          %316 = dma.done %s309, 64
        $region52: #{transformer_forward.27} parent=35 // pred_fallthru
          _
        %s317 = sand.u32 %s56, 1
        %s318 = scalar_lea.sflag [#allocation6], %s317
        %s319 = sand.u32 %s56, 1
        %s320 = scalar_lea.vmem [#allocation5], %s319
        %p321 = pneg %p69
        %p322 = pneg %p66
        %s323 = sand.u32 %s27, 1
        %s324 = scalar_lea.sflag [#allocation9], %s323
        %s325 = sand.u32 %s84, 1
        %s326 = smul.addr %s325, 4
        %s327 = scalar_lea.vmem [#allocation8], %s326
        %p328 = pneg %p97
        %p329 = pneg %p94
        %s330 = sand.u32 %s27, 1
        %s331 = scalar_lea.sflag [#allocation9], %s330
        %s332 = sand.u32 %s112, 1
        %s333 = smul.addr %s332, 4
        %s334 = scalar_lea.vmem [#allocation10], %s333
        %p335 = pneg %p125
        %p336 = pneg %p122
        %s337 = sand.u32 %s140, 1
        %s338 = scalar_lea.sflag [#allocation12], %s337
        %s339 = sand.u32 %s140, 1
        %s340 = smul.addr %s339, 4
        %s341 = scalar_lea.vmem [#allocation11], %s340
        %p342 = pneg %p153
        %p343 = pneg %p150
        %p344 = pneg %p181
        %p345 = pneg %p178
        %s346 = sand.u32 %s168, 1
        %s347 = scalar_lea.sflag [#allocation7], %s346
        %s348 = sand.u32 %s168, 1
        %s349 = smul.addr %s348, 4
        %s350 = scalar_lea.vmem [#allocation13], %s349
        %p352 = scmp.eq.s32.totalorder %s34, 0
        // Predicated region
        $region53: #{transformer_forward.27} parent=35 // pred_check
          %p353 = pneg %p352
        $region54: #{transformer_forward.27} parent=35 // pred_check_branch
          %355 = sbr.rel (%p353) target = $region56
        $region55: #{transformer_forward.27} parent=35 // pred_region
          %vm356 = vcmask 60416
          %357 = vst.msk [vmem:[#allocation2] sm:$0xf] %vm356, -inf
          %358 = vst.msk [vmem:[#allocation3] sm:$0xf] %vm356, 0.0
          %vm359 = vcmask 64512
          %360 = vst.msk [vmem:[#allocation4] sm:$0xff] %vm359, 0.0
          %361 = vst.msk [vmem:[#allocation4 + $0x8] sm:$0xff] %vm359, 0.0
          %362 = vst.msk [vmem:[#allocation4 + $0x10] sm:$0xff] %vm359, 0.0
          %363 = vst.msk [vmem:[#allocation4 + $0x18] sm:$0xff] %vm359, 0.0
        $region56: #{transformer_forward.27} parent=35 // pred_fallthru
          _
        %v364 = vld [vmem:[%s294] sm:$0xf]
        %366 = vrot.lane.b32.xlu0 %v364, 120
        %v367 = vpop.permute.xlu0 %366
        %368 = vrot.lane.b32.xlu0 %v364, 112
        %v369 = vpop.permute.xlu0 %368
        %370 = vrot.lane.b32.xlu0 %v364, 104
        %v371 = vpop.permute.xlu0 %370
        %v372 = vld [vmem:[%s303] sm:$0xf]
        %374 = vrot.lane.b32.xlu0 %v372, 120
        %v375 = vpop.permute.xlu0 %374
        %376 = vrot.lane.b32.xlu0 %v372, 112
        %v377 = vpop.permute.xlu0 %376
        %378 = vrot.lane.b32.xlu0 %v372, 104
        %v379 = vpop.permute.xlu0 %378
        %v380 = vld [vmem:[%s312] sm:$0xf]
        %382 = vrot.lane.b32.xlu0 %v380, 120
        %v383 = vpop.permute.xlu0 %382
        %384 = vrot.lane.b32.xlu0 %v380, 112
        %v385 = vpop.permute.xlu0 %384
        %386 = vrot.lane.b32.xlu0 %v380, 104
        %v387 = vpop.permute.xlu0 %386
        %v388 = vld [vmem:[%s285] sm:$0x1]
        %v389 = vsub.f32 %v388, 1.0
        %v390 = vmul.f32 %v389, 1e+09
        %v392 = vlaneseq
        %v393 = vshrl.u32 %v392, 7
        %v394 = vsub.s32 0, %v393
        %v395 = vrot.slane %v390, %v394
        %vm397 = vcmask 64512
        %v399 = vsel %vm397, %v364, 0
        %v402 = vsel %vm397, %v372, 0
        %404 = vmatprep.subr.bf16.mxu0 0
        %405 = vmatpush1.bf16.xpose.msra.mxu0 %v402
        %406 = vmatprep.subr.bf16.mxu0 0
        %407 = vmatpush1.bf16.xpose.msra.mxu0 0
        %408 = vmatprep.subr.bf16.mxu0 0
        %409 = vmatpush1.bf16.xpose.msra.mxu0 0
        %410 = vmatprep.subr.bf16.mxu0 0
        %411 = vmatpush1.bf16.xpose.msra.mxu0 0
        %412 = vmatprep.subr.bf16.mxu0 0
        %413 = vmatpush1.bf16.xpose.msra.mxu0 0
        %414 = vmatprep.subr.bf16.mxu0 0
        %415 = vmatpush1.bf16.xpose.msra.mxu0 0
        %416 = vmatprep.subr.bf16.mxu0 0
        %417 = vmatpush1.bf16.xpose.msra.mxu0 0
        %418 = vmatprep.subr.bf16.mxu0 0
        %419 = vmatpush1.bf16.xpose.msra.mxu0 0
        %420 = vmatprep.subr.bf16.mxu0 0
        %421 = vmatpush1.bf16.xpose.msra.mxu0 0
        %422 = vmatprep.subr.bf16.mxu0 0
        %423 = vmatpush1.bf16.xpose.msra.mxu0 0
        %424 = vmatprep.subr.bf16.mxu0 0
        %425 = vmatpush1.bf16.xpose.msra.mxu0 0
        %426 = vmatprep.subr.bf16.mxu0 0
        %427 = vmatpush1.bf16.xpose.msra.mxu0 0
        %428 = vmatprep.subr.bf16.mxu0 0
        %429 = vmatpush1.bf16.xpose.msra.mxu0 0
        %430 = vmatprep.subr.bf16.mxu0 0
        %431 = vmatpush1.bf16.xpose.msra.mxu0 0
        %432 = vmatprep.subr.bf16.mxu0 0
        %433 = vmatpush1.bf16.xpose.msra.mxu0 0
        %434 = vmatprep.subr.bf16.mxu0 0
        %435 = vmatpush1.bf16.xpose.msra.mxu0 0
        %436 = vmatprep.mubr.bf16.mxu0 0
        %437 = vmatmul.mubr.bf16.gmra.mrb[0].mxu0 %v399
        %v438 = vpop.f32.mrb[0].mxu0
        %v439 = vadd.f32 %v395, %v438
        %v440 = vpop.f32.mrb[0].mxu0
        %v441 = vpop.f32.mrb[0].mxu0
        %v442 = vpop.f32.mrb[0].mxu0
        %443 = vdwg.mxu0
        %v445 = vsel %vm397, %v367, 0
        %v448 = vsel %vm397, %v375, 0
        %450 = vmatprep.subr.bf16.mxu0 0
        %451 = vmatpush1.bf16.xpose.msra.mxu0 %v448
        %452 = vmatprep.subr.bf16.mxu0 0
        %453 = vmatpush1.bf16.xpose.msra.mxu0 0
        %454 = vmatprep.subr.bf16.mxu0 0
        %455 = vmatpush1.bf16.xpose.msra.mxu0 0
        %456 = vmatprep.subr.bf16.mxu0 0
        %457 = vmatpush1.bf16.xpose.msra.mxu0 0
        %458 = vmatprep.subr.bf16.mxu0 0
        %459 = vmatpush1.bf16.xpose.msra.mxu0 0
        %460 = vmatprep.subr.bf16.mxu0 0
        %461 = vmatpush1.bf16.xpose.msra.mxu0 0
        %462 = vmatprep.subr.bf16.mxu0 0
        %463 = vmatpush1.bf16.xpose.msra.mxu0 0
        %464 = vmatprep.subr.bf16.mxu0 0
        %465 = vmatpush1.bf16.xpose.msra.mxu0 0
        %466 = vmatprep.subr.bf16.mxu0 0
        %467 = vmatpush1.bf16.xpose.msra.mxu0 0
        %468 = vmatprep.subr.bf16.mxu0 0
        %469 = vmatpush1.bf16.xpose.msra.mxu0 0
        %470 = vmatprep.subr.bf16.mxu0 0
        %471 = vmatpush1.bf16.xpose.msra.mxu0 0
        %472 = vmatprep.subr.bf16.mxu0 0
        %473 = vmatpush1.bf16.xpose.msra.mxu0 0
        %474 = vmatprep.subr.bf16.mxu0 0
        %475 = vmatpush1.bf16.xpose.msra.mxu0 0
        %476 = vmatprep.subr.bf16.mxu0 0
        %477 = vmatpush1.bf16.xpose.msra.mxu0 0
        %478 = vmatprep.subr.bf16.mxu0 0
        %479 = vmatpush1.bf16.xpose.msra.mxu0 0
        %480 = vmatprep.subr.bf16.mxu0 0
        %481 = vmatpush1.bf16.xpose.msra.mxu0 0
        %482 = vmatprep.mubr.bf16.mxu0 0
        %483 = vmatmul.mubr.bf16.gmra.mrb[0].mxu0 %v445
        %v484 = vpop.f32.mrb[0].mxu0
        %v485 = vadd.f32 %v395, %v484
        %v486 = vpop.f32.mrb[0].mxu0
        %v487 = vpop.f32.mrb[0].mxu0
        %v488 = vpop.f32.mrb[0].mxu0
        %489 = vdwg.mxu0
        %v491 = vsel %vm397, %v369, 0
        %v494 = vsel %vm397, %v377, 0
        %496 = vmatprep.subr.bf16.mxu0 0
        %497 = vmatpush1.bf16.xpose.msra.mxu0 %v494
        %498 = vmatprep.subr.bf16.mxu0 0
        %499 = vmatpush1.bf16.xpose.msra.mxu0 0
        %500 = vmatprep.subr.bf16.mxu0 0
        %501 = vmatpush1.bf16.xpose.msra.mxu0 0
        %502 = vmatprep.subr.bf16.mxu0 0
        %503 = vmatpush1.bf16.xpose.msra.mxu0 0
        %504 = vmatprep.subr.bf16.mxu0 0
        %505 = vmatpush1.bf16.xpose.msra.mxu0 0
        %506 = vmatprep.subr.bf16.mxu0 0
        %507 = vmatpush1.bf16.xpose.msra.mxu0 0
        %508 = vmatprep.subr.bf16.mxu0 0
        %509 = vmatpush1.bf16.xpose.msra.mxu0 0
        %510 = vmatprep.subr.bf16.mxu0 0
        %511 = vmatpush1.bf16.xpose.msra.mxu0 0
        %512 = vmatprep.subr.bf16.mxu0 0
        %513 = vmatpush1.bf16.xpose.msra.mxu0 0
        %514 = vmatprep.subr.bf16.mxu0 0
        %515 = vmatpush1.bf16.xpose.msra.mxu0 0
        %516 = vmatprep.subr.bf16.mxu0 0
        %517 = vmatpush1.bf16.xpose.msra.mxu0 0
        %518 = vmatprep.subr.bf16.mxu0 0
        %519 = vmatpush1.bf16.xpose.msra.mxu0 0
        %520 = vmatprep.subr.bf16.mxu0 0
        %521 = vmatpush1.bf16.xpose.msra.mxu0 0
        %522 = vmatprep.subr.bf16.mxu0 0
        %523 = vmatpush1.bf16.xpose.msra.mxu0 0
        %524 = vmatprep.subr.bf16.mxu0 0
        %525 = vmatpush1.bf16.xpose.msra.mxu0 0
        %526 = vmatprep.subr.bf16.mxu0 0
        %527 = vmatpush1.bf16.xpose.msra.mxu0 0
        %528 = vmatprep.mubr.bf16.mxu0 0
        %529 = vmatmul.mubr.bf16.gmra.mrb[0].mxu0 %v491
        %v530 = vpop.f32.mrb[0].mxu0
        %v531 = vadd.f32 %v395, %v530
        %v532 = vpop.f32.mrb[0].mxu0
        %v533 = vpop.f32.mrb[0].mxu0
        %v534 = vpop.f32.mrb[0].mxu0
        %535 = vdwg.mxu0
        %v537 = vsel %vm397, %v371, 0
        %v540 = vsel %vm397, %v379, 0
        %542 = vmatprep.subr.bf16.mxu0 0
        %543 = vmatpush1.bf16.xpose.msra.mxu0 %v540
        %544 = vmatprep.subr.bf16.mxu0 0
        %545 = vmatpush1.bf16.xpose.msra.mxu0 0
        %546 = vmatprep.subr.bf16.mxu0 0
        %547 = vmatpush1.bf16.xpose.msra.mxu0 0
        %548 = vmatprep.subr.bf16.mxu0 0
        %549 = vmatpush1.bf16.xpose.msra.mxu0 0
        %550 = vmatprep.subr.bf16.mxu0 0
        %551 = vmatpush1.bf16.xpose.msra.mxu0 0
        %552 = vmatprep.subr.bf16.mxu0 0
        %553 = vmatpush1.bf16.xpose.msra.mxu0 0
        %554 = vmatprep.subr.bf16.mxu0 0
        %555 = vmatpush1.bf16.xpose.msra.mxu0 0
        %556 = vmatprep.subr.bf16.mxu0 0
        %557 = vmatpush1.bf16.xpose.msra.mxu0 0
        %558 = vmatprep.subr.bf16.mxu0 0
        %559 = vmatpush1.bf16.xpose.msra.mxu0 0
        %560 = vmatprep.subr.bf16.mxu0 0
        %561 = vmatpush1.bf16.xpose.msra.mxu0 0
        %562 = vmatprep.subr.bf16.mxu0 0
        %563 = vmatpush1.bf16.xpose.msra.mxu0 0
        %564 = vmatprep.subr.bf16.mxu0 0
        %565 = vmatpush1.bf16.xpose.msra.mxu0 0
        %566 = vmatprep.subr.bf16.mxu0 0
        %567 = vmatpush1.bf16.xpose.msra.mxu0 0
        %568 = vmatprep.subr.bf16.mxu0 0
        %569 = vmatpush1.bf16.xpose.msra.mxu0 0
        %570 = vmatprep.subr.bf16.mxu0 0
        %571 = vmatpush1.bf16.xpose.msra.mxu0 0
        %572 = vmatprep.subr.bf16.mxu0 0
        %573 = vmatpush1.bf16.xpose.msra.mxu0 0
        %574 = vmatprep.mubr.bf16.mxu0 0
        %575 = vmatmul.mubr.bf16.gmra.mrb[0].mxu0 %v537
        %v576 = vpop.f32.mrb[0].mxu0
        %v577 = vadd.f32 %v395, %v576
        %v578 = vpop.f32.mrb[0].mxu0
        %v579 = vpop.f32.mrb[0].mxu0
        %v580 = vpop.f32.mrb[0].mxu0
        %581 = vdwg.mxu0
        %v582 = vld [vmem:[#allocation2] sm:$0xf]
        %v583 = vsel %vm397, %v439, -inf
        %584 = vmax.xlane.f32.xlu0 %v583
        %v585 = vpop.xlane.xlu0 %584
        %v586 = vsel %vm397, %v485, -inf
        %587 = vmax.xlane.f32.xlu0 %v586
        %v588 = vpop.xlane.xlu0 %587
        %v589 = vsel %vm397, %v531, -inf
        %590 = vmax.xlane.f32.xlu0 %v589
        %v591 = vpop.xlane.xlu0 %590
        %v592 = vsel %vm397, %v577, -inf
        %593 = vmax.xlane.f32.xlu0 %v592
        %v594 = vpop.xlane.xlu0 %593
        %v599 = vlaneseq
        %v600 = vand.u32 %v599, 127
        %v601 = vlaneseq
        %v602 = vshrl.u32 %v601, 7
        %v603 = vsub.s32 %v600, %v602
        %v604 = vrot.slane %v585, %v603
        %v605 = vlaneseq
        %v606 = vshrl.u32 %v605, 7
        %v607 = vsub.s32 %v600, %v606
        %v608 = vrot.slane %v588, %v607
        %v609 = vlaneseq
        %v610 = vshrl.u32 %v609, 7
        %v611 = vsub.s32 %v600, %v610
        %v612 = vrot.slane %v591, %v611
        %v613 = vlaneseq
        %v614 = vshrl.u32 %v613, 7
        %v615 = vsub.s32 %v600, %v614
        %v616 = vrot.slane %v594, %v615
        %vm617 = vcmask 1041409
        %v618 = vsel %vm617, %v608, %v604
        %vm619 = vcmask 1042434
        %v620 = vsel %vm619, %v612, %v618
        %vm621 = vcmask 1043459
        %v622 = vsel %vm621, %v616, %v620
        %v624 = vmax.f32 %v582, %v622
        %v625 = vsub.f32 %v582, %v624
        %v626 = vmul.f32 %v625, 1.442695
        %v627 = vpow.pop %v626
        %v628 = vlaneseq
        %v629 = vshrl.u32 %v628, 7
        %v630 = vsub.s32 0, %v629
        %v631 = vrot.slane %v624, %v630
        %633 = vbcast.lane.b32.xlu0 %v631, 256
        %v634 = vpop.permute.xlu0 %633
        %v635 = vlaneseq
        %v636 = vshrl.u32 %v635, 7
        %v637 = vsub.s32 1, %v636
        %v638 = vrot.slane %v624, %v637
        %640 = vbcast.lane.b32.xlu0 %v638, 256
        %v641 = vpop.permute.xlu0 %640
        %v642 = vlaneseq
        %v643 = vshrl.u32 %v642, 7
        %v644 = vsub.s32 2, %v643
        %v645 = vrot.slane %v624, %v644
        %647 = vbcast.lane.b32.xlu0 %v645, 256
        %v648 = vpop.permute.xlu0 %647
        %v649 = vlaneseq
        %v650 = vshrl.u32 %v649, 7
        %v651 = vsub.s32 3, %v650
        %v652 = vrot.slane %v624, %v651
        %654 = vbcast.lane.b32.xlu0 %v652, 256
        %v655 = vpop.permute.xlu0 %654
        %v656 = vsub.f32 %v439, %v634
        %v657 = vsub.f32 %v485, %v641
        %v658 = vsub.f32 %v531, %v648
        %v659 = vsub.f32 %v577, %v655
        %v660 = vmul.f32 %v656, 1.442695
        %v661 = vpow.pop %v660
        %v662 = vmul.f32 %v657, 1.442695
        %v663 = vpow.pop %v662
        %v664 = vmul.f32 %v658, 1.442695
        %v665 = vpow.pop %v664
        %v666 = vmul.f32 %v659, 1.442695
        %v667 = vpow.pop %v666
        %v668 = vld [vmem:[#allocation3] sm:$0xf]
        %v669 = vmul.f32 %v627, %v668
        %v670 = vsel %vm397, %v661, 0.0
        %671 = vadd.xlane.f32.xlu0 %v670
        %v672 = vpop.xlane.xlu0 %671
        %v673 = vsel %vm397, %v663, 0.0
        %674 = vadd.xlane.f32.xlu0 %v673
        %v675 = vpop.xlane.xlu0 %674
        %v676 = vsel %vm397, %v665, 0.0
        %677 = vadd.xlane.f32.xlu0 %v676
        %v678 = vpop.xlane.xlu0 %677
        %v679 = vsel %vm397, %v667, 0.0
        %680 = vadd.xlane.f32.xlu0 %v679
        %v681 = vpop.xlane.xlu0 %680
        %v686 = vlaneseq
        %v687 = vshrl.u32 %v686, 7
        %v688 = vsub.s32 %v600, %v687
        %v689 = vrot.slane %v672, %v688
        %v690 = vlaneseq
        %v691 = vshrl.u32 %v690, 7
        %v692 = vsub.s32 %v600, %v691
        %v693 = vrot.slane %v675, %v692
        %v694 = vlaneseq
        %v695 = vshrl.u32 %v694, 7
        %v696 = vsub.s32 %v600, %v695
        %v697 = vrot.slane %v678, %v696
        %v698 = vlaneseq
        %v699 = vshrl.u32 %v698, 7
        %v700 = vsub.s32 %v600, %v699
        %v701 = vrot.slane %v681, %v700
        %v702 = vsel %vm617, %v693, %v689
        %v703 = vsel %vm619, %v697, %v702
        %v704 = vsel %vm621, %v701, %v703
        %v706 = vadd.f32 %v669, %v704
        %vm707 = vcmask 60416
        %708 = vst.msk [vmem:[#allocation3] sm:$0xf] %vm707, %v706
        %v709 = vlaneseq
        %v710 = vshrl.u32 %v709, 7
        %v711 = vsub.s32 0, %v710
        %v712 = vrot.slane %v627, %v711
        %714 = vbcast.lane.b32.xlu0 %v712, 256
        %v715 = vpop.permute.xlu0 %714
        %v716 = vlaneseq
        %v717 = vshrl.u32 %v716, 7
        %v718 = vsub.s32 1, %v717
        %v719 = vrot.slane %v627, %v718
        %721 = vbcast.lane.b32.xlu0 %v719, 256
        %v722 = vpop.permute.xlu0 %721
        %v723 = vlaneseq
        %v724 = vshrl.u32 %v723, 7
        %v725 = vsub.s32 2, %v724
        %v726 = vrot.slane %v627, %v725
        %728 = vbcast.lane.b32.xlu0 %v726, 256
        %v729 = vpop.permute.xlu0 %728
        %v730 = vlaneseq
        %v731 = vshrl.u32 %v730, 7
        %v732 = vsub.s32 3, %v731
        %v733 = vrot.slane %v627, %v732
        %735 = vbcast.lane.b32.xlu0 %v733, 256
        %v736 = vpop.permute.xlu0 %735
        %v737 = vld [vmem:[#allocation4] sm:$0xff]
        %v738 = vld [vmem:[#allocation4 + $0x8] sm:$0xff]
        %v739 = vld [vmem:[#allocation4 + $0x10] sm:$0xff]
        %v740 = vld [vmem:[#allocation4 + $0x18] sm:$0xff]
        %v741 = vmul.f32 %v715, %v737
        %v742 = vmul.f32 %v722, %v738
        %v743 = vmul.f32 %v729, %v739
        %v744 = vmul.f32 %v736, %v740
        %v745 = vpack.c.bf16 %v661, %v661
        %v746 = vpack.c.bf16 %v663, %v663
        %v747 = vpack.c.bf16 %v665, %v665
        %v748 = vpack.c.bf16 %v667, %v667
        %v750 = vsel %vm397, %v745, 0
        %vm752 = vcmask 1043456
        %v754 = vsel %vm752, %v380, 0
        %756 = vmatprep.subr.bf16.mxu0 0
        %757 = vmatpush1.bf16.msra.mxu0 %v754
        %758 = vmatprep.subr.bf16.mxu0 0
        %759 = vmatpush1.bf16.msra.mxu0 0
        %760 = vmatprep.subr.bf16.mxu0 0
        %761 = vmatpush1.bf16.msra.mxu0 0
        %762 = vmatprep.subr.bf16.mxu0 0
        %763 = vmatpush1.bf16.msra.mxu0 0
        %764 = vmatprep.subr.bf16.mxu0 0
        %765 = vmatpush1.bf16.msra.mxu0 0
        %766 = vmatprep.subr.bf16.mxu0 0
        %767 = vmatpush1.bf16.msra.mxu0 0
        %768 = vmatprep.subr.bf16.mxu0 0
        %769 = vmatpush1.bf16.msra.mxu0 0
        %770 = vmatprep.subr.bf16.mxu0 0
        %771 = vmatpush1.bf16.msra.mxu0 0
        %772 = vmatprep.subr.bf16.mxu0 0
        %773 = vmatpush1.bf16.msra.mxu0 0
        %774 = vmatprep.subr.bf16.mxu0 0
        %775 = vmatpush1.bf16.msra.mxu0 0
        %776 = vmatprep.subr.bf16.mxu0 0
        %777 = vmatpush1.bf16.msra.mxu0 0
        %778 = vmatprep.subr.bf16.mxu0 0
        %779 = vmatpush1.bf16.msra.mxu0 0
        %780 = vmatprep.subr.bf16.mxu0 0
        %781 = vmatpush1.bf16.msra.mxu0 0
        %782 = vmatprep.subr.bf16.mxu0 0
        %783 = vmatpush1.bf16.msra.mxu0 0
        %784 = vmatprep.subr.bf16.mxu0 0
        %785 = vmatpush1.bf16.msra.mxu0 0
        %786 = vmatprep.subr.bf16.mxu0 0
        %787 = vmatpush1.bf16.msra.mxu0 0
        %788 = vmatprep.mubr.bf16.mxu0 0
        %789 = vmatmul.mubr.bf16.gmra.mrb[0].mxu0 %v750
        %v790 = vpop.f32.mrb[0].mxu0
        %v791 = vadd.f32 0.0, %v790
        %v792 = vpop.f32.mrb[0].mxu0
        %v793 = vpop.f32.mrb[0].mxu0
        %v794 = vpop.f32.mrb[0].mxu0
        %795 = vdwg.mxu0
        %v797 = vsel %vm397, %v746, 0
        %v800 = vsel %vm752, %v383, 0
        %802 = vmatprep.subr.bf16.mxu0 0
        %803 = vmatpush1.bf16.msra.mxu0 %v800
        %804 = vmatprep.subr.bf16.mxu0 0
        %805 = vmatpush1.bf16.msra.mxu0 0
        %806 = vmatprep.subr.bf16.mxu0 0
        %807 = vmatpush1.bf16.msra.mxu0 0
        %808 = vmatprep.subr.bf16.mxu0 0
        %809 = vmatpush1.bf16.msra.mxu0 0
        %810 = vmatprep.subr.bf16.mxu0 0
        %811 = vmatpush1.bf16.msra.mxu0 0
        %812 = vmatprep.subr.bf16.mxu0 0
        %813 = vmatpush1.bf16.msra.mxu0 0
        %814 = vmatprep.subr.bf16.mxu0 0
        %815 = vmatpush1.bf16.msra.mxu0 0
        %816 = vmatprep.subr.bf16.mxu0 0
        %817 = vmatpush1.bf16.msra.mxu0 0
        %818 = vmatprep.subr.bf16.mxu0 0
        %819 = vmatpush1.bf16.msra.mxu0 0
        %820 = vmatprep.subr.bf16.mxu0 0
        %821 = vmatpush1.bf16.msra.mxu0 0
        %822 = vmatprep.subr.bf16.mxu0 0
        %823 = vmatpush1.bf16.msra.mxu0 0
        %824 = vmatprep.subr.bf16.mxu0 0
        %825 = vmatpush1.bf16.msra.mxu0 0
        %826 = vmatprep.subr.bf16.mxu0 0
        %827 = vmatpush1.bf16.msra.mxu0 0
        %828 = vmatprep.subr.bf16.mxu0 0
        %829 = vmatpush1.bf16.msra.mxu0 0
        %830 = vmatprep.subr.bf16.mxu0 0
        %831 = vmatpush1.bf16.msra.mxu0 0
        %832 = vmatprep.subr.bf16.mxu0 0
        %833 = vmatpush1.bf16.msra.mxu0 0
        %834 = vmatprep.mubr.bf16.mxu0 0
        %835 = vmatmul.mubr.bf16.gmra.mrb[0].mxu0 %v797
        %v836 = vpop.f32.mrb[0].mxu0
        %v837 = vadd.f32 0.0, %v836
        %v838 = vpop.f32.mrb[0].mxu0
        %v839 = vpop.f32.mrb[0].mxu0
        %v840 = vpop.f32.mrb[0].mxu0
        %841 = vdwg.mxu0
        %v843 = vsel %vm397, %v747, 0
        %v846 = vsel %vm752, %v385, 0
        %848 = vmatprep.subr.bf16.mxu0 0
        %849 = vmatpush1.bf16.msra.mxu0 %v846
        %850 = vmatprep.subr.bf16.mxu0 0
        %851 = vmatpush1.bf16.msra.mxu0 0
        %852 = vmatprep.subr.bf16.mxu0 0
        %853 = vmatpush1.bf16.msra.mxu0 0
        %854 = vmatprep.subr.bf16.mxu0 0
        %855 = vmatpush1.bf16.msra.mxu0 0
        %856 = vmatprep.subr.bf16.mxu0 0
        %857 = vmatpush1.bf16.msra.mxu0 0
        %858 = vmatprep.subr.bf16.mxu0 0
        %859 = vmatpush1.bf16.msra.mxu0 0
        %860 = vmatprep.subr.bf16.mxu0 0
        %861 = vmatpush1.bf16.msra.mxu0 0
        %862 = vmatprep.subr.bf16.mxu0 0
        %863 = vmatpush1.bf16.msra.mxu0 0
        %864 = vmatprep.subr.bf16.mxu0 0
        %865 = vmatpush1.bf16.msra.mxu0 0
        %866 = vmatprep.subr.bf16.mxu0 0
        %867 = vmatpush1.bf16.msra.mxu0 0
        %868 = vmatprep.subr.bf16.mxu0 0
        %869 = vmatpush1.bf16.msra.mxu0 0
        %870 = vmatprep.subr.bf16.mxu0 0
        %871 = vmatpush1.bf16.msra.mxu0 0
        %872 = vmatprep.subr.bf16.mxu0 0
        %873 = vmatpush1.bf16.msra.mxu0 0
        %874 = vmatprep.subr.bf16.mxu0 0
        %875 = vmatpush1.bf16.msra.mxu0 0
        %876 = vmatprep.subr.bf16.mxu0 0
        %877 = vmatpush1.bf16.msra.mxu0 0
        %878 = vmatprep.subr.bf16.mxu0 0
        %879 = vmatpush1.bf16.msra.mxu0 0
        %880 = vmatprep.mubr.bf16.mxu0 0
        %881 = vmatmul.mubr.bf16.gmra.mrb[0].mxu0 %v843
        %v882 = vpop.f32.mrb[0].mxu0
        %v883 = vadd.f32 0.0, %v882
        %v884 = vpop.f32.mrb[0].mxu0
        %v885 = vpop.f32.mrb[0].mxu0
        %v886 = vpop.f32.mrb[0].mxu0
        %887 = vdwg.mxu0
        %v889 = vsel %vm397, %v748, 0
        %v892 = vsel %vm752, %v387, 0
        %894 = vmatprep.subr.bf16.mxu0 0
        %895 = vmatpush1.bf16.msra.mxu0 %v892
        %896 = vmatprep.subr.bf16.mxu0 0
        %897 = vmatpush1.bf16.msra.mxu0 0
        %898 = vmatprep.subr.bf16.mxu0 0
        %899 = vmatpush1.bf16.msra.mxu0 0
        %900 = vmatprep.subr.bf16.mxu0 0
        %901 = vmatpush1.bf16.msra.mxu0 0
        %902 = vmatprep.subr.bf16.mxu0 0
        %903 = vmatpush1.bf16.msra.mxu0 0
        %904 = vmatprep.subr.bf16.mxu0 0
        %905 = vmatpush1.bf16.msra.mxu0 0
        %906 = vmatprep.subr.bf16.mxu0 0
        %907 = vmatpush1.bf16.msra.mxu0 0
        %908 = vmatprep.subr.bf16.mxu0 0
        %909 = vmatpush1.bf16.msra.mxu0 0
        %910 = vmatprep.subr.bf16.mxu0 0
        %911 = vmatpush1.bf16.msra.mxu0 0
        %912 = vmatprep.subr.bf16.mxu0 0
        %913 = vmatpush1.bf16.msra.mxu0 0
        %914 = vmatprep.subr.bf16.mxu0 0
        %915 = vmatpush1.bf16.msra.mxu0 0
        %916 = vmatprep.subr.bf16.mxu0 0
        %917 = vmatpush1.bf16.msra.mxu0 0
        %918 = vmatprep.subr.bf16.mxu0 0
        %919 = vmatpush1.bf16.msra.mxu0 0
        %920 = vmatprep.subr.bf16.mxu0 0
        %921 = vmatpush1.bf16.msra.mxu0 0
        %922 = vmatprep.subr.bf16.mxu0 0
        %923 = vmatpush1.bf16.msra.mxu0 0
        %924 = vmatprep.subr.bf16.mxu0 0
        %925 = vmatpush1.bf16.msra.mxu0 0
        %926 = vmatprep.mubr.bf16.mxu0 0
        %927 = vmatmul.mubr.bf16.gmra.mrb[0].mxu0 %v889
        %v928 = vpop.f32.mrb[0].mxu0
        %v929 = vadd.f32 0.0, %v928
        %v930 = vpop.f32.mrb[0].mxu0
        %v931 = vpop.f32.mrb[0].mxu0
        %v932 = vpop.f32.mrb[0].mxu0
        %933 = vdwg.mxu0
        %v934 = vadd.f32 %v741, %v791
        %v935 = vadd.f32 %v742, %v837
        %v936 = vadd.f32 %v743, %v883
        %v937 = vadd.f32 %v744, %v929
        %938 = vst.msk [vmem:[#allocation4] sm:$0xff] %vm397, %v934
        %939 = vst.msk [vmem:[#allocation4 + $0x8] sm:$0xff] %vm397, %v935
        %940 = vst.msk [vmem:[#allocation4 + $0x10] sm:$0xff] %vm397, %v936
        %941 = vst.msk [vmem:[#allocation4 + $0x18] sm:$0xff] %vm397, %v937
        %942 = vst.msk [vmem:[#allocation2] sm:$0xf] %vm707, %v624
        // Predicated region
        $region57: #{transformer_forward.27} parent=35 // pred_check
          %p943 = pneg %p352
        $region58: #{transformer_forward.27} parent=35 // pred_check_branch
          %945 = sbr.rel (%p943) target = $region60
        $region59: #{transformer_forward.27} parent=35 // pred_region
          %v946 = vld [vmem:[#allocation3] sm:$0xf]
          %v947 = vrcp.pop %v946
          %v948 = vld [vmem:[#allocation4] sm:$0xff]
          %v949 = vld [vmem:[#allocation4 + $0x8] sm:$0xff]
          %v950 = vld [vmem:[#allocation4 + $0x10] sm:$0xff]
          %v951 = vld [vmem:[#allocation4 + $0x18] sm:$0xff]
          %v952 = vlaneseq
          %v953 = vshrl.u32 %v952, 7
          %v954 = vsub.s32 0, %v953
          %v955 = vrot.slane %v947, %v954
          %957 = vbcast.lane.b32.xlu0 %v955, 256
          %v958 = vpop.permute.xlu0 %957
          %v959 = vlaneseq
          %v960 = vshrl.u32 %v959, 7
          %v961 = vsub.s32 1, %v960
          %v962 = vrot.slane %v947, %v961
          %964 = vbcast.lane.b32.xlu0 %v962, 256
          %v965 = vpop.permute.xlu0 %964
          %v966 = vlaneseq
          %v967 = vshrl.u32 %v966, 7
          %v968 = vsub.s32 2, %v967
          %v969 = vrot.slane %v947, %v968
          %971 = vbcast.lane.b32.xlu0 %v969, 256
          %v972 = vpop.permute.xlu0 %971
          %v973 = vlaneseq
          %v974 = vshrl.u32 %v973, 7
          %v975 = vsub.s32 3, %v974
          %v976 = vrot.slane %v947, %v975
          %978 = vbcast.lane.b32.xlu0 %v976, 256
          %v979 = vpop.permute.xlu0 %978
          %v980 = vmul.f32 %v948, %v958
          %v981 = vmul.f32 %v949, %v965
          %v982 = vmul.f32 %v950, %v972
          %v983 = vmul.f32 %v951, %v979
          %985 = vrot.lane.b32.xlu0 %v981, 8
          %v986 = vpop.permute.xlu0 %985
          %989 = vrot.lane.b32.xlu0 %v982, 16
          %v990 = vpop.permute.xlu0 %989
          %993 = vrot.lane.b32.xlu0 %v983, 24
          %v994 = vpop.permute.xlu0 %993
          %v996 = vsel %vm397, %v980, %v986
          %vm997 = vcmask 130048
          %v998 = vsel %vm997, %v996, %v990
          %vm999 = vcmask 195584
          %v1000 = vsel %vm999, %v998, %v994
          %v1001 = vpack.c.bf16 %v1000, %v1000
          %vm1002 = vcmask 257024
          %1003 = vst.msk [vmem:[%s350] sm:$0xf] %vm1002, %v1001
        $region60: #{transformer_forward.27} parent=35 // pred_fallthru
          _
        %s1004 = sand.u32 %s168, 1
        %s1005 = scalar_lea.sflag [#allocation7], %s1004
        %s1006 = sand.u32 %s168, 1
        %s1007 = smul.addr %s1006, 4
        %s1008 = scalar_lea.vmem [#allocation13], %s1007
        // Predicated region
        $region61: #{transformer_forward.27} parent=35 // pred_check
          %p1009 = pneg %p178
        $region62: #{transformer_forward.27} parent=35 // pred_check_branch
          %1011 = sbr.rel (%p1009) target = $region64
        $region63: #{transformer_forward.27} parent=35 // pred_region
          %s1013 = ssub.s32 64, 64
          %1014 = vsyncadd %s1005, %s1013
          %s1015 = sadd.s32 %s33, %s32
          %s1016 = smul.addr %s1015, 64
          %s1017 = scalar_lea.hbm %s4, %s1016
          %s1019 = sshll.u32 %s1008, 4
          %s1020 = int_to_ptr.vmem [resolvable:$true] %s1019
          %1022 = dma.vmem_to_hbm [thread:$0]  %s1020, 64, %s1017, %s1005
        $region64: #{transformer_forward.27} parent=35 // pred_fallthru
          _
      $region36: #{transformer_forward.27} parent=5 // pred_fallthru
        _
      %p1023 = scmp.le.s32.totalorder 2, %s22
      // Predicated region
      $region65: #{transformer_forward.27} parent=5 // pred_check
        %p1024 = pneg %p1023
      $region66: #{transformer_forward.27} parent=5 // pred_check_branch
        %1026 = sbr.rel (%p1024) target = $region68
      $region67: #{transformer_forward.27} parent=5 // pred_region
        %s1027 = ssub.s32 %s22, 2
        // Predicated region
        $region69: #{transformer_forward.27} parent=67 // pred_check
          %p1028 = pneg %p184
        $region70: #{transformer_forward.27} parent=67 // pred_check_branch
          %1030 = sbr.rel (%p1028) target = $region72
        $region71: #{transformer_forward.27} parent=67 // pred_region
          %s1031 = sand.u32 %s169, 1
          %s1032 = scalar_lea.sflag [#allocation7], %s1031
          %s1033 = sand.u32 %s169, 1
          %s1034 = smul.addr %s1033, 4
          %s1035 = scalar_lea.vmem [#allocation13], %s1034
          %1036 = dma.done %s1032, 64
        $region72: #{transformer_forward.27} parent=67 // pred_fallthru
          _
      $region68: #{transformer_forward.27} parent=5 // pred_fallthru
        _
    $region6: #{transformer_forward.27} parent=1 // loop_footer
      %s26 = sadd.s32 1, %s22
    $region7: #{transformer_forward.27} parent=1 // loop_footer_branch
      %21 = sbr.rel target = $region3
    $region8: #{transformer_forward.27} parent=1 // loop_exit
      _
    %1037 = vsyncpa [#allocation6], 1
    %s1038 = scalar_lea.sflag [#allocation6], 1
    %1039 = vsyncpa %s1038, 1
    %1040 = vsyncpa [#allocation9], 1
    %s1041 = scalar_lea.sflag [#allocation9], 1
    %1042 = vsyncpa %s1041, 1
    %1043 = vsyncpa [#allocation12], 1
    %s1044 = scalar_lea.sflag [#allocation12], 1
    %1045 = vsyncpa %s1044, 1
    %1046 = vsyncpa [#allocation7], 1
    %s1047 = scalar_lea.sflag [#allocation7], 1
    %1048 = vsyncpa %s1047, 1

// kernel: transformer_forward.29
$region0: #{transformer_forward.29}
  #allocation0 [shape = 'u32[]', space=smem, size = 0x4, offset = 0x4, fixed_abs, tag = 'smem constant byte address 0x4 - core index']
  #allocation1 [shape = 'u32[144,128]{1,0:T(1,128)}', space=vmem, size = 0x12000, scoped, tag = 'internal scratch']
  #allocation2 [shape = 'bf16[16,32]{1,0:T(16,128)(2,1)}', space=vmem, size = 0x1000, scoped, tag = 'scratch operand']
  #allocation3 [shape = 'f32[16,32]{1,0:T(8,128)}', space=vmem, size = 0x2000, scoped, tag = 'scratch operand']
  %s0 = inlined_call_operand.hbm [shape: bf16[16,32], index: 0, kind: input, shape index: {}]
  %s1 = inlined_call_operand.hbm [shape: f32[1,32], index: 1, kind: input, shape index: {}]
  %s2 = inlined_call_operand.hbm [shape: f32[1,32], index: 2, kind: input, shape index: {}]
  %s3 = inlined_call_operand.hbm [shape: bf16[32,64], index: 3, kind: input, shape index: {}]
  %s4 = inlined_call_operand.hbm [shape: f32[1,64], index: 4, kind: input, shape index: {}]
  %s5 = inlined_call_operand.hbm [shape: bf16[64,32], index: 5, kind: input, shape index: {}]
  %s6 = inlined_call_operand.hbm [shape: f32[1,32], index: 6, kind: input, shape index: {}]
  %s7 = inlined_call_operand.hbm [shape: bf16[16,32], index: 7, kind: output, shape index: {}]
  %s8 = sld [smem:[#allocation0]]
  $region74: #{transformer_forward.29} parent=0
    _
  %s10 = ssub.s32 1, %s8
  %s11 = scalar_select 0, %s10, %s8
  $region1: #{transformer_forward.29} parent=0
    #allocation4 [shape = 'u8[4096]{0}', space=vmem, size = 0x1000, scoped, tag = 'input window, operand 0, single buffered']
    #allocation5 [shape = 's32[1]{0}', space=sflag, size = 0x4, scoped, tag = 'scoped memory for transformer_forward.29']
    #allocation6 [shape = 's32[1]{0}', space=sflag, size = 0x4, scoped, tag = 'scoped memory for transformer_forward.29']
    #allocation7 [shape = 'u8[512]{0}', space=vmem, size = 0x400, scoped, tag = 'input window, operand 1, single buffered']
    #allocation8 [shape = 's32[1]{0}', space=sflag, size = 0x4, scoped, tag = 'scoped memory for transformer_forward.29']
    #allocation9 [shape = 'u8[512]{0}', space=vmem, size = 0x400, scoped, tag = 'input window, operand 2, single buffered']
    #allocation10 [shape = 'u8[8192]{0}', space=vmem, size = 0x2000, scoped, tag = 'input window, operand 3, single buffered']
    #allocation11 [shape = 's32[1]{0}', space=sflag, size = 0x4, scoped, tag = 'scoped memory for transformer_forward.29']
    #allocation12 [shape = 'u8[512]{0}', space=vmem, size = 0x400, scoped, tag = 'input window, operand 4, single buffered']
    #allocation13 [shape = 'u8[16384]{0}', space=vmem, size = 0x4000, scoped, tag = 'input window, operand 5, single buffered']
    #allocation14 [shape = 's32[1]{0}', space=sflag, size = 0x4, scoped, tag = 'scoped memory for transformer_forward.29']
    #allocation15 [shape = 'u8[512]{0}', space=vmem, size = 0x400, scoped, tag = 'input window, operand 6, single buffered']
    #allocation16 [shape = 'u8[4096]{0}', space=vmem, size = 0x1000, scoped, tag = 'output window, operand 0, single buffered']
    %12 = vsyncpa [#allocation5], 0
    %13 = vsyncpa [#allocation8], 0
    %14 = vsyncpa [#allocation11], 0
    %15 = vsyncpa [#allocation14], 0
    %16 = vsyncpa [#allocation6], 0
    // Predicated region
    $region2: #{transformer_forward.29} parent=1 // pred_check
      _
    $region3: #{transformer_forward.29} parent=1 // pred_check_branch
      %18 = sbr.rel (0) target = $region5
    $region4: #{transformer_forward.29} parent=1 // pred_region
      %s20 = ssub.s32 128, 128
      %21 = vsyncadd [#allocation5], %s20
      %s22 = sshll.u32 [#allocation4], 4
      %s23 = int_to_ptr.vmem [resolvable:$true] %s22
      %28 = dma.hbm_to_vmem [thread:$0]  %s0, 128, %s23, [#allocation5], 64, 64, 4
    $region5: #{transformer_forward.29} parent=1 // pred_fallthru
      _
    // Predicated region
    $region6: #{transformer_forward.29} parent=1 // pred_check
      _
    $region7: #{transformer_forward.29} parent=1 // pred_check_branch
      %30 = sbr.rel (0) target = $region9
    $region8: #{transformer_forward.29} parent=1 // pred_region
      %s32 = ssub.s32 16, 16
      %33 = vsyncadd [#allocation8], %s32
      %s35 = sshll.u32 [#allocation7], 4
      %s36 = int_to_ptr.vmem [resolvable:$true] %s35
      %38 = dma.hbm_to_vmem [thread:$0]  %s1, 16, %s36, [#allocation8]
    $region9: #{transformer_forward.29} parent=1 // pred_fallthru
      _
    // Predicated region
    $region10: #{transformer_forward.29} parent=1 // pred_check
      _
    $region11: #{transformer_forward.29} parent=1 // pred_check_branch
      %40 = sbr.rel (0) target = $region13
    $region12: #{transformer_forward.29} parent=1 // pred_region
      %s42 = ssub.s32 16, 16
      %43 = vsyncadd [#allocation8], %s42
      %s45 = sshll.u32 [#allocation9], 4
      %s46 = int_to_ptr.vmem [resolvable:$true] %s45
      %48 = dma.hbm_to_vmem [thread:$0]  %s2, 16, %s46, [#allocation8]
    $region13: #{transformer_forward.29} parent=1 // pred_fallthru
      _
    // Predicated region
    $region14: #{transformer_forward.29} parent=1 // pred_check
      _
    $region15: #{transformer_forward.29} parent=1 // pred_check_branch
      %50 = sbr.rel (0) target = $region17
    $region16: #{transformer_forward.29} parent=1 // pred_region
      %s52 = ssub.s32 256, 256
      %53 = vsyncadd [#allocation11], %s52
      %s54 = sshll.u32 [#allocation10], 4
      %s55 = int_to_ptr.vmem [resolvable:$true] %s54
      %60 = dma.hbm_to_vmem [thread:$0]  %s3, 256, %s55, [#allocation11], 64, 64, 4
    $region17: #{transformer_forward.29} parent=1 // pred_fallthru
      _
    // Predicated region
    $region18: #{transformer_forward.29} parent=1 // pred_check
      _
    $region19: #{transformer_forward.29} parent=1 // pred_check_branch
      %62 = sbr.rel (0) target = $region21
    $region20: #{transformer_forward.29} parent=1 // pred_region
      %s64 = ssub.s32 16, 16
      %65 = vsyncadd [#allocation11], %s64
      %s67 = sshll.u32 [#allocation12], 4
      %s68 = int_to_ptr.vmem [resolvable:$true] %s67
      %70 = dma.hbm_to_vmem [thread:$0]  %s4, 16, %s68, [#allocation11]
    $region21: #{transformer_forward.29} parent=1 // pred_fallthru
      _
    // Predicated region
    $region22: #{transformer_forward.29} parent=1 // pred_check
      _
    $region23: #{transformer_forward.29} parent=1 // pred_check_branch
      %72 = sbr.rel (0) target = $region25
    $region24: #{transformer_forward.29} parent=1 // pred_region
      %s74 = ssub.s32 512, 512
      %75 = vsyncadd [#allocation14], %s74
      %s76 = sshll.u32 [#allocation13], 4
      %s77 = int_to_ptr.vmem [resolvable:$true] %s76
      %82 = dma.hbm_to_vmem [thread:$0]  %s5, 512, %s77, [#allocation14], 64, 64, 4
    $region25: #{transformer_forward.29} parent=1 // pred_fallthru
      _
    // Predicated region
    $region26: #{transformer_forward.29} parent=1 // pred_check
      _
    $region27: #{transformer_forward.29} parent=1 // pred_check_branch
      %84 = sbr.rel (0) target = $region29
    $region28: #{transformer_forward.29} parent=1 // pred_region
      %s86 = ssub.s32 16, 16
      %87 = vsyncadd [#allocation14], %s86
      %s89 = sshll.u32 [#allocation15], 4
      %s90 = int_to_ptr.vmem [resolvable:$true] %s89
      %92 = dma.hbm_to_vmem [thread:$0]  %s6, 16, %s90, [#allocation14]
    $region29: #{transformer_forward.29} parent=1 // pred_fallthru
      _
    // Predicated region
    $region30: #{transformer_forward.29} parent=1 // pred_check
      _
    $region31: #{transformer_forward.29} parent=1 // pred_check_branch
      %94 = sbr.rel (0) target = $region33
    $region32: #{transformer_forward.29} parent=1 // pred_region
      %95 = dma.done [#allocation5], 128
    $region33: #{transformer_forward.29} parent=1 // pred_fallthru
      _
    // Predicated region
    $region34: #{transformer_forward.29} parent=1 // pred_check
      _
    $region35: #{transformer_forward.29} parent=1 // pred_check_branch
      %97 = sbr.rel (0) target = $region37
    $region36: #{transformer_forward.29} parent=1 // pred_region
      %98 = dma.done [#allocation8], 16
    $region37: #{transformer_forward.29} parent=1 // pred_fallthru
      _
    // Predicated region
    $region38: #{transformer_forward.29} parent=1 // pred_check
      _
    $region39: #{transformer_forward.29} parent=1 // pred_check_branch
      %100 = sbr.rel (0) target = $region41
    $region40: #{transformer_forward.29} parent=1 // pred_region
      %101 = dma.done [#allocation8], 16
    $region41: #{transformer_forward.29} parent=1 // pred_fallthru
      _
    // Predicated region
    $region42: #{transformer_forward.29} parent=1 // pred_check
      _
    $region43: #{transformer_forward.29} parent=1 // pred_check_branch
      %103 = sbr.rel (0) target = $region45
    $region44: #{transformer_forward.29} parent=1 // pred_region
      %104 = dma.done [#allocation11], 256
    $region45: #{transformer_forward.29} parent=1 // pred_fallthru
      _
    // Predicated region
    $region46: #{transformer_forward.29} parent=1 // pred_check
      _
    $region47: #{transformer_forward.29} parent=1 // pred_check_branch
      %106 = sbr.rel (0) target = $region49
    $region48: #{transformer_forward.29} parent=1 // pred_region
      %107 = dma.done [#allocation11], 16
    $region49: #{transformer_forward.29} parent=1 // pred_fallthru
      _
    // Predicated region
    $region50: #{transformer_forward.29} parent=1 // pred_check
      _
    $region51: #{transformer_forward.29} parent=1 // pred_check_branch
      %109 = sbr.rel (0) target = $region53
    $region52: #{transformer_forward.29} parent=1 // pred_region
      %110 = dma.done [#allocation14], 512
    $region53: #{transformer_forward.29} parent=1 // pred_fallthru
      _
    // Predicated region
    $region54: #{transformer_forward.29} parent=1 // pred_check
      _
    $region55: #{transformer_forward.29} parent=1 // pred_check_branch
      %112 = sbr.rel (0) target = $region57
    $region56: #{transformer_forward.29} parent=1 // pred_region
      %113 = dma.done [#allocation14], 16
    $region57: #{transformer_forward.29} parent=1 // pred_fallthru
      _
    %p115 = scmp.eq.s32.totalorder 0, 0
    // Predicated region
    $region58: #{transformer_forward.29} parent=1 // pred_check
      %p116 = pneg %p115
    $region59: #{transformer_forward.29} parent=1 // pred_check_branch
      %118 = sbr.rel (%p116) target = $region61
    $region60: #{transformer_forward.29} parent=1 // pred_region
      %v119 = vld [vmem:[#allocation4] sm:$0xf]
      %v120 = vld [vmem:[#allocation4 + $0x4] sm:$0xf]
      %v121 = vunpack.c.l.bf16 %v119
      %v122 = vunpack.c.l.bf16 %v120
      %vm123 = vcmask 261120
      %v124 = vsel %vm123, %v121, 0.0
      %125 = vadd.xlane.f32.xlu0 %v124
      %v126 = vpop.xlane.xlu0 %125
      %v127 = vsel %vm123, %v122, 0.0
      %128 = vadd.xlane.f32.xlu0 %v127
      %v129 = vpop.xlane.xlu0 %128
      %v130 = vrcp.pop 32.0
      %v131 = vmul.f32 %v126, %v130
      %v132 = vmul.f32 %v129, %v130
      %v133 = vsub.f32 %v121, %v131
      %v134 = vsub.f32 %v122, %v132
      %v135 = vmul.f32 %v133, %v133
      %v136 = vmul.f32 %v134, %v134
      %v137 = vsel %vm123, %v135, 0.0
      %138 = vadd.xlane.f32.xlu0 %v137
      %v139 = vpop.xlane.xlu0 %138
      %v140 = vsel %vm123, %v136, 0.0
      %141 = vadd.xlane.f32.xlu0 %v140
      %v142 = vpop.xlane.xlu0 %141
      %v143 = vmul.f32 %v139, %v130
      %v144 = vmul.f32 %v142, %v130
      %v145 = vadd.f32 %v143, 1e-05
      %v146 = vadd.f32 %v144, 1e-05
      %v147 = vrsqrt.pop %v145
      %v148 = vrsqrt.pop %v146
      %v149 = vmul.f32 %v133, %v147
      %v150 = vmul.f32 %v134, %v148
      %v151 = vld [vmem:[#allocation7] sm:$0x1]
      %v153 = vlaneseq
      %v154 = vshrl.u32 %v153, 7
      %v155 = vsub.s32 0, %v154
      %v156 = vrot.slane %v151, %v155
      %v158 = vmul.f32 %v149, %v156
      %v159 = vmul.f32 %v150, %v156
      %v160 = vld [vmem:[#allocation9] sm:$0x1]
      %v162 = vlaneseq
      %v163 = vshrl.u32 %v162, 7
      %v164 = vsub.s32 0, %v163
      %v165 = vrot.slane %v160, %v164
      %v167 = vadd.f32 %v158, %v165
      %v168 = vadd.f32 %v159, %v165
      %v169 = vpack.c.bf16 %v168, %v167
      %170 = vst.msk [vmem:[#allocation2] sm:$0xff] %vm123, %v169
      %171 = vst.msk [vmem:[#allocation3] sm:$0xff] %vm123, 0.0
      %172 = vst.msk [vmem:[#allocation3 + $0x8] sm:$0xff] %vm123, 0.0
    $region61: #{transformer_forward.29} parent=1 // pred_fallthru
      _
    %v173 = vld [vmem:[#allocation2] sm:$0xff]
    %v174 = vld [vmem:[#allocation10] sm:$0xf]
    %v175 = vld [vmem:[#allocation10 + $0x4] sm:$0xf]
    %v176 = vld [vmem:[#allocation10 + $0x8] sm:$0xf]
    %v177 = vld [vmem:[#allocation10 + $0xc] sm:$0xf]
    %v178 = vld [vmem:[#allocation12] sm:$0x1]
    %v180 = vlaneseq
    %v181 = vshrl.u32 %v180, 7
    %v182 = vsub.s32 0, %v181
    %v183 = vrot.slane %v178, %v182
    %v189 = vunpack.c.l.b16 %v174
    %v190 = vunpack.c.l.b16 %v175
    %v191 = vunpack.c.l.b16 %v176
    %v192 = vunpack.c.l.b16 %v177
    %v193 = vpack.c.b16 %v190, %v189
    %v194 = vpack.c.b16 %v192, %v191
    %vm197 = vcmask 261120
    %v199 = vsel %vm197, %v173, 0
    %201 = vmatprep.subr.bf16.mxu0 0
    %202 = vmatpush1.bf16.msra.mxu0 %v193
    %203 = vmatprep.subr.bf16.mxu0 0
    %204 = vmatpush1.bf16.msra.mxu0 %v194
    %205 = vmatprep.subr.bf16.mxu0 0
    %206 = vmatpush1.bf16.msra.mxu0 0
    %207 = vmatprep.subr.bf16.mxu0 0
    %208 = vmatpush1.bf16.msra.mxu0 0
    %209 = vmatprep.subr.bf16.mxu0 0
    %210 = vmatpush1.bf16.msra.mxu0 0
    %211 = vmatprep.subr.bf16.mxu0 0
    %212 = vmatpush1.bf16.msra.mxu0 0
    %213 = vmatprep.subr.bf16.mxu0 0
    %214 = vmatpush1.bf16.msra.mxu0 0
    %215 = vmatprep.subr.bf16.mxu0 0
    %216 = vmatpush1.bf16.msra.mxu0 0
    %217 = vmatprep.subr.bf16.mxu0 0
    %218 = vmatpush1.bf16.msra.mxu0 0
    %219 = vmatprep.subr.bf16.mxu0 0
    %220 = vmatpush1.bf16.msra.mxu0 0
    %221 = vmatprep.subr.bf16.mxu0 0
    %222 = vmatpush1.bf16.msra.mxu0 0
    %223 = vmatprep.subr.bf16.mxu0 0
    %224 = vmatpush1.bf16.msra.mxu0 0
    %225 = vmatprep.subr.bf16.mxu0 0
    %226 = vmatpush1.bf16.msra.mxu0 0
    %227 = vmatprep.subr.bf16.mxu0 0
    %228 = vmatpush1.bf16.msra.mxu0 0
    %229 = vmatprep.subr.bf16.mxu0 0
    %230 = vmatpush1.bf16.msra.mxu0 0
    %231 = vmatprep.subr.bf16.mxu0 0
    %232 = vmatpush1.bf16.msra.mxu0 0
    %233 = vmatprep.mubr.bf16.mxu0 0
    %234 = vmatmul.mubr.bf16.gmra.mrb[0].mxu0 %v199
    %v235 = vpop.f32.mrb[0].mxu0
    %v236 = vadd.f32 %v183, %v235
    %v237 = vpop.f32.mrb[0].mxu0
    %v238 = vpop.f32.mrb[0].mxu0
    %v239 = vadd.f32 %v183, %v238
    %v240 = vpop.f32.mrb[0].mxu0
    %241 = vdwg.mxu0
    %v242 = vmax.f32 %v236, 0.0
    %v243 = vmax.f32 %v239, 0.0
    %v244 = vld [vmem:[#allocation3] sm:$0xff]
    %v245 = vld [vmem:[#allocation3 + $0x8] sm:$0xff]
    %v246 = vpack.c.bf16 %v243, %v242
    %v247 = vld [vmem:[#allocation13] sm:$0xf]
    %v248 = vld [vmem:[#allocation13 + $0x4] sm:$0xf]
    %v249 = vld [vmem:[#allocation13 + $0x8] sm:$0xf]
    %v250 = vld [vmem:[#allocation13 + $0xc] sm:$0xf]
    %v251 = vld [vmem:[#allocation13 + $0x10] sm:$0xf]
    %v252 = vld [vmem:[#allocation13 + $0x14] sm:$0xf]
    %v253 = vld [vmem:[#allocation13 + $0x18] sm:$0xf]
    %v254 = vld [vmem:[#allocation13 + $0x1c] sm:$0xf]
    %v263 = vunpack.c.l.b16 %v247
    %v264 = vunpack.c.l.b16 %v248
    %v265 = vunpack.c.l.b16 %v249
    %v266 = vunpack.c.l.b16 %v250
    %v267 = vunpack.c.l.b16 %v251
    %v268 = vunpack.c.l.b16 %v252
    %v269 = vunpack.c.l.b16 %v253
    %v270 = vunpack.c.l.b16 %v254
    %v271 = vpack.c.b16 %v264, %v263
    %v272 = vpack.c.b16 %v266, %v265
    %v273 = vpack.c.b16 %v268, %v267
    %v274 = vpack.c.b16 %v270, %v269
    %vm279 = vcmask 523264
    %v281 = vsel %vm279, %v246, 0
    %283 = vmatprep.subr.bf16.mxu0 0
    %284 = vmatpush1.bf16.msra.mxu0 %v271
    %285 = vmatprep.subr.bf16.mxu0 0
    %286 = vmatpush1.bf16.msra.mxu0 %v272
    %287 = vmatprep.subr.bf16.mxu0 0
    %288 = vmatpush1.bf16.msra.mxu0 %v273
    %289 = vmatprep.subr.bf16.mxu0 0
    %290 = vmatpush1.bf16.msra.mxu0 %v274
    %291 = vmatprep.subr.bf16.mxu0 0
    %292 = vmatpush1.bf16.msra.mxu0 0
    %293 = vmatprep.subr.bf16.mxu0 0
    %294 = vmatpush1.bf16.msra.mxu0 0
    %295 = vmatprep.subr.bf16.mxu0 0
    %296 = vmatpush1.bf16.msra.mxu0 0
    %297 = vmatprep.subr.bf16.mxu0 0
    %298 = vmatpush1.bf16.msra.mxu0 0
    %299 = vmatprep.subr.bf16.mxu0 0
    %300 = vmatpush1.bf16.msra.mxu0 0
    %301 = vmatprep.subr.bf16.mxu0 0
    %302 = vmatpush1.bf16.msra.mxu0 0
    %303 = vmatprep.subr.bf16.mxu0 0
    %304 = vmatpush1.bf16.msra.mxu0 0
    %305 = vmatprep.subr.bf16.mxu0 0
    %306 = vmatpush1.bf16.msra.mxu0 0
    %307 = vmatprep.subr.bf16.mxu0 0
    %308 = vmatpush1.bf16.msra.mxu0 0
    %309 = vmatprep.subr.bf16.mxu0 0
    %310 = vmatpush1.bf16.msra.mxu0 0
    %311 = vmatprep.subr.bf16.mxu0 0
    %312 = vmatpush1.bf16.msra.mxu0 0
    %313 = vmatprep.subr.bf16.mxu0 0
    %314 = vmatpush1.bf16.msra.mxu0 0
    %315 = vmatprep.mubr.bf16.mxu0 0
    %316 = vmatmul.mubr.bf16.gmra.mrb[0].mxu0 %v281
    %v317 = vpop.f32.mrb[0].mxu0
    %v318 = vadd.f32 0.0, %v317
    %v319 = vpop.f32.mrb[0].mxu0
    %v320 = vpop.f32.mrb[0].mxu0
    %v321 = vadd.f32 0.0, %v320
    %v322 = vpop.f32.mrb[0].mxu0
    %323 = vdwg.mxu0
    %v324 = vadd.f32 %v244, %v318
    %v325 = vadd.f32 %v245, %v321
    %326 = vst.msk [vmem:[#allocation3] sm:$0xff] %vm197, %v324
    %327 = vst.msk [vmem:[#allocation3 + $0x8] sm:$0xff] %vm197, %v325
    // Predicated region
    $region62: #{transformer_forward.29} parent=1 // pred_check
      %p328 = pneg %p115
    $region63: #{transformer_forward.29} parent=1 // pred_check_branch
      %330 = sbr.rel (%p328) target = $region65
    $region64: #{transformer_forward.29} parent=1 // pred_region
      %v331 = vld [vmem:[#allocation4] sm:$0xf]
      %v332 = vld [vmem:[#allocation4 + $0x4] sm:$0xf]
      %v333 = vunpack.c.l.bf16 %v331
      %v334 = vunpack.c.l.bf16 %v332
      %v335 = vld [vmem:[#allocation3] sm:$0xff]
      %v336 = vld [vmem:[#allocation3 + $0x8] sm:$0xff]
      %v337 = vadd.f32 %v333, %v335
      %v338 = vadd.f32 %v334, %v336
      %v339 = vld [vmem:[#allocation15] sm:$0x1]
      %v341 = vlaneseq
      %v342 = vshrl.u32 %v341, 7
      %v343 = vsub.s32 0, %v342
      %v344 = vrot.slane %v339, %v343
      %v346 = vadd.f32 %v337, %v344
      %v347 = vadd.f32 %v338, %v344
      %v348 = vpack.c.bf16 %v347, %v346
      %v350 = vunpack.c.l.b16 %v348
      %v351 = vunpack.c.h.b16 %v348
      %v352 = vpack.c.b16 %v350, %v350
      %v353 = vpack.c.b16 %v351, %v351
      %vm356 = vcmask 257024
      %357 = vst.msk [vmem:[#allocation16] sm:$0xf] %vm356, %v352
      %358 = vst.msk [vmem:[#allocation16 + $0x4] sm:$0xf] %vm356, %v353
    $region65: #{transformer_forward.29} parent=1 // pred_fallthru
      _
    // Predicated region
    $region66: #{transformer_forward.29} parent=1 // pred_check
      _
    $region67: #{transformer_forward.29} parent=1 // pred_check_branch
      %360 = sbr.rel (0) target = $region69
    $region68: #{transformer_forward.29} parent=1 // pred_region
      %s362 = ssub.s32 128, 128
      %363 = vsyncadd [#allocation6], %s362
      %s364 = sshll.u32 [#allocation16], 4
      %s365 = int_to_ptr.vmem [resolvable:$true] %s364
      %370 = dma.vmem_to_hbm [thread:$0]  %s365, 128, %s7, [#allocation6], 64, 64, 4
    $region69: #{transformer_forward.29} parent=1 // pred_fallthru
      _
    // Predicated region
    $region70: #{transformer_forward.29} parent=1 // pred_check
      _
    $region71: #{transformer_forward.29} parent=1 // pred_check_branch
      %372 = sbr.rel (0) target = $region73
    $region72: #{transformer_forward.29} parent=1 // pred_region
      %373 = dma.done [#allocation6], 128
    $region73: #{transformer_forward.29} parent=1 // pred_fallthru
      _
    %374 = vsyncpa [#allocation5], 1
    %375 = vsyncpa [#allocation8], 1
    %376 = vsyncpa [#allocation11], 1
    %377 = vsyncpa [#allocation14], 1
    %378 = vsyncpa [#allocation6], 1

// kernel: transformer_forward.34
$region0: #{transformer_forward.34}
  #allocation0 [shape = 'u32[]', space=smem, size = 0x4, offset = 0x4, fixed_abs, tag = 'smem constant byte address 0x4 - core index']
  #allocation1 [shape = 'u32[144,128]{1,0:T(1,128)}', space=vmem, size = 0x12000, scoped, tag = 'internal scratch']
  %s0 = inlined_call_operand.hbm [shape: bf16[16,32], index: 0, kind: input, shape index: {}]
  %s1 = inlined_call_operand.hbm [shape: f32[1,32], index: 1, kind: input, shape index: {}]
  %s2 = inlined_call_operand.hbm [shape: f32[1,32], index: 2, kind: input, shape index: {}]
  %s3 = inlined_call_operand.hbm [shape: f32[16,32], index: 3, kind: output, shape index: {}]
  %s4 = sld [smem:[#allocation0]]
  $region34: #{transformer_forward.34} parent=0
    _
  %s6 = ssub.s32 1, %s4
  %s7 = scalar_select 0, %s6, %s4
  $region1: #{transformer_forward.34} parent=0
    #allocation2 [shape = 'u8[4096]{0}', space=vmem, size = 0x1000, scoped, tag = 'input window, operand 0, single buffered']
    #allocation3 [shape = 's32[1]{0}', space=sflag, size = 0x4, scoped, tag = 'scoped memory for transformer_forward.34']
    #allocation4 [shape = 's32[1]{0}', space=sflag, size = 0x4, scoped, tag = 'scoped memory for transformer_forward.34']
    #allocation5 [shape = 'u8[512]{0}', space=vmem, size = 0x400, scoped, tag = 'input window, operand 1, single buffered']
    #allocation6 [shape = 's32[1]{0}', space=sflag, size = 0x4, scoped, tag = 'scoped memory for transformer_forward.34']
    #allocation7 [shape = 'u8[512]{0}', space=vmem, size = 0x400, scoped, tag = 'input window, operand 2, single buffered']
    #allocation8 [shape = 'u8[8192]{0}', space=vmem, size = 0x2000, scoped, tag = 'output window, operand 0, single buffered']
    %8 = vsyncpa [#allocation3], 0
    %9 = vsyncpa [#allocation6], 0
    %10 = vsyncpa [#allocation4], 0
    // Predicated region
    $region2: #{transformer_forward.34} parent=1 // pred_check
      _
    $region3: #{transformer_forward.34} parent=1 // pred_check_branch
      %12 = sbr.rel (0) target = $region5
    $region4: #{transformer_forward.34} parent=1 // pred_region
      %s14 = ssub.s32 128, 128
      %15 = vsyncadd [#allocation3], %s14
      %s16 = sshll.u32 [#allocation2], 4
      %s17 = int_to_ptr.vmem [resolvable:$true] %s16
      %22 = dma.hbm_to_vmem [thread:$0]  %s0, 128, %s17, [#allocation3], 64, 64, 4
    $region5: #{transformer_forward.34} parent=1 // pred_fallthru
      _
    // Predicated region
    $region6: #{transformer_forward.34} parent=1 // pred_check
      _
    $region7: #{transformer_forward.34} parent=1 // pred_check_branch
      %24 = sbr.rel (0) target = $region9
    $region8: #{transformer_forward.34} parent=1 // pred_region
      %s26 = ssub.s32 16, 16
      %27 = vsyncadd [#allocation6], %s26
      %s29 = sshll.u32 [#allocation5], 4
      %s30 = int_to_ptr.vmem [resolvable:$true] %s29
      %32 = dma.hbm_to_vmem [thread:$0]  %s1, 16, %s30, [#allocation6]
    $region9: #{transformer_forward.34} parent=1 // pred_fallthru
      _
    // Predicated region
    $region10: #{transformer_forward.34} parent=1 // pred_check
      _
    $region11: #{transformer_forward.34} parent=1 // pred_check_branch
      %34 = sbr.rel (0) target = $region13
    $region12: #{transformer_forward.34} parent=1 // pred_region
      %s36 = ssub.s32 16, 16
      %37 = vsyncadd [#allocation6], %s36
      %s39 = sshll.u32 [#allocation7], 4
      %s40 = int_to_ptr.vmem [resolvable:$true] %s39
      %42 = dma.hbm_to_vmem [thread:$0]  %s2, 16, %s40, [#allocation6]
    $region13: #{transformer_forward.34} parent=1 // pred_fallthru
      _
    // Predicated region
    $region14: #{transformer_forward.34} parent=1 // pred_check
      _
    $region15: #{transformer_forward.34} parent=1 // pred_check_branch
      %44 = sbr.rel (0) target = $region17
    $region16: #{transformer_forward.34} parent=1 // pred_region
      %45 = dma.done [#allocation3], 128
    $region17: #{transformer_forward.34} parent=1 // pred_fallthru
      _
    // Predicated region
    $region18: #{transformer_forward.34} parent=1 // pred_check
      _
    $region19: #{transformer_forward.34} parent=1 // pred_check_branch
      %47 = sbr.rel (0) target = $region21
    $region20: #{transformer_forward.34} parent=1 // pred_region
      %48 = dma.done [#allocation6], 16
    $region21: #{transformer_forward.34} parent=1 // pred_fallthru
      _
    // Predicated region
    $region22: #{transformer_forward.34} parent=1 // pred_check
      _
    $region23: #{transformer_forward.34} parent=1 // pred_check_branch
      %50 = sbr.rel (0) target = $region25
    $region24: #{transformer_forward.34} parent=1 // pred_region
      %51 = dma.done [#allocation6], 16
    $region25: #{transformer_forward.34} parent=1 // pred_fallthru
      _
    %v52 = vld [vmem:[#allocation2] sm:$0xf]
    %v53 = vld [vmem:[#allocation2 + $0x4] sm:$0xf]
    %v54 = vunpack.c.l.bf16 %v52
    %v55 = vunpack.c.l.bf16 %v53
    %vm56 = vcmask 261120
    %v57 = vsel %vm56, %v54, 0.0
    %58 = vadd.xlane.f32.xlu0 %v57
    %v59 = vpop.xlane.xlu0 %58
    %v60 = vsel %vm56, %v55, 0.0
    %61 = vadd.xlane.f32.xlu0 %v60
    %v62 = vpop.xlane.xlu0 %61
    %v63 = vrcp.pop 32.0
    %v64 = vmul.f32 %v59, %v63
    %v65 = vmul.f32 %v62, %v63
    %v66 = vsub.f32 %v54, %v64
    %v67 = vsub.f32 %v55, %v65
    %v68 = vmul.f32 %v66, %v66
    %v69 = vmul.f32 %v67, %v67
    %v70 = vsel %vm56, %v68, 0.0
    %71 = vadd.xlane.f32.xlu0 %v70
    %v72 = vpop.xlane.xlu0 %71
    %v73 = vsel %vm56, %v69, 0.0
    %74 = vadd.xlane.f32.xlu0 %v73
    %v75 = vpop.xlane.xlu0 %74
    %v76 = vmul.f32 %v72, %v63
    %v77 = vmul.f32 %v75, %v63
    %v78 = vadd.f32 %v76, 1e-05
    %v79 = vadd.f32 %v77, 1e-05
    %v80 = vrsqrt.pop %v78
    %v81 = vrsqrt.pop %v79
    %v82 = vmul.f32 %v66, %v80
    %v83 = vmul.f32 %v67, %v81
    %v84 = vld [vmem:[#allocation5] sm:$0x1]
    %v86 = vlaneseq
    %v87 = vshrl.u32 %v86, 7
    %v88 = vsub.s32 0, %v87
    %v89 = vrot.slane %v84, %v88
    %v91 = vmul.f32 %v82, %v89
    %v92 = vmul.f32 %v83, %v89
    %v93 = vld [vmem:[#allocation7] sm:$0x1]
    %v95 = vlaneseq
    %v96 = vshrl.u32 %v95, 7
    %v97 = vsub.s32 0, %v96
    %v98 = vrot.slane %v93, %v97
    %v100 = vadd.f32 %v91, %v98
    %v101 = vadd.f32 %v92, %v98
    %102 = vst.msk [vmem:[#allocation8] sm:$0xff] %vm56, %v100
    %103 = vst.msk [vmem:[#allocation8 + $0x8] sm:$0xff] %vm56, %v101
    // Predicated region
    $region26: #{transformer_forward.34} parent=1 // pred_check
      _
    $region27: #{transformer_forward.34} parent=1 // pred_check_branch
      %105 = sbr.rel (0) target = $region29
    $region28: #{transformer_forward.34} parent=1 // pred_region
      %s107 = ssub.s32 256, 256
      %108 = vsyncadd [#allocation4], %s107
      %s109 = sshll.u32 [#allocation8], 4
      %s110 = int_to_ptr.vmem [resolvable:$true] %s109
      %115 = dma.vmem_to_hbm [thread:$0]  %s110, 256, %s3, [#allocation4], 128, 128, 8
    $region29: #{transformer_forward.34} parent=1 // pred_fallthru
      _
    // Predicated region
    $region30: #{transformer_forward.34} parent=1 // pred_check
      _
    $region31: #{transformer_forward.34} parent=1 // pred_check_branch
      %117 = sbr.rel (0) target = $region33
    $region32: #{transformer_forward.34} parent=1 // pred_region
      %118 = dma.done [#allocation4], 256
    $region33: #{transformer_forward.34} parent=1 // pred_fallthru
      _
    %119 = vsyncpa [#allocation3], 1
    %120 = vsyncpa [#allocation6], 1
    %121 = vsyncpa [#allocation4], 1

// kernel: transformer_forward.39
$region0: #{transformer_forward.39}
  #allocation0 [shape = 'u32[]', space=smem, size = 0x4, offset = 0x4, fixed_abs, tag = 'smem constant byte address 0x4 - core index']
  #allocation1 [shape = 'u32[144,128]{1,0:T(1,128)}', space=vmem, size = 0x12000, scoped, tag = 'internal scratch']
  %s0 = inlined_call_operand.hbm [shape: f32[16,32], index: 0, kind: input, shape index: {}]
  %s1 = inlined_call_operand.hbm [shape: bf16[32,64], index: 1, kind: input, shape index: {}]
  %s2 = inlined_call_operand.hbm [shape: f32[1,64], index: 2, kind: input, shape index: {}]
  %s3 = inlined_call_operand.hbm [shape: bf16[16,32], index: 3, kind: output, shape index: {0}]
  %s4 = inlined_call_operand.hbm [shape: bf16[16,32], index: 4, kind: output, shape index: {1}]
  %5 = xla_tuple %s3, %s4
  %s6 = sld [smem:[#allocation0]]
  $region42: #{transformer_forward.39} parent=0
    _
  %s8 = ssub.s32 1, %s6
  %s9 = scalar_select 0, %s8, %s6
  $region1: #{transformer_forward.39} parent=0
    #allocation2 [shape = 'u8[8192]{0}', space=vmem, size = 0x2000, scoped, tag = 'input window, operand 0, single buffered']
    #allocation3 [shape = 's32[1]{0}', space=sflag, size = 0x4, scoped, tag = 'scoped memory for transformer_forward.39']
    #allocation4 [shape = 's32[1]{0}', space=sflag, size = 0x4, scoped, tag = 'scoped memory for transformer_forward.39']
    #allocation5 [shape = 'u8[8192]{0}', space=vmem, size = 0x2000, scoped, tag = 'input window, operand 1, single buffered']
    #allocation6 [shape = 's32[1]{0}', space=sflag, size = 0x4, scoped, tag = 'scoped memory for transformer_forward.39']
    #allocation7 [shape = 'u8[512]{0}', space=vmem, size = 0x400, scoped, tag = 'input window, operand 2, single buffered']
    #allocation8 [shape = 'u8[4096]{0}', space=vmem, size = 0x1000, scoped, tag = 'output window, operand 0, single buffered']
    #allocation9 [shape = 'u8[4096]{0}', space=vmem, size = 0x1000, scoped, tag = 'output window, operand 1, single buffered']
    #allocation10 [shape = 's32[1]{0}', space=sflag, size = 0x4, scoped, tag = 'scoped memory for transformer_forward.39']
    %10 = vsyncpa [#allocation3], 0
    %11 = vsyncpa [#allocation6], 0
    %12 = vsyncpa [#allocation4], 0
    %13 = vsyncpa [#allocation10], 0
    // Predicated region
    $region2: #{transformer_forward.39} parent=1 // pred_check
      _
    $region3: #{transformer_forward.39} parent=1 // pred_check_branch
      %15 = sbr.rel (0) target = $region5
    $region4: #{transformer_forward.39} parent=1 // pred_region
      %s17 = ssub.s32 256, 256
      %18 = vsyncadd [#allocation3], %s17
      %s19 = sshll.u32 [#allocation2], 4
      %s20 = int_to_ptr.vmem [resolvable:$true] %s19
      %25 = dma.hbm_to_vmem [thread:$0]  %s0, 256, %s20, [#allocation3], 128, 128, 8
    $region5: #{transformer_forward.39} parent=1 // pred_fallthru
      _
    // Predicated region
    $region6: #{transformer_forward.39} parent=1 // pred_check
      _
    $region7: #{transformer_forward.39} parent=1 // pred_check_branch
      %27 = sbr.rel (0) target = $region9
    $region8: #{transformer_forward.39} parent=1 // pred_region
      %s29 = ssub.s32 256, 256
      %30 = vsyncadd [#allocation6], %s29
      %s31 = sshll.u32 [#allocation5], 4
      %s32 = int_to_ptr.vmem [resolvable:$true] %s31
      %37 = dma.hbm_to_vmem [thread:$0]  %s1, 256, %s32, [#allocation6], 64, 64, 4
    $region9: #{transformer_forward.39} parent=1 // pred_fallthru
      _
    // Predicated region
    $region10: #{transformer_forward.39} parent=1 // pred_check
      _
    $region11: #{transformer_forward.39} parent=1 // pred_check_branch
      %39 = sbr.rel (0) target = $region13
    $region12: #{transformer_forward.39} parent=1 // pred_region
      %s41 = ssub.s32 16, 16
      %42 = vsyncadd [#allocation6], %s41
      %s44 = sshll.u32 [#allocation7], 4
      %s45 = int_to_ptr.vmem [resolvable:$true] %s44
      %47 = dma.hbm_to_vmem [thread:$0]  %s2, 16, %s45, [#allocation6]
    $region13: #{transformer_forward.39} parent=1 // pred_fallthru
      _
    // Predicated region
    $region14: #{transformer_forward.39} parent=1 // pred_check
      _
    $region15: #{transformer_forward.39} parent=1 // pred_check_branch
      %49 = sbr.rel (0) target = $region17
    $region16: #{transformer_forward.39} parent=1 // pred_region
      %50 = dma.done [#allocation3], 256
    $region17: #{transformer_forward.39} parent=1 // pred_fallthru
      _
    // Predicated region
    $region18: #{transformer_forward.39} parent=1 // pred_check
      _
    $region19: #{transformer_forward.39} parent=1 // pred_check_branch
      %52 = sbr.rel (0) target = $region21
    $region20: #{transformer_forward.39} parent=1 // pred_region
      %53 = dma.done [#allocation6], 256
    $region21: #{transformer_forward.39} parent=1 // pred_fallthru
      _
    // Predicated region
    $region22: #{transformer_forward.39} parent=1 // pred_check
      _
    $region23: #{transformer_forward.39} parent=1 // pred_check_branch
      %55 = sbr.rel (0) target = $region25
    $region24: #{transformer_forward.39} parent=1 // pred_region
      %56 = dma.done [#allocation6], 16
    $region25: #{transformer_forward.39} parent=1 // pred_fallthru
      _
    %v58 = vld [vmem:[#allocation2] sm:$0xff]
    %v59 = vld [vmem:[#allocation2 + $0x8] sm:$0xff]
    %v60 = vpack.c.bf16 %v59, %v58
    %v61 = vld [vmem:[#allocation5] sm:$0xf]
    %v62 = vld [vmem:[#allocation5 + $0x4] sm:$0xf]
    %v63 = vld [vmem:[#allocation5 + $0x8] sm:$0xf]
    %v64 = vld [vmem:[#allocation5 + $0xc] sm:$0xf]
    %v65 = vld [vmem:[#allocation7] sm:$0x1]
    %v67 = vlaneseq
    %v68 = vshrl.u32 %v67, 7
    %v69 = vsub.s32 0, %v68
    %v70 = vrot.slane %v65, %v69
    %v76 = vunpack.c.l.b16 %v61
    %v77 = vunpack.c.l.b16 %v62
    %v78 = vunpack.c.l.b16 %v63
    %v79 = vunpack.c.l.b16 %v64
    %v80 = vpack.c.b16 %v77, %v76
    %v81 = vpack.c.b16 %v79, %v78
    %vm84 = vcmask 261120
    %v86 = vsel %vm84, %v60, 0
    %88 = vmatprep.subr.bf16.mxu0 0
    %89 = vmatpush1.bf16.msra.mxu0 %v80
    %90 = vmatprep.subr.bf16.mxu0 0
    %91 = vmatpush1.bf16.msra.mxu0 %v81
    %92 = vmatprep.subr.bf16.mxu0 0
    %93 = vmatpush1.bf16.msra.mxu0 0
    %94 = vmatprep.subr.bf16.mxu0 0
    %95 = vmatpush1.bf16.msra.mxu0 0
    %96 = vmatprep.subr.bf16.mxu0 0
    %97 = vmatpush1.bf16.msra.mxu0 0
    %98 = vmatprep.subr.bf16.mxu0 0
    %99 = vmatpush1.bf16.msra.mxu0 0
    %100 = vmatprep.subr.bf16.mxu0 0
    %101 = vmatpush1.bf16.msra.mxu0 0
    %102 = vmatprep.subr.bf16.mxu0 0
    %103 = vmatpush1.bf16.msra.mxu0 0
    %104 = vmatprep.subr.bf16.mxu0 0
    %105 = vmatpush1.bf16.msra.mxu0 0
    %106 = vmatprep.subr.bf16.mxu0 0
    %107 = vmatpush1.bf16.msra.mxu0 0
    %108 = vmatprep.subr.bf16.mxu0 0
    %109 = vmatpush1.bf16.msra.mxu0 0
    %110 = vmatprep.subr.bf16.mxu0 0
    %111 = vmatpush1.bf16.msra.mxu0 0
    %112 = vmatprep.subr.bf16.mxu0 0
    %113 = vmatpush1.bf16.msra.mxu0 0
    %114 = vmatprep.subr.bf16.mxu0 0
    %115 = vmatpush1.bf16.msra.mxu0 0
    %116 = vmatprep.subr.bf16.mxu0 0
    %117 = vmatpush1.bf16.msra.mxu0 0
    %118 = vmatprep.subr.bf16.mxu0 0
    %119 = vmatpush1.bf16.msra.mxu0 0
    %120 = vmatprep.mubr.bf16.mxu0 0
    %121 = vmatmul.mubr.bf16.gmra.mrb[0].mxu0 %v86
    %v122 = vpop.f32.mrb[0].mxu0
    %v123 = vadd.f32 %v70, %v122
    %v124 = vpop.f32.mrb[0].mxu0
    %v125 = vpop.f32.mrb[0].mxu0
    %v126 = vadd.f32 %v70, %v125
    %v127 = vpop.f32.mrb[0].mxu0
    %128 = vdwg.mxu0
    %v129 = vpack.c.bf16 %v126, %v123
    %v131 = vunpack.c.l.b16 %v129
    %v132 = vunpack.c.h.b16 %v129
    %v133 = vpack.c.b16 %v131, %v131
    %v134 = vpack.c.b16 %v132, %v132
    %vm137 = vcmask 257024
    %138 = vst.msk [vmem:[#allocation8] sm:$0xf] %vm137, %v133
    %139 = vst.msk [vmem:[#allocation8 + $0x4] sm:$0xf] %vm137, %v134
    %140 = vrot.lane.b32.xlu0 %v133, 96
    %v141 = vpop.permute.xlu0 %140
    %142 = vrot.lane.b32.xlu0 %v134, 96
    %v143 = vpop.permute.xlu0 %142
    %146 = vst.msk [vmem:[#allocation9] sm:$0xf] %vm137, %v141
    %147 = vst.msk [vmem:[#allocation9 + $0x4] sm:$0xf] %vm137, %v143
    // Predicated region
    $region26: #{transformer_forward.39} parent=1 // pred_check
      _
    $region27: #{transformer_forward.39} parent=1 // pred_check_branch
      %149 = sbr.rel (0) target = $region29
    $region28: #{transformer_forward.39} parent=1 // pred_region
      %s151 = ssub.s32 128, 128
      %152 = vsyncadd [#allocation4], %s151
      %s153 = sshll.u32 [#allocation8], 4
      %s154 = int_to_ptr.vmem [resolvable:$true] %s153
      %159 = dma.vmem_to_hbm [thread:$0]  %s154, 128, %s3, [#allocation4], 64, 64, 4
    $region29: #{transformer_forward.39} parent=1 // pred_fallthru
      _
    // Predicated region
    $region30: #{transformer_forward.39} parent=1 // pred_check
      _
    $region31: #{transformer_forward.39} parent=1 // pred_check_branch
      %161 = sbr.rel (0) target = $region33
    $region32: #{transformer_forward.39} parent=1 // pred_region
      %s163 = ssub.s32 128, 128
      %164 = vsyncadd [#allocation10], %s163
      %s165 = sshll.u32 [#allocation9], 4
      %s166 = int_to_ptr.vmem [resolvable:$true] %s165
      %171 = dma.vmem_to_hbm [thread:$0]  %s166, 128, %s4, [#allocation10], 64, 64, 4
    $region33: #{transformer_forward.39} parent=1 // pred_fallthru
      _
    // Predicated region
    $region34: #{transformer_forward.39} parent=1 // pred_check
      _
    $region35: #{transformer_forward.39} parent=1 // pred_check_branch
      %173 = sbr.rel (0) target = $region37
    $region36: #{transformer_forward.39} parent=1 // pred_region
      %174 = dma.done [#allocation4], 128
    $region37: #{transformer_forward.39} parent=1 // pred_fallthru
      _
    // Predicated region
    $region38: #{transformer_forward.39} parent=1 // pred_check
      _
    $region39: #{transformer_forward.39} parent=1 // pred_check_branch
      %176 = sbr.rel (0) target = $region41
    $region40: #{transformer_forward.39} parent=1 // pred_region
      %177 = dma.done [#allocation10], 128
    $region41: #{transformer_forward.39} parent=1 // pred_fallthru
      _
    %178 = vsyncpa [#allocation3], 1
    %179 = vsyncpa [#allocation6], 1
    %180 = vsyncpa [#allocation4], 1
    %181 = vsyncpa [#allocation10], 1

// kernel: transformer_forward.38
$region0: #{transformer_forward.38}
  #allocation0 [shape = 'u32[]', space=smem, size = 0x4, offset = 0x4, fixed_abs, tag = 'smem constant byte address 0x4 - core index']
  #allocation1 [shape = 'u32[144,128]{1,0:T(1,128)}', space=vmem, size = 0x12000, scoped, tag = 'internal scratch']
  %s0 = inlined_call_operand.hbm [shape: bf16[16,32], index: 0, kind: input, shape index: {}]
  %s1 = inlined_call_operand.hbm [shape: f32[1,32], index: 1, kind: input, shape index: {}]
  %s2 = inlined_call_operand.hbm [shape: f32[1,32], index: 2, kind: input, shape index: {}]
  %s3 = inlined_call_operand.hbm [shape: bf16[32,32], index: 3, kind: input, shape index: {}]
  %s4 = inlined_call_operand.hbm [shape: f32[1,32], index: 4, kind: input, shape index: {}]
  %s5 = inlined_call_operand.hbm [shape: bf16[16,32], index: 5, kind: output, shape index: {}]
  %s6 = sld [smem:[#allocation0]]
  $region50: #{transformer_forward.38} parent=0
    _
  %s8 = ssub.s32 1, %s6
  %s9 = scalar_select 0, %s8, %s6
  $region1: #{transformer_forward.38} parent=0
    #allocation2 [shape = 'u8[4096]{0}', space=vmem, size = 0x1000, scoped, tag = 'input window, operand 0, single buffered']
    #allocation3 [shape = 's32[1]{0}', space=sflag, size = 0x4, scoped, tag = 'scoped memory for transformer_forward.38']
    #allocation4 [shape = 's32[1]{0}', space=sflag, size = 0x4, scoped, tag = 'scoped memory for transformer_forward.38']
    #allocation5 [shape = 'u8[512]{0}', space=vmem, size = 0x400, scoped, tag = 'input window, operand 1, single buffered']
    #allocation6 [shape = 's32[1]{0}', space=sflag, size = 0x4, scoped, tag = 'scoped memory for transformer_forward.38']
    #allocation7 [shape = 'u8[512]{0}', space=vmem, size = 0x400, scoped, tag = 'input window, operand 2, single buffered']
    #allocation8 [shape = 'u8[8192]{0}', space=vmem, size = 0x2000, scoped, tag = 'input window, operand 3, single buffered']
    #allocation9 [shape = 's32[1]{0}', space=sflag, size = 0x4, scoped, tag = 'scoped memory for transformer_forward.38']
    #allocation10 [shape = 'u8[512]{0}', space=vmem, size = 0x400, scoped, tag = 'input window, operand 4, single buffered']
    #allocation11 [shape = 'u8[4096]{0}', space=vmem, size = 0x1000, scoped, tag = 'output window, operand 0, single buffered']
    %10 = vsyncpa [#allocation3], 0
    %11 = vsyncpa [#allocation6], 0
    %12 = vsyncpa [#allocation9], 0
    %13 = vsyncpa [#allocation4], 0
    // Predicated region
    $region2: #{transformer_forward.38} parent=1 // pred_check
      _
    $region3: #{transformer_forward.38} parent=1 // pred_check_branch
      %15 = sbr.rel (0) target = $region5
    $region4: #{transformer_forward.38} parent=1 // pred_region
      %s17 = ssub.s32 128, 128
      %18 = vsyncadd [#allocation3], %s17
      %s19 = sshll.u32 [#allocation2], 4
      %s20 = int_to_ptr.vmem [resolvable:$true] %s19
      %25 = dma.hbm_to_vmem [thread:$0]  %s0, 128, %s20, [#allocation3], 64, 64, 4
    $region5: #{transformer_forward.38} parent=1 // pred_fallthru
      _
    // Predicated region
    $region6: #{transformer_forward.38} parent=1 // pred_check
      _
    $region7: #{transformer_forward.38} parent=1 // pred_check_branch
      %27 = sbr.rel (0) target = $region9
    $region8: #{transformer_forward.38} parent=1 // pred_region
      %s29 = ssub.s32 16, 16
      %30 = vsyncadd [#allocation6], %s29
      %s32 = sshll.u32 [#allocation5], 4
      %s33 = int_to_ptr.vmem [resolvable:$true] %s32
      %35 = dma.hbm_to_vmem [thread:$0]  %s1, 16, %s33, [#allocation6]
    $region9: #{transformer_forward.38} parent=1 // pred_fallthru
      _
    // Predicated region
    $region10: #{transformer_forward.38} parent=1 // pred_check
      _
    $region11: #{transformer_forward.38} parent=1 // pred_check_branch
      %37 = sbr.rel (0) target = $region13
    $region12: #{transformer_forward.38} parent=1 // pred_region
      %s39 = ssub.s32 16, 16
      %40 = vsyncadd [#allocation6], %s39
      %s42 = sshll.u32 [#allocation7], 4
      %s43 = int_to_ptr.vmem [resolvable:$true] %s42
      %45 = dma.hbm_to_vmem [thread:$0]  %s2, 16, %s43, [#allocation6]
    $region13: #{transformer_forward.38} parent=1 // pred_fallthru
      _
    // Predicated region
    $region14: #{transformer_forward.38} parent=1 // pred_check
      _
    $region15: #{transformer_forward.38} parent=1 // pred_check_branch
      %47 = sbr.rel (0) target = $region17
    $region16: #{transformer_forward.38} parent=1 // pred_region
      %s49 = ssub.s32 256, 256
      %50 = vsyncadd [#allocation9], %s49
      %s51 = sshll.u32 [#allocation8], 4
      %s52 = int_to_ptr.vmem [resolvable:$true] %s51
      %57 = dma.hbm_to_vmem [thread:$0]  %s3, 256, %s52, [#allocation9], 64, 64, 4
    $region17: #{transformer_forward.38} parent=1 // pred_fallthru
      _
    // Predicated region
    $region18: #{transformer_forward.38} parent=1 // pred_check
      _
    $region19: #{transformer_forward.38} parent=1 // pred_check_branch
      %59 = sbr.rel (0) target = $region21
    $region20: #{transformer_forward.38} parent=1 // pred_region
      %s61 = ssub.s32 16, 16
      %62 = vsyncadd [#allocation9], %s61
      %s64 = sshll.u32 [#allocation10], 4
      %s65 = int_to_ptr.vmem [resolvable:$true] %s64
      %67 = dma.hbm_to_vmem [thread:$0]  %s4, 16, %s65, [#allocation9]
    $region21: #{transformer_forward.38} parent=1 // pred_fallthru
      _
    // Predicated region
    $region22: #{transformer_forward.38} parent=1 // pred_check
      _
    $region23: #{transformer_forward.38} parent=1 // pred_check_branch
      %69 = sbr.rel (0) target = $region25
    $region24: #{transformer_forward.38} parent=1 // pred_region
      %70 = dma.done [#allocation3], 128
    $region25: #{transformer_forward.38} parent=1 // pred_fallthru
      _
    // Predicated region
    $region26: #{transformer_forward.38} parent=1 // pred_check
      _
    $region27: #{transformer_forward.38} parent=1 // pred_check_branch
      %72 = sbr.rel (0) target = $region29
    $region28: #{transformer_forward.38} parent=1 // pred_region
      %73 = dma.done [#allocation6], 16
    $region29: #{transformer_forward.38} parent=1 // pred_fallthru
      _
    // Predicated region
    $region30: #{transformer_forward.38} parent=1 // pred_check
      _
    $region31: #{transformer_forward.38} parent=1 // pred_check_branch
      %75 = sbr.rel (0) target = $region33
    $region32: #{transformer_forward.38} parent=1 // pred_region
      %76 = dma.done [#allocation6], 16
    $region33: #{transformer_forward.38} parent=1 // pred_fallthru
      _
    // Predicated region
    $region34: #{transformer_forward.38} parent=1 // pred_check
      _
    $region35: #{transformer_forward.38} parent=1 // pred_check_branch
      %78 = sbr.rel (0) target = $region37
    $region36: #{transformer_forward.38} parent=1 // pred_region
      %79 = dma.done [#allocation9], 256
    $region37: #{transformer_forward.38} parent=1 // pred_fallthru
      _
    // Predicated region
    $region38: #{transformer_forward.38} parent=1 // pred_check
      _
    $region39: #{transformer_forward.38} parent=1 // pred_check_branch
      %81 = sbr.rel (0) target = $region41
    $region40: #{transformer_forward.38} parent=1 // pred_region
      %82 = dma.done [#allocation9], 16
    $region41: #{transformer_forward.38} parent=1 // pred_fallthru
      _
    %v84 = vld [vmem:[#allocation2] sm:$0xf]
    %v85 = vld [vmem:[#allocation2 + $0x4] sm:$0xf]
    %v86 = vunpack.c.l.bf16 %v84
    %v87 = vunpack.c.l.bf16 %v85
    %vm88 = vcmask 261120
    %v89 = vsel %vm88, %v86, 0.0
    %90 = vadd.xlane.f32.xlu0 %v89
    %v91 = vpop.xlane.xlu0 %90
    %v92 = vsel %vm88, %v87, 0.0
    %93 = vadd.xlane.f32.xlu0 %v92
    %v94 = vpop.xlane.xlu0 %93
    %v95 = vrcp.pop 32.0
    %v96 = vmul.f32 %v91, %v95
    %v97 = vmul.f32 %v94, %v95
    %v98 = vsub.f32 %v86, %v96
    %v99 = vsub.f32 %v87, %v97
    %v100 = vmul.f32 %v98, %v98
    %v101 = vmul.f32 %v99, %v99
    %v102 = vsel %vm88, %v100, 0.0
    %103 = vadd.xlane.f32.xlu0 %v102
    %v104 = vpop.xlane.xlu0 %103
    %v105 = vsel %vm88, %v101, 0.0
    %106 = vadd.xlane.f32.xlu0 %v105
    %v107 = vpop.xlane.xlu0 %106
    %v108 = vmul.f32 %v104, %v95
    %v109 = vmul.f32 %v107, %v95
    %v110 = vadd.f32 %v108, 1e-05
    %v111 = vadd.f32 %v109, 1e-05
    %v112 = vrsqrt.pop %v110
    %v113 = vrsqrt.pop %v111
    %v114 = vmul.f32 %v98, %v112
    %v115 = vmul.f32 %v99, %v113
    %v116 = vld [vmem:[#allocation5] sm:$0x1]
    %v118 = vlaneseq
    %v119 = vshrl.u32 %v118, 7
    %v120 = vsub.s32 0, %v119
    %v121 = vrot.slane %v116, %v120
    %v123 = vmul.f32 %v114, %v121
    %v124 = vmul.f32 %v115, %v121
    %v125 = vld [vmem:[#allocation7] sm:$0x1]
    %v127 = vlaneseq
    %v128 = vshrl.u32 %v127, 7
    %v129 = vsub.s32 0, %v128
    %v130 = vrot.slane %v125, %v129
    %v132 = vadd.f32 %v123, %v130
    %v133 = vadd.f32 %v124, %v130
    %v134 = vpack.c.bf16 %v133, %v132
    %v135 = vld [vmem:[#allocation8] sm:$0xf]
    %v136 = vld [vmem:[#allocation8 + $0x4] sm:$0xf]
    %v137 = vld [vmem:[#allocation8 + $0x8] sm:$0xf]
    %v138 = vld [vmem:[#allocation8 + $0xc] sm:$0xf]
    %v139 = vld [vmem:[#allocation10] sm:$0x1]
    %v141 = vlaneseq
    %v142 = vshrl.u32 %v141, 7
    %v143 = vsub.s32 0, %v142
    %v144 = vrot.slane %v139, %v143
    %v150 = vunpack.c.l.b16 %v135
    %v151 = vunpack.c.l.b16 %v136
    %v152 = vunpack.c.l.b16 %v137
    %v153 = vunpack.c.l.b16 %v138
    %v154 = vpack.c.b16 %v151, %v150
    %v155 = vpack.c.b16 %v153, %v152
    %v159 = vsel %vm88, %v134, 0
    %161 = vmatprep.subr.bf16.mxu0 0
    %162 = vmatpush1.bf16.msra.mxu0 %v154
    %163 = vmatprep.subr.bf16.mxu0 0
    %164 = vmatpush1.bf16.msra.mxu0 %v155
    %165 = vmatprep.subr.bf16.mxu0 0
    %166 = vmatpush1.bf16.msra.mxu0 0
    %167 = vmatprep.subr.bf16.mxu0 0
    %168 = vmatpush1.bf16.msra.mxu0 0
    %169 = vmatprep.subr.bf16.mxu0 0
    %170 = vmatpush1.bf16.msra.mxu0 0
    %171 = vmatprep.subr.bf16.mxu0 0
    %172 = vmatpush1.bf16.msra.mxu0 0
    %173 = vmatprep.subr.bf16.mxu0 0
    %174 = vmatpush1.bf16.msra.mxu0 0
    %175 = vmatprep.subr.bf16.mxu0 0
    %176 = vmatpush1.bf16.msra.mxu0 0
    %177 = vmatprep.subr.bf16.mxu0 0
    %178 = vmatpush1.bf16.msra.mxu0 0
    %179 = vmatprep.subr.bf16.mxu0 0
    %180 = vmatpush1.bf16.msra.mxu0 0
    %181 = vmatprep.subr.bf16.mxu0 0
    %182 = vmatpush1.bf16.msra.mxu0 0
    %183 = vmatprep.subr.bf16.mxu0 0
    %184 = vmatpush1.bf16.msra.mxu0 0
    %185 = vmatprep.subr.bf16.mxu0 0
    %186 = vmatpush1.bf16.msra.mxu0 0
    %187 = vmatprep.subr.bf16.mxu0 0
    %188 = vmatpush1.bf16.msra.mxu0 0
    %189 = vmatprep.subr.bf16.mxu0 0
    %190 = vmatpush1.bf16.msra.mxu0 0
    %191 = vmatprep.subr.bf16.mxu0 0
    %192 = vmatpush1.bf16.msra.mxu0 0
    %193 = vmatprep.mubr.bf16.mxu0 0
    %194 = vmatmul.mubr.bf16.gmra.mrb[0].mxu0 %v159
    %v195 = vpop.f32.mrb[0].mxu0
    %v196 = vadd.f32 %v144, %v195
    %v197 = vpop.f32.mrb[0].mxu0
    %v198 = vpop.f32.mrb[0].mxu0
    %v199 = vadd.f32 %v144, %v198
    %v200 = vpop.f32.mrb[0].mxu0
    %201 = vdwg.mxu0
    %v202 = vpack.c.bf16 %v199, %v196
    %v204 = vunpack.c.l.b16 %v202
    %v205 = vunpack.c.h.b16 %v202
    %v206 = vpack.c.b16 %v204, %v204
    %v207 = vpack.c.b16 %v205, %v205
    %vm210 = vcmask 257024
    %211 = vst.msk [vmem:[#allocation11] sm:$0xf] %vm210, %v206
    %212 = vst.msk [vmem:[#allocation11 + $0x4] sm:$0xf] %vm210, %v207
    // Predicated region
    $region42: #{transformer_forward.38} parent=1 // pred_check
      _
    $region43: #{transformer_forward.38} parent=1 // pred_check_branch
      %214 = sbr.rel (0) target = $region45
    $region44: #{transformer_forward.38} parent=1 // pred_region
      %s216 = ssub.s32 128, 128
      %217 = vsyncadd [#allocation4], %s216
      %s218 = sshll.u32 [#allocation11], 4
      %s219 = int_to_ptr.vmem [resolvable:$true] %s218
      %224 = dma.vmem_to_hbm [thread:$0]  %s219, 128, %s5, [#allocation4], 64, 64, 4
    $region45: #{transformer_forward.38} parent=1 // pred_fallthru
      _
    // Predicated region
    $region46: #{transformer_forward.38} parent=1 // pred_check
      _
    $region47: #{transformer_forward.38} parent=1 // pred_check_branch
      %226 = sbr.rel (0) target = $region49
    $region48: #{transformer_forward.38} parent=1 // pred_region
      %227 = dma.done [#allocation4], 128
    $region49: #{transformer_forward.38} parent=1 // pred_fallthru
      _
    %228 = vsyncpa [#allocation3], 1
    %229 = vsyncpa [#allocation6], 1
    %230 = vsyncpa [#allocation9], 1
    %231 = vsyncpa [#allocation4], 1

// kernel: transformer_forward.36
$region0: #{transformer_forward.36}
  #allocation0 [shape = 'u32[]', space=smem, size = 0x4, offset = 0x4, fixed_abs, tag = 'smem constant byte address 0x4 - core index']
  #allocation1 [shape = 'u32[144,128]{1,0:T(1,128)}', space=vmem, size = 0x12000, scoped, tag = 'internal scratch']
  #allocation2 [shape = 'f32[4,8]{1,0:T(4,128)}', space=vmem, size = 0x800, scoped, tag = 'scratch operand']
  #allocation3 [shape = 'f32[4,8]{1,0:T(4,128)}', space=vmem, size = 0x800, scoped, tag = 'scratch operand']
  #allocation4 [shape = 'f32[4,8,8]{2,1,0:T(8,128)}', space=vmem, size = 0x4000, scoped, tag = 'scratch operand']
  %s0 = inlined_call_operand.hbm [shape: f32[2,1,8], index: 0, kind: input, shape index: {}]
  %s1 = inlined_call_operand.hbm [shape: bf16[2,8,32], index: 1, kind: input, shape index: {}]
  %s2 = inlined_call_operand.hbm [shape: bf16[2,8,32], index: 2, kind: input, shape index: {}]
  %s3 = inlined_call_operand.hbm [shape: bf16[2,8,32], index: 3, kind: input, shape index: {}]
  %s4 = inlined_call_operand.hbm [shape: bf16[2,8,32], index: 4, kind: output, shape index: {}]
  %s5 = sld [smem:[#allocation0]]
  $region77: #{transformer_forward.36} parent=0
    _
  %s7 = ssub.s32 1, %s5
  %s8 = scalar_select 0, %s7, %s5
  $region1: #{transformer_forward.36} parent=0
    #allocation5 [shape = 'u8[1024]{0}', space=vmem, size = 0x400, scoped, tag = 'input window, operand 0']
    #allocation6 [shape = 's32[2]{0}', space=sflag, size = 0x8, scoped, tag = 'scoped memory for transformer_forward.36']
    #allocation7 [shape = 's32[2]{0}', space=sflag, size = 0x8, scoped, tag = 'scoped memory for transformer_forward.36']
    #allocation8 [shape = 'u8[4096]{0}', space=vmem, size = 0x1000, scoped, tag = 'input window, operand 1']
    #allocation9 [shape = 's32[2]{0}', space=sflag, size = 0x8, scoped, tag = 'scoped memory for transformer_forward.36']
    #allocation10 [shape = 'u8[4096]{0}', space=vmem, size = 0x1000, scoped, tag = 'input window, operand 2']
    #allocation11 [shape = 'u8[4096]{0}', space=vmem, size = 0x1000, scoped, tag = 'input window, operand 3']
    #allocation12 [shape = 's32[2]{0}', space=sflag, size = 0x8, scoped, tag = 'scoped memory for transformer_forward.36']
    #allocation13 [shape = 'u8[4096]{0}', space=vmem, size = 0x1000, scoped, tag = 'output window, operand 0']
    %9 = vsyncpa [#allocation6], 0
    %s10 = scalar_lea.sflag [#allocation6], 1
    %11 = vsyncpa %s10, 0
    %12 = vsyncpa [#allocation9], 0
    %s13 = scalar_lea.sflag [#allocation9], 1
    %14 = vsyncpa %s13, 0
    %15 = vsyncpa [#allocation12], 0
    %s16 = scalar_lea.sflag [#allocation12], 1
    %17 = vsyncpa %s16, 0
    %18 = vsyncpa [#allocation7], 0
    %s19 = scalar_lea.sflag [#allocation7], 1
    %20 = vsyncpa %s19, 0
    loop: start=0, step=1, limit=4
    $region2: #{transformer_forward.36} parent=1 // loop_pre_header
      _
    $region3: #{transformer_forward.36} parent=1 // loop_header
      %s22 = sphi 0, %s26
      %p23 = scmp.ge.s32.totalorder %s22, 4
      %s29 = sphi 0, %s48
      %s30 = sphi 0, %s44
      %s31 = sphi 0, %s40
      %s32 = sphi 0, %s29
      %s33 = sphi 0, %s30
      %s34 = sphi 0, %s31
      %s35 = sphi 0, %s32
      %s36 = sphi 0, %s33
      %s37 = sphi 0, %s34
      %s53 = sphi 0, %s55
      %s56 = sphi 0, %s53
      %s57 = sphi 0, %s56
      %s73 = sphi 0, %s57
      %s81 = sphi 0, %s83
      %s84 = sphi 0, %s81
      %s85 = sphi 0, %s84
      %s101 = sphi 0, %s85
      %s109 = sphi 0, %s111
      %s112 = sphi 0, %s109
      %s113 = sphi 0, %s112
      %s129 = sphi 0, %s113
      %s137 = sphi 0, %s139
      %s140 = sphi 0, %s137
      %s141 = sphi 0, %s140
      %s157 = sphi 0, %s141
      %s165 = sphi 0, %s167
      %s168 = sphi 0, %s165
      %s169 = sphi 0, %s168
      %s185 = sphi 0, %s169
    $region4: #{transformer_forward.36} parent=1 // loop_header_branch
      %25 = sbr.rel (%p23) target = $region8
    $region5: #{transformer_forward.36} parent=1 // loop_body
      %s27 = ssub.s32 %s22, 1
      %s28 = ssub.s32 %s22, 2
      %s38 = sadd.s32 1, %s31
      %p39 = scmp.ge.s32.totalorder %s38, 1
      %s40 = scalar_select %p39, 0, %s38
      %s41 = sadd.s32 1, %s30
      %s42 = scalar_select %p39, %s41, %s30
      %p43 = scmp.ge.s32.totalorder %s42, 1
      %s44 = scalar_select %p43, 0, %s42
      %s45 = sadd.s32 1, %s29
      %s46 = scalar_select %p43, %s45, %s29
      %p47 = scmp.ge.s32.totalorder %s46, 2
      %s48 = scalar_select %p47, 0, %s46
      %s49 = ssub.s32 %s29, %s48
      %s50 = ssub.s32 %s31, %s40
      %s51 = sor.u32 %s49, %s50
      %p52 = scmp.eq.s32.totalorder %s51, 0
      %s54 = sadd.s32 %s53, 1
      %s55 = scalar_select %p52, %s53, %s54
      %p58 = pneg %p52
      %p59 = scmp.eq.s32.totalorder %s22, 1
      %p60 = por %p58, %p59
      %p61 = scmp.ne.s32.totalorder %s53, %s56
      %p62 = scmp.eq.s32.totalorder %s22, 0
      %p63 = por %p61, %p62
      %p64 = scmp.ne.s32.totalorder %s53, %s56
      %p65 = scmp.eq.s32.totalorder %s27, 1
      %p66 = por %p64, %p65
      %p67 = scmp.ne.s32.totalorder %s56, %s57
      %p68 = scmp.eq.s32.totalorder %s27, 0
      %p69 = por %p67, %p68
      %p70 = scmp.ne.s32.totalorder %s56, %s57
      %p71 = scmp.eq.s32.totalorder %s28, 1
      %p72 = por %p70, %p71
      %p74 = scmp.ne.s32.totalorder %s57, %s73
      %p75 = scmp.eq.s32.totalorder %s28, 0
      %p76 = por %p74, %p75
      %s77 = ssub.s32 %s29, %s48
      %s78 = ssub.s32 %s30, %s44
      %s79 = sor.u32 %s77, %s78
      %p80 = scmp.eq.s32.totalorder %s79, 0
      %s82 = sadd.s32 %s81, 1
      %s83 = scalar_select %p80, %s81, %s82
      %p86 = pneg %p80
      %p87 = scmp.eq.s32.totalorder %s22, 1
      %p88 = por %p86, %p87
      %p89 = scmp.ne.s32.totalorder %s81, %s84
      %p90 = scmp.eq.s32.totalorder %s22, 0
      %p91 = por %p89, %p90
      %p92 = scmp.ne.s32.totalorder %s81, %s84
      %p93 = scmp.eq.s32.totalorder %s27, 1
      %p94 = por %p92, %p93
      %p95 = scmp.ne.s32.totalorder %s84, %s85
      %p96 = scmp.eq.s32.totalorder %s27, 0
      %p97 = por %p95, %p96
      %p98 = scmp.ne.s32.totalorder %s84, %s85
      %p99 = scmp.eq.s32.totalorder %s28, 1
      %p100 = por %p98, %p99
      %p102 = scmp.ne.s32.totalorder %s85, %s101
      %p103 = scmp.eq.s32.totalorder %s28, 0
      %p104 = por %p102, %p103
      %s105 = ssub.s32 %s29, %s48
      %s106 = ssub.s32 %s31, %s40
      %s107 = sor.u32 %s105, %s106
      %p108 = scmp.eq.s32.totalorder %s107, 0
      %s110 = sadd.s32 %s109, 1
      %s111 = scalar_select %p108, %s109, %s110
      %p114 = pneg %p108
      %p115 = scmp.eq.s32.totalorder %s22, 1
      %p116 = por %p114, %p115
      %p117 = scmp.ne.s32.totalorder %s109, %s112
      %p118 = scmp.eq.s32.totalorder %s22, 0
      %p119 = por %p117, %p118
      %p120 = scmp.ne.s32.totalorder %s109, %s112
      %p121 = scmp.eq.s32.totalorder %s27, 1
      %p122 = por %p120, %p121
      %p123 = scmp.ne.s32.totalorder %s112, %s113
      %p124 = scmp.eq.s32.totalorder %s27, 0
      %p125 = por %p123, %p124
      %p126 = scmp.ne.s32.totalorder %s112, %s113
      %p127 = scmp.eq.s32.totalorder %s28, 1
      %p128 = por %p126, %p127
      %p130 = scmp.ne.s32.totalorder %s113, %s129
      %p131 = scmp.eq.s32.totalorder %s28, 0
      %p132 = por %p130, %p131
      %s133 = ssub.s32 %s29, %s48
      %s134 = ssub.s32 %s31, %s40
      %s135 = sor.u32 %s133, %s134
      %p136 = scmp.eq.s32.totalorder %s135, 0
      %s138 = sadd.s32 %s137, 1
      %s139 = scalar_select %p136, %s137, %s138
      %p142 = pneg %p136
      %p143 = scmp.eq.s32.totalorder %s22, 1
      %p144 = por %p142, %p143
      %p145 = scmp.ne.s32.totalorder %s137, %s140
      %p146 = scmp.eq.s32.totalorder %s22, 0
      %p147 = por %p145, %p146
      %p148 = scmp.ne.s32.totalorder %s137, %s140
      %p149 = scmp.eq.s32.totalorder %s27, 1
      %p150 = por %p148, %p149
      %p151 = scmp.ne.s32.totalorder %s140, %s141
      %p152 = scmp.eq.s32.totalorder %s27, 0
      %p153 = por %p151, %p152
      %p154 = scmp.ne.s32.totalorder %s140, %s141
      %p155 = scmp.eq.s32.totalorder %s28, 1
      %p156 = por %p154, %p155
      %p158 = scmp.ne.s32.totalorder %s141, %s157
      %p159 = scmp.eq.s32.totalorder %s28, 0
      %p160 = por %p158, %p159
      %s161 = ssub.s32 %s29, %s48
      %s162 = ssub.s32 %s30, %s44
      %s163 = sor.u32 %s161, %s162
      %p164 = scmp.eq.s32.totalorder %s163, 0
      %s166 = sadd.s32 %s165, 1
      %s167 = scalar_select %p164, %s165, %s166
      %p170 = pneg %p164
      %p171 = scmp.eq.s32.totalorder %s22, 1
      %p172 = por %p170, %p171
      %p173 = scmp.ne.s32.totalorder %s165, %s168
      %p174 = scmp.eq.s32.totalorder %s22, 0
      %p175 = por %p173, %p174
      %p176 = scmp.ne.s32.totalorder %s165, %s168
      %p177 = scmp.eq.s32.totalorder %s27, 1
      %p178 = por %p176, %p177
      %p179 = scmp.ne.s32.totalorder %s168, %s169
      %p180 = scmp.eq.s32.totalorder %s27, 0
      %p181 = por %p179, %p180
      %p182 = scmp.ne.s32.totalorder %s168, %s169
      %p183 = scmp.eq.s32.totalorder %s28, 1
      %p184 = por %p182, %p183
      %p186 = scmp.ne.s32.totalorder %s169, %s185
      %p187 = scmp.eq.s32.totalorder %s28, 0
      %p188 = por %p186, %p187
      %p189 = scmp.le.s32.totalorder 1, %s22
      %p190 = scmp.lt.s32.totalorder %s22, 3
      %p191 = pnand %p189, %p190
      %p192 = pneg %p191
      // Predicated region
      $region9: #{transformer_forward.36} parent=5 // pred_check
        _
      $region10: #{transformer_forward.36} parent=5 // pred_check_branch
        %194 = sbr.rel (%p191) target = $region12
      $region11: #{transformer_forward.36} parent=5 // pred_region
        %s195 = ssub.s32 %s22, 1
      $region12: #{transformer_forward.36} parent=5 // pred_fallthru
        _
      %p196 = scmp.lt.s32.totalorder %s22, 2
      // Predicated region
      $region13: #{transformer_forward.36} parent=5 // pred_check
        %p197 = pneg %p196
      $region14: #{transformer_forward.36} parent=5 // pred_check_branch
        %199 = sbr.rel (%p197) target = $region16
      $region15: #{transformer_forward.36} parent=5 // pred_region
        // Predicated region
        $region17: #{transformer_forward.36} parent=15 // pred_check
          %p200 = pneg %p63
        $region18: #{transformer_forward.36} parent=15 // pred_check_branch
          %202 = sbr.rel (%p200) target = $region20
        $region19: #{transformer_forward.36} parent=15 // pred_region
          %s203 = sand.u32 %s53, 1
          %s204 = scalar_lea.sflag [#allocation6], %s203
          %s205 = sand.u32 %s53, 1
          %s206 = scalar_lea.vmem [#allocation5], %s205
          %s208 = ssub.s32 16, 16
          %209 = vsyncadd %s204, %s208
          %s210 = sadd.s32 %s31, %s29
          %s211 = smul.addr %s210, 16
          %s212 = scalar_lea.hbm %s0, %s211
          %s214 = sshll.u32 %s206, 4
          %s215 = int_to_ptr.vmem [resolvable:$true] %s214
          %217 = dma.hbm_to_vmem [thread:$0]  %s212, 16, %s215, %s204
        $region20: #{transformer_forward.36} parent=15 // pred_fallthru
          _
        // Predicated region
        $region21: #{transformer_forward.36} parent=15 // pred_check
          %p218 = pneg %p91
        $region22: #{transformer_forward.36} parent=15 // pred_check_branch
          %220 = sbr.rel (%p218) target = $region24
        $region23: #{transformer_forward.36} parent=15 // pred_region
          %s221 = sand.u32 %s22, 1
          %s222 = scalar_lea.sflag [#allocation9], %s221
          %s223 = sand.u32 %s81, 1
          %s224 = smul.addr %s223, 4
          %s225 = scalar_lea.vmem [#allocation8], %s224
          %s227 = ssub.s32 64, 64
          %228 = vsyncadd %s222, %s227
          %s229 = sadd.s32 %s30, %s29
          %s230 = smul.addr %s229, 64
          %s231 = scalar_lea.hbm %s1, %s230
          %s233 = sshll.u32 %s225, 4
          %s234 = int_to_ptr.vmem [resolvable:$true] %s233
          %236 = dma.hbm_to_vmem [thread:$0]  %s231, 64, %s234, %s222
        $region24: #{transformer_forward.36} parent=15 // pred_fallthru
          _
        // Predicated region
        $region25: #{transformer_forward.36} parent=15 // pred_check
          %p237 = pneg %p119
        $region26: #{transformer_forward.36} parent=15 // pred_check_branch
          %239 = sbr.rel (%p237) target = $region28
        $region27: #{transformer_forward.36} parent=15 // pred_region
          %s240 = sand.u32 %s22, 1
          %s241 = scalar_lea.sflag [#allocation9], %s240
          %s242 = sand.u32 %s109, 1
          %s243 = smul.addr %s242, 4
          %s244 = scalar_lea.vmem [#allocation10], %s243
          %s246 = ssub.s32 64, 64
          %247 = vsyncadd %s241, %s246
          %s248 = sadd.s32 %s31, %s29
          %s249 = smul.addr %s248, 64
          %s250 = scalar_lea.hbm %s2, %s249
          %s252 = sshll.u32 %s244, 4
          %s253 = int_to_ptr.vmem [resolvable:$true] %s252
          %255 = dma.hbm_to_vmem [thread:$0]  %s250, 64, %s253, %s241
        $region28: #{transformer_forward.36} parent=15 // pred_fallthru
          _
        // Predicated region
        $region29: #{transformer_forward.36} parent=15 // pred_check
          %p256 = pneg %p147
        $region30: #{transformer_forward.36} parent=15 // pred_check_branch
          %258 = sbr.rel (%p256) target = $region32
        $region31: #{transformer_forward.36} parent=15 // pred_region
          %s259 = sand.u32 %s137, 1
          %s260 = scalar_lea.sflag [#allocation12], %s259
          %s261 = sand.u32 %s137, 1
          %s262 = smul.addr %s261, 4
          %s263 = scalar_lea.vmem [#allocation11], %s262
          %s265 = ssub.s32 64, 64
          %266 = vsyncadd %s260, %s265
          %s267 = sadd.s32 %s31, %s29
          %s268 = smul.addr %s267, 64
          %s269 = scalar_lea.hbm %s3, %s268
          %s271 = sshll.u32 %s263, 4
          %s272 = int_to_ptr.vmem [resolvable:$true] %s271
          %274 = dma.hbm_to_vmem [thread:$0]  %s269, 64, %s272, %s260
        $region32: #{transformer_forward.36} parent=15 // pred_fallthru
          _
      $region16: #{transformer_forward.36} parent=5 // pred_fallthru
        _
      %p275 = scmp.le.s32.totalorder 1, %s22
      %p276 = scmp.lt.s32.totalorder %s22, 3
      %p277 = pnand %p275, %p276
      %p278 = pneg %p277
      // Predicated region
      $region33: #{transformer_forward.36} parent=5 // pred_check
        _
      $region34: #{transformer_forward.36} parent=5 // pred_check_branch
        %280 = sbr.rel (%p277) target = $region36
      $region35: #{transformer_forward.36} parent=5 // pred_region
        %s281 = ssub.s32 %s22, 1
        %s282 = sand.u32 %s56, 1
        %s283 = scalar_lea.sflag [#allocation6], %s282
        %s284 = sand.u32 %s56, 1
        %s285 = scalar_lea.vmem [#allocation5], %s284
        // Predicated region
        $region37: #{transformer_forward.36} parent=35 // pred_check
          %p286 = pneg %p69
        $region38: #{transformer_forward.36} parent=35 // pred_check_branch
          %288 = sbr.rel (%p286) target = $region40
        $region39: #{transformer_forward.36} parent=35 // pred_region
          %289 = dma.done %s283, 16
        $region40: #{transformer_forward.36} parent=35 // pred_fallthru
          _
        %s290 = sand.u32 %s27, 1
        %s291 = scalar_lea.sflag [#allocation9], %s290
        %s292 = sand.u32 %s84, 1
        %s293 = smul.addr %s292, 4
        %s294 = scalar_lea.vmem [#allocation8], %s293
        // Predicated region
        $region41: #{transformer_forward.36} parent=35 // pred_check
          %p295 = pneg %p97
        $region42: #{transformer_forward.36} parent=35 // pred_check_branch
          %297 = sbr.rel (%p295) target = $region44
        $region43: #{transformer_forward.36} parent=35 // pred_region
          %298 = dma.done %s291, 64
        $region44: #{transformer_forward.36} parent=35 // pred_fallthru
          _
        %s299 = sand.u32 %s27, 1
        %s300 = scalar_lea.sflag [#allocation9], %s299
        %s301 = sand.u32 %s112, 1
        %s302 = smul.addr %s301, 4
        %s303 = scalar_lea.vmem [#allocation10], %s302
        // Predicated region
        $region45: #{transformer_forward.36} parent=35 // pred_check
          %p304 = pneg %p125
        $region46: #{transformer_forward.36} parent=35 // pred_check_branch
          %306 = sbr.rel (%p304) target = $region48
        $region47: #{transformer_forward.36} parent=35 // pred_region
          %307 = dma.done %s300, 64
        $region48: #{transformer_forward.36} parent=35 // pred_fallthru
          _
        %s308 = sand.u32 %s140, 1
        %s309 = scalar_lea.sflag [#allocation12], %s308
        %s310 = sand.u32 %s140, 1
        %s311 = smul.addr %s310, 4
        %s312 = scalar_lea.vmem [#allocation11], %s311
        // Predicated region
        $region49: #{transformer_forward.36} parent=35 // pred_check
          %p313 = pneg %p153
        $region50: #{transformer_forward.36} parent=35 // pred_check_branch
          %315 = sbr.rel (%p313) target = $region52
        $region51: #{transformer_forward.36} parent=35 // pred_region
          %316 = dma.done %s309, 64
        $region52: #{transformer_forward.36} parent=35 // pred_fallthru
          _
        %s317 = sand.u32 %s56, 1
        %s318 = scalar_lea.sflag [#allocation6], %s317
        %s319 = sand.u32 %s56, 1
        %s320 = scalar_lea.vmem [#allocation5], %s319
        %p321 = pneg %p69
        %p322 = pneg %p66
        %s323 = sand.u32 %s27, 1
        %s324 = scalar_lea.sflag [#allocation9], %s323
        %s325 = sand.u32 %s84, 1
        %s326 = smul.addr %s325, 4
        %s327 = scalar_lea.vmem [#allocation8], %s326
        %p328 = pneg %p97
        %p329 = pneg %p94
        %s330 = sand.u32 %s27, 1
        %s331 = scalar_lea.sflag [#allocation9], %s330
        %s332 = sand.u32 %s112, 1
        %s333 = smul.addr %s332, 4
        %s334 = scalar_lea.vmem [#allocation10], %s333
        %p335 = pneg %p125
        %p336 = pneg %p122
        %s337 = sand.u32 %s140, 1
        %s338 = scalar_lea.sflag [#allocation12], %s337
        %s339 = sand.u32 %s140, 1
        %s340 = smul.addr %s339, 4
        %s341 = scalar_lea.vmem [#allocation11], %s340
        %p342 = pneg %p153
        %p343 = pneg %p150
        %p344 = pneg %p181
        %p345 = pneg %p178
        %s346 = sand.u32 %s168, 1
        %s347 = scalar_lea.sflag [#allocation7], %s346
        %s348 = sand.u32 %s168, 1
        %s349 = smul.addr %s348, 4
        %s350 = scalar_lea.vmem [#allocation13], %s349
        %p352 = scmp.eq.s32.totalorder %s34, 0
        // Predicated region
        $region53: #{transformer_forward.36} parent=35 // pred_check
          %p353 = pneg %p352
        $region54: #{transformer_forward.36} parent=35 // pred_check_branch
          %355 = sbr.rel (%p353) target = $region56
        $region55: #{transformer_forward.36} parent=35 // pred_region
          %vm356 = vcmask 60416
          %357 = vst.msk [vmem:[#allocation2] sm:$0xf] %vm356, -inf
          %358 = vst.msk [vmem:[#allocation3] sm:$0xf] %vm356, 0.0
          %vm359 = vcmask 64512
          %360 = vst.msk [vmem:[#allocation4] sm:$0xff] %vm359, 0.0
          %361 = vst.msk [vmem:[#allocation4 + $0x8] sm:$0xff] %vm359, 0.0
          %362 = vst.msk [vmem:[#allocation4 + $0x10] sm:$0xff] %vm359, 0.0
          %363 = vst.msk [vmem:[#allocation4 + $0x18] sm:$0xff] %vm359, 0.0
        $region56: #{transformer_forward.36} parent=35 // pred_fallthru
          _
        %s364 = smul.u32 %s34, 8
        %s365 = smul.u32 %s33, 8
        %s366 = sadd.s32 %s365, 7
        %p367 = scmp.le.s32.totalorder %s364, %s366
        // Predicated region
        $region57: #{transformer_forward.36} parent=35 // pred_check
          %p368 = pneg %p367
        $region58: #{transformer_forward.36} parent=35 // pred_check_branch
          %370 = sbr.rel (%p368) target = $region60
        $region59: #{transformer_forward.36} parent=35 // pred_region
          %v371 = vld [vmem:[%s294] sm:$0xf]
          %373 = vrot.lane.b32.xlu0 %v371, 120
          %v374 = vpop.permute.xlu0 %373
          %375 = vrot.lane.b32.xlu0 %v371, 112
          %v376 = vpop.permute.xlu0 %375
          %377 = vrot.lane.b32.xlu0 %v371, 104
          %v378 = vpop.permute.xlu0 %377
          %v379 = vld [vmem:[%s303] sm:$0xf]
          %381 = vrot.lane.b32.xlu0 %v379, 120
          %v382 = vpop.permute.xlu0 %381
          %383 = vrot.lane.b32.xlu0 %v379, 112
          %v384 = vpop.permute.xlu0 %383
          %385 = vrot.lane.b32.xlu0 %v379, 104
          %v386 = vpop.permute.xlu0 %385
          %v387 = vld [vmem:[%s312] sm:$0xf]
          %389 = vrot.lane.b32.xlu0 %v387, 120
          %v390 = vpop.permute.xlu0 %389
          %391 = vrot.lane.b32.xlu0 %v387, 112
          %v392 = vpop.permute.xlu0 %391
          %393 = vrot.lane.b32.xlu0 %v387, 104
          %v394 = vpop.permute.xlu0 %393
          %v395 = vld [vmem:[%s285] sm:$0x1]
          %v396 = vsub.f32 %v395, 1.0
          %v397 = vmul.f32 %v396, 1e+09
          %v399 = vlaneseq
          %v400 = vshrl.u32 %v399, 7
          %v401 = vsub.s32 0, %v400
          %v402 = vrot.slane %v397, %v401
          %vm404 = vcmask 64512
          %v406 = vsel %vm404, %v371, 0
          %v409 = vsel %vm404, %v379, 0
          %411 = vmatprep.subr.bf16.mxu0 0
          %412 = vmatpush1.bf16.xpose.msra.mxu0 %v409
          %413 = vmatprep.subr.bf16.mxu0 0
          %414 = vmatpush1.bf16.xpose.msra.mxu0 0
          %415 = vmatprep.subr.bf16.mxu0 0
          %416 = vmatpush1.bf16.xpose.msra.mxu0 0
          %417 = vmatprep.subr.bf16.mxu0 0
          %418 = vmatpush1.bf16.xpose.msra.mxu0 0
          %419 = vmatprep.subr.bf16.mxu0 0
          %420 = vmatpush1.bf16.xpose.msra.mxu0 0
          %421 = vmatprep.subr.bf16.mxu0 0
          %422 = vmatpush1.bf16.xpose.msra.mxu0 0
          %423 = vmatprep.subr.bf16.mxu0 0
          %424 = vmatpush1.bf16.xpose.msra.mxu0 0
          %425 = vmatprep.subr.bf16.mxu0 0
          %426 = vmatpush1.bf16.xpose.msra.mxu0 0
          %427 = vmatprep.subr.bf16.mxu0 0
          %428 = vmatpush1.bf16.xpose.msra.mxu0 0
          %429 = vmatprep.subr.bf16.mxu0 0
          %430 = vmatpush1.bf16.xpose.msra.mxu0 0
          %431 = vmatprep.subr.bf16.mxu0 0
          %432 = vmatpush1.bf16.xpose.msra.mxu0 0
          %433 = vmatprep.subr.bf16.mxu0 0
          %434 = vmatpush1.bf16.xpose.msra.mxu0 0
          %435 = vmatprep.subr.bf16.mxu0 0
          %436 = vmatpush1.bf16.xpose.msra.mxu0 0
          %437 = vmatprep.subr.bf16.mxu0 0
          %438 = vmatpush1.bf16.xpose.msra.mxu0 0
          %439 = vmatprep.subr.bf16.mxu0 0
          %440 = vmatpush1.bf16.xpose.msra.mxu0 0
          %441 = vmatprep.subr.bf16.mxu0 0
          %442 = vmatpush1.bf16.xpose.msra.mxu0 0
          %443 = vmatprep.mubr.bf16.mxu0 0
          %444 = vmatmul.mubr.bf16.gmra.mrb[0].mxu0 %v406
          %v445 = vpop.f32.mrb[0].mxu0
          %v446 = vadd.f32 %v402, %v445
          %v447 = vpop.f32.mrb[0].mxu0
          %v448 = vpop.f32.mrb[0].mxu0
          %v449 = vpop.f32.mrb[0].mxu0
          %450 = vdwg.mxu0
          %v452 = vsel %vm404, %v374, 0
          %v455 = vsel %vm404, %v382, 0
          %457 = vmatprep.subr.bf16.mxu0 0
          %458 = vmatpush1.bf16.xpose.msra.mxu0 %v455
          %459 = vmatprep.subr.bf16.mxu0 0
          %460 = vmatpush1.bf16.xpose.msra.mxu0 0
          %461 = vmatprep.subr.bf16.mxu0 0
          %462 = vmatpush1.bf16.xpose.msra.mxu0 0
          %463 = vmatprep.subr.bf16.mxu0 0
          %464 = vmatpush1.bf16.xpose.msra.mxu0 0
          %465 = vmatprep.subr.bf16.mxu0 0
          %466 = vmatpush1.bf16.xpose.msra.mxu0 0
          %467 = vmatprep.subr.bf16.mxu0 0
          %468 = vmatpush1.bf16.xpose.msra.mxu0 0
          %469 = vmatprep.subr.bf16.mxu0 0
          %470 = vmatpush1.bf16.xpose.msra.mxu0 0
          %471 = vmatprep.subr.bf16.mxu0 0
          %472 = vmatpush1.bf16.xpose.msra.mxu0 0
          %473 = vmatprep.subr.bf16.mxu0 0
          %474 = vmatpush1.bf16.xpose.msra.mxu0 0
          %475 = vmatprep.subr.bf16.mxu0 0
          %476 = vmatpush1.bf16.xpose.msra.mxu0 0
          %477 = vmatprep.subr.bf16.mxu0 0
          %478 = vmatpush1.bf16.xpose.msra.mxu0 0
          %479 = vmatprep.subr.bf16.mxu0 0
          %480 = vmatpush1.bf16.xpose.msra.mxu0 0
          %481 = vmatprep.subr.bf16.mxu0 0
          %482 = vmatpush1.bf16.xpose.msra.mxu0 0
          %483 = vmatprep.subr.bf16.mxu0 0
          %484 = vmatpush1.bf16.xpose.msra.mxu0 0
          %485 = vmatprep.subr.bf16.mxu0 0
          %486 = vmatpush1.bf16.xpose.msra.mxu0 0
          %487 = vmatprep.subr.bf16.mxu0 0
          %488 = vmatpush1.bf16.xpose.msra.mxu0 0
          %489 = vmatprep.mubr.bf16.mxu0 0
          %490 = vmatmul.mubr.bf16.gmra.mrb[0].mxu0 %v452
          %v491 = vpop.f32.mrb[0].mxu0
          %v492 = vadd.f32 %v402, %v491
          %v493 = vpop.f32.mrb[0].mxu0
          %v494 = vpop.f32.mrb[0].mxu0
          %v495 = vpop.f32.mrb[0].mxu0
          %496 = vdwg.mxu0
          %v498 = vsel %vm404, %v376, 0
          %v501 = vsel %vm404, %v384, 0
          %503 = vmatprep.subr.bf16.mxu0 0
          %504 = vmatpush1.bf16.xpose.msra.mxu0 %v501
          %505 = vmatprep.subr.bf16.mxu0 0
          %506 = vmatpush1.bf16.xpose.msra.mxu0 0
          %507 = vmatprep.subr.bf16.mxu0 0
          %508 = vmatpush1.bf16.xpose.msra.mxu0 0
          %509 = vmatprep.subr.bf16.mxu0 0
          %510 = vmatpush1.bf16.xpose.msra.mxu0 0
          %511 = vmatprep.subr.bf16.mxu0 0
          %512 = vmatpush1.bf16.xpose.msra.mxu0 0
          %513 = vmatprep.subr.bf16.mxu0 0
          %514 = vmatpush1.bf16.xpose.msra.mxu0 0
          %515 = vmatprep.subr.bf16.mxu0 0
          %516 = vmatpush1.bf16.xpose.msra.mxu0 0
          %517 = vmatprep.subr.bf16.mxu0 0
          %518 = vmatpush1.bf16.xpose.msra.mxu0 0
          %519 = vmatprep.subr.bf16.mxu0 0
          %520 = vmatpush1.bf16.xpose.msra.mxu0 0
          %521 = vmatprep.subr.bf16.mxu0 0
          %522 = vmatpush1.bf16.xpose.msra.mxu0 0
          %523 = vmatprep.subr.bf16.mxu0 0
          %524 = vmatpush1.bf16.xpose.msra.mxu0 0
          %525 = vmatprep.subr.bf16.mxu0 0
          %526 = vmatpush1.bf16.xpose.msra.mxu0 0
          %527 = vmatprep.subr.bf16.mxu0 0
          %528 = vmatpush1.bf16.xpose.msra.mxu0 0
          %529 = vmatprep.subr.bf16.mxu0 0
          %530 = vmatpush1.bf16.xpose.msra.mxu0 0
          %531 = vmatprep.subr.bf16.mxu0 0
          %532 = vmatpush1.bf16.xpose.msra.mxu0 0
          %533 = vmatprep.subr.bf16.mxu0 0
          %534 = vmatpush1.bf16.xpose.msra.mxu0 0
          %535 = vmatprep.mubr.bf16.mxu0 0
          %536 = vmatmul.mubr.bf16.gmra.mrb[0].mxu0 %v498
          %v537 = vpop.f32.mrb[0].mxu0
          %v538 = vadd.f32 %v402, %v537
          %v539 = vpop.f32.mrb[0].mxu0
          %v540 = vpop.f32.mrb[0].mxu0
          %v541 = vpop.f32.mrb[0].mxu0
          %542 = vdwg.mxu0
          %v544 = vsel %vm404, %v378, 0
          %v547 = vsel %vm404, %v386, 0
          %549 = vmatprep.subr.bf16.mxu0 0
          %550 = vmatpush1.bf16.xpose.msra.mxu0 %v547
          %551 = vmatprep.subr.bf16.mxu0 0
          %552 = vmatpush1.bf16.xpose.msra.mxu0 0
          %553 = vmatprep.subr.bf16.mxu0 0
          %554 = vmatpush1.bf16.xpose.msra.mxu0 0
          %555 = vmatprep.subr.bf16.mxu0 0
          %556 = vmatpush1.bf16.xpose.msra.mxu0 0
          %557 = vmatprep.subr.bf16.mxu0 0
          %558 = vmatpush1.bf16.xpose.msra.mxu0 0
          %559 = vmatprep.subr.bf16.mxu0 0
          %560 = vmatpush1.bf16.xpose.msra.mxu0 0
          %561 = vmatprep.subr.bf16.mxu0 0
          %562 = vmatpush1.bf16.xpose.msra.mxu0 0
          %563 = vmatprep.subr.bf16.mxu0 0
          %564 = vmatpush1.bf16.xpose.msra.mxu0 0
          %565 = vmatprep.subr.bf16.mxu0 0
          %566 = vmatpush1.bf16.xpose.msra.mxu0 0
          %567 = vmatprep.subr.bf16.mxu0 0
          %568 = vmatpush1.bf16.xpose.msra.mxu0 0
          %569 = vmatprep.subr.bf16.mxu0 0
          %570 = vmatpush1.bf16.xpose.msra.mxu0 0
          %571 = vmatprep.subr.bf16.mxu0 0
          %572 = vmatpush1.bf16.xpose.msra.mxu0 0
          %573 = vmatprep.subr.bf16.mxu0 0
          %574 = vmatpush1.bf16.xpose.msra.mxu0 0
          %575 = vmatprep.subr.bf16.mxu0 0
          %576 = vmatpush1.bf16.xpose.msra.mxu0 0
          %577 = vmatprep.subr.bf16.mxu0 0
          %578 = vmatpush1.bf16.xpose.msra.mxu0 0
          %579 = vmatprep.subr.bf16.mxu0 0
          %580 = vmatpush1.bf16.xpose.msra.mxu0 0
          %581 = vmatprep.mubr.bf16.mxu0 0
          %582 = vmatmul.mubr.bf16.gmra.mrb[0].mxu0 %v544
          %v583 = vpop.f32.mrb[0].mxu0
          %v584 = vadd.f32 %v402, %v583
          %v585 = vpop.f32.mrb[0].mxu0
          %v586 = vpop.f32.mrb[0].mxu0
          %v587 = vpop.f32.mrb[0].mxu0
          %588 = vdwg.mxu0
          %v589 = vlaneseq
          %v590 = vshrl.u32 %v589, 7
          %v591 = vstv %s365
          %v592 = vadd.s32 %v591, %v590
          %v593 = vlaneseq
          %v594 = vand.u32 %v593, 127
          %v595 = vstv %s364
          %v596 = vadd.s32 %v595, %v594
          %vm597 = vcmp.gt.s32.totalorder %v596, %v592
          %v598 = vsel %vm597, -1e+09, 0.0
          %v599 = vadd.f32 %v446, %v598
          %v600 = vadd.f32 %v492, %v598
          %v601 = vadd.f32 %v538, %v598
          %v602 = vadd.f32 %v584, %v598
          %v603 = vld [vmem:[#allocation2] sm:$0xf]
          %v604 = vsel %vm404, %v599, -inf
          %605 = vmax.xlane.f32.xlu0 %v604
          %v606 = vpop.xlane.xlu0 %605
          %v607 = vsel %vm404, %v600, -inf
          %608 = vmax.xlane.f32.xlu0 %v607
          %v609 = vpop.xlane.xlu0 %608
          %v610 = vsel %vm404, %v601, -inf
          %611 = vmax.xlane.f32.xlu0 %v610
          %v612 = vpop.xlane.xlu0 %611
          %v613 = vsel %vm404, %v602, -inf
          %614 = vmax.xlane.f32.xlu0 %v613
          %v615 = vpop.xlane.xlu0 %614
          %v620 = vlaneseq
          %v621 = vshrl.u32 %v620, 7
          %v622 = vsub.s32 %v594, %v621
          %v623 = vrot.slane %v606, %v622
          %v624 = vlaneseq
          %v625 = vshrl.u32 %v624, 7
          %v626 = vsub.s32 %v594, %v625
          %v627 = vrot.slane %v609, %v626
          %v628 = vlaneseq
          %v629 = vshrl.u32 %v628, 7
          %v630 = vsub.s32 %v594, %v629
          %v631 = vrot.slane %v612, %v630
          %v632 = vlaneseq
          %v633 = vshrl.u32 %v632, 7
          %v634 = vsub.s32 %v594, %v633
          %v635 = vrot.slane %v615, %v634
          %vm636 = vcmask 1041409
          %v637 = vsel %vm636, %v627, %v623
          %vm638 = vcmask 1042434
          %v639 = vsel %vm638, %v631, %v637
          %vm640 = vcmask 1043459
          %v641 = vsel %vm640, %v635, %v639
          %v643 = vmax.f32 %v603, %v641
          %v644 = vsub.f32 %v603, %v643
          %v645 = vmul.f32 %v644, 1.442695
          %v646 = vpow.pop %v645
          %v647 = vlaneseq
          %v648 = vshrl.u32 %v647, 7
          %v649 = vsub.s32 0, %v648
          %v650 = vrot.slane %v643, %v649
          %652 = vbcast.lane.b32.xlu0 %v650, 256
          %v653 = vpop.permute.xlu0 %652
          %v654 = vlaneseq
          %v655 = vshrl.u32 %v654, 7
          %v656 = vsub.s32 1, %v655
          %v657 = vrot.slane %v643, %v656
          %659 = vbcast.lane.b32.xlu0 %v657, 256
          %v660 = vpop.permute.xlu0 %659
          %v661 = vlaneseq
          %v662 = vshrl.u32 %v661, 7
          %v663 = vsub.s32 2, %v662
          %v664 = vrot.slane %v643, %v663
          %666 = vbcast.lane.b32.xlu0 %v664, 256
          %v667 = vpop.permute.xlu0 %666
          %v668 = vlaneseq
          %v669 = vshrl.u32 %v668, 7
          %v670 = vsub.s32 3, %v669
          %v671 = vrot.slane %v643, %v670
          %673 = vbcast.lane.b32.xlu0 %v671, 256
          %v674 = vpop.permute.xlu0 %673
          %v675 = vsub.f32 %v599, %v653
          %v676 = vsub.f32 %v600, %v660
          %v677 = vsub.f32 %v601, %v667
          %v678 = vsub.f32 %v602, %v674
          %v679 = vmul.f32 %v675, 1.442695
          %v680 = vpow.pop %v679
          %v681 = vmul.f32 %v676, 1.442695
          %v682 = vpow.pop %v681
          %v683 = vmul.f32 %v677, 1.442695
          %v684 = vpow.pop %v683
          %v685 = vmul.f32 %v678, 1.442695
          %v686 = vpow.pop %v685
          %v687 = vld [vmem:[#allocation3] sm:$0xf]
          %v688 = vmul.f32 %v646, %v687
          %v689 = vsel %vm404, %v680, 0.0
          %690 = vadd.xlane.f32.xlu0 %v689
          %v691 = vpop.xlane.xlu0 %690
          %v692 = vsel %vm404, %v682, 0.0
          %693 = vadd.xlane.f32.xlu0 %v692
          %v694 = vpop.xlane.xlu0 %693
          %v695 = vsel %vm404, %v684, 0.0
          %696 = vadd.xlane.f32.xlu0 %v695
          %v697 = vpop.xlane.xlu0 %696
          %v698 = vsel %vm404, %v686, 0.0
          %699 = vadd.xlane.f32.xlu0 %v698
          %v700 = vpop.xlane.xlu0 %699
          %v705 = vlaneseq
          %v706 = vshrl.u32 %v705, 7
          %v707 = vsub.s32 %v594, %v706
          %v708 = vrot.slane %v691, %v707
          %v709 = vlaneseq
          %v710 = vshrl.u32 %v709, 7
          %v711 = vsub.s32 %v594, %v710
          %v712 = vrot.slane %v694, %v711
          %v713 = vlaneseq
          %v714 = vshrl.u32 %v713, 7
          %v715 = vsub.s32 %v594, %v714
          %v716 = vrot.slane %v697, %v715
          %v717 = vlaneseq
          %v718 = vshrl.u32 %v717, 7
          %v719 = vsub.s32 %v594, %v718
          %v720 = vrot.slane %v700, %v719
          %v721 = vsel %vm636, %v712, %v708
          %v722 = vsel %vm638, %v716, %v721
          %v723 = vsel %vm640, %v720, %v722
          %v725 = vadd.f32 %v688, %v723
          %vm726 = vcmask 60416
          %727 = vst.msk [vmem:[#allocation3] sm:$0xf] %vm726, %v725
          %v728 = vlaneseq
          %v729 = vshrl.u32 %v728, 7
          %v730 = vsub.s32 0, %v729
          %v731 = vrot.slane %v646, %v730
          %733 = vbcast.lane.b32.xlu0 %v731, 256
          %v734 = vpop.permute.xlu0 %733
          %v735 = vlaneseq
          %v736 = vshrl.u32 %v735, 7
          %v737 = vsub.s32 1, %v736
          %v738 = vrot.slane %v646, %v737
          %740 = vbcast.lane.b32.xlu0 %v738, 256
          %v741 = vpop.permute.xlu0 %740
          %v742 = vlaneseq
          %v743 = vshrl.u32 %v742, 7
          %v744 = vsub.s32 2, %v743
          %v745 = vrot.slane %v646, %v744
          %747 = vbcast.lane.b32.xlu0 %v745, 256
          %v748 = vpop.permute.xlu0 %747
          %v749 = vlaneseq
          %v750 = vshrl.u32 %v749, 7
          %v751 = vsub.s32 3, %v750
          %v752 = vrot.slane %v646, %v751
          %754 = vbcast.lane.b32.xlu0 %v752, 256
          %v755 = vpop.permute.xlu0 %754
          %v756 = vld [vmem:[#allocation4] sm:$0xff]
          %v757 = vld [vmem:[#allocation4 + $0x8] sm:$0xff]
          %v758 = vld [vmem:[#allocation4 + $0x10] sm:$0xff]
          %v759 = vld [vmem:[#allocation4 + $0x18] sm:$0xff]
          %v760 = vmul.f32 %v734, %v756
          %v761 = vmul.f32 %v741, %v757
          %v762 = vmul.f32 %v748, %v758
          %v763 = vmul.f32 %v755, %v759
          %v764 = vpack.c.bf16 %v680, %v680
          %v765 = vpack.c.bf16 %v682, %v682
          %v766 = vpack.c.bf16 %v684, %v684
          %v767 = vpack.c.bf16 %v686, %v686
          %v769 = vsel %vm404, %v764, 0
          %vm771 = vcmask 1043456
          %v773 = vsel %vm771, %v387, 0
          %775 = vmatprep.subr.bf16.mxu0 0
          %776 = vmatpush1.bf16.msra.mxu0 %v773
          %777 = vmatprep.subr.bf16.mxu0 0
          %778 = vmatpush1.bf16.msra.mxu0 0
          %779 = vmatprep.subr.bf16.mxu0 0
          %780 = vmatpush1.bf16.msra.mxu0 0
          %781 = vmatprep.subr.bf16.mxu0 0
          %782 = vmatpush1.bf16.msra.mxu0 0
          %783 = vmatprep.subr.bf16.mxu0 0
          %784 = vmatpush1.bf16.msra.mxu0 0
          %785 = vmatprep.subr.bf16.mxu0 0
          %786 = vmatpush1.bf16.msra.mxu0 0
          %787 = vmatprep.subr.bf16.mxu0 0
          %788 = vmatpush1.bf16.msra.mxu0 0
          %789 = vmatprep.subr.bf16.mxu0 0
          %790 = vmatpush1.bf16.msra.mxu0 0
          %791 = vmatprep.subr.bf16.mxu0 0
          %792 = vmatpush1.bf16.msra.mxu0 0
          %793 = vmatprep.subr.bf16.mxu0 0
          %794 = vmatpush1.bf16.msra.mxu0 0
          %795 = vmatprep.subr.bf16.mxu0 0
          %796 = vmatpush1.bf16.msra.mxu0 0
          %797 = vmatprep.subr.bf16.mxu0 0
          %798 = vmatpush1.bf16.msra.mxu0 0
          %799 = vmatprep.subr.bf16.mxu0 0
          %800 = vmatpush1.bf16.msra.mxu0 0
          %801 = vmatprep.subr.bf16.mxu0 0
          %802 = vmatpush1.bf16.msra.mxu0 0
          %803 = vmatprep.subr.bf16.mxu0 0
          %804 = vmatpush1.bf16.msra.mxu0 0
          %805 = vmatprep.subr.bf16.mxu0 0
          %806 = vmatpush1.bf16.msra.mxu0 0
          %807 = vmatprep.mubr.bf16.mxu0 0
          %808 = vmatmul.mubr.bf16.gmra.mrb[0].mxu0 %v769
          %v809 = vpop.f32.mrb[0].mxu0
          %v810 = vadd.f32 0.0, %v809
          %v811 = vpop.f32.mrb[0].mxu0
          %v812 = vpop.f32.mrb[0].mxu0
          %v813 = vpop.f32.mrb[0].mxu0
          %814 = vdwg.mxu0
          %v816 = vsel %vm404, %v765, 0
          %v819 = vsel %vm771, %v390, 0
          %821 = vmatprep.subr.bf16.mxu0 0
          %822 = vmatpush1.bf16.msra.mxu0 %v819
          %823 = vmatprep.subr.bf16.mxu0 0
          %824 = vmatpush1.bf16.msra.mxu0 0
          %825 = vmatprep.subr.bf16.mxu0 0
          %826 = vmatpush1.bf16.msra.mxu0 0
          %827 = vmatprep.subr.bf16.mxu0 0
          %828 = vmatpush1.bf16.msra.mxu0 0
          %829 = vmatprep.subr.bf16.mxu0 0
          %830 = vmatpush1.bf16.msra.mxu0 0
          %831 = vmatprep.subr.bf16.mxu0 0
          %832 = vmatpush1.bf16.msra.mxu0 0
          %833 = vmatprep.subr.bf16.mxu0 0
          %834 = vmatpush1.bf16.msra.mxu0 0
          %835 = vmatprep.subr.bf16.mxu0 0
          %836 = vmatpush1.bf16.msra.mxu0 0
          %837 = vmatprep.subr.bf16.mxu0 0
          %838 = vmatpush1.bf16.msra.mxu0 0
          %839 = vmatprep.subr.bf16.mxu0 0
          %840 = vmatpush1.bf16.msra.mxu0 0
          %841 = vmatprep.subr.bf16.mxu0 0
          %842 = vmatpush1.bf16.msra.mxu0 0
          %843 = vmatprep.subr.bf16.mxu0 0
          %844 = vmatpush1.bf16.msra.mxu0 0
          %845 = vmatprep.subr.bf16.mxu0 0
          %846 = vmatpush1.bf16.msra.mxu0 0
          %847 = vmatprep.subr.bf16.mxu0 0
          %848 = vmatpush1.bf16.msra.mxu0 0
          %849 = vmatprep.subr.bf16.mxu0 0
          %850 = vmatpush1.bf16.msra.mxu0 0
          %851 = vmatprep.subr.bf16.mxu0 0
          %852 = vmatpush1.bf16.msra.mxu0 0
          %853 = vmatprep.mubr.bf16.mxu0 0
          %854 = vmatmul.mubr.bf16.gmra.mrb[0].mxu0 %v816
          %v855 = vpop.f32.mrb[0].mxu0
          %v856 = vadd.f32 0.0, %v855
          %v857 = vpop.f32.mrb[0].mxu0
          %v858 = vpop.f32.mrb[0].mxu0
          %v859 = vpop.f32.mrb[0].mxu0
          %860 = vdwg.mxu0
          %v862 = vsel %vm404, %v766, 0
          %v865 = vsel %vm771, %v392, 0
          %867 = vmatprep.subr.bf16.mxu0 0
          %868 = vmatpush1.bf16.msra.mxu0 %v865
          %869 = vmatprep.subr.bf16.mxu0 0
          %870 = vmatpush1.bf16.msra.mxu0 0
          %871 = vmatprep.subr.bf16.mxu0 0
          %872 = vmatpush1.bf16.msra.mxu0 0
          %873 = vmatprep.subr.bf16.mxu0 0
          %874 = vmatpush1.bf16.msra.mxu0 0
          %875 = vmatprep.subr.bf16.mxu0 0
          %876 = vmatpush1.bf16.msra.mxu0 0
          %877 = vmatprep.subr.bf16.mxu0 0
          %878 = vmatpush1.bf16.msra.mxu0 0
          %879 = vmatprep.subr.bf16.mxu0 0
          %880 = vmatpush1.bf16.msra.mxu0 0
          %881 = vmatprep.subr.bf16.mxu0 0
          %882 = vmatpush1.bf16.msra.mxu0 0
          %883 = vmatprep.subr.bf16.mxu0 0
          %884 = vmatpush1.bf16.msra.mxu0 0
          %885 = vmatprep.subr.bf16.mxu0 0
          %886 = vmatpush1.bf16.msra.mxu0 0
          %887 = vmatprep.subr.bf16.mxu0 0
          %888 = vmatpush1.bf16.msra.mxu0 0
          %889 = vmatprep.subr.bf16.mxu0 0
          %890 = vmatpush1.bf16.msra.mxu0 0
          %891 = vmatprep.subr.bf16.mxu0 0
          %892 = vmatpush1.bf16.msra.mxu0 0
          %893 = vmatprep.subr.bf16.mxu0 0
          %894 = vmatpush1.bf16.msra.mxu0 0
          %895 = vmatprep.subr.bf16.mxu0 0
          %896 = vmatpush1.bf16.msra.mxu0 0
          %897 = vmatprep.subr.bf16.mxu0 0
          %898 = vmatpush1.bf16.msra.mxu0 0
          %899 = vmatprep.mubr.bf16.mxu0 0
          %900 = vmatmul.mubr.bf16.gmra.mrb[0].mxu0 %v862
          %v901 = vpop.f32.mrb[0].mxu0
          %v902 = vadd.f32 0.0, %v901
          %v903 = vpop.f32.mrb[0].mxu0
          %v904 = vpop.f32.mrb[0].mxu0
          %v905 = vpop.f32.mrb[0].mxu0
          %906 = vdwg.mxu0
          %v908 = vsel %vm404, %v767, 0
          %v911 = vsel %vm771, %v394, 0
          %913 = vmatprep.subr.bf16.mxu0 0
          %914 = vmatpush1.bf16.msra.mxu0 %v911
          %915 = vmatprep.subr.bf16.mxu0 0
          %916 = vmatpush1.bf16.msra.mxu0 0
          %917 = vmatprep.subr.bf16.mxu0 0
          %918 = vmatpush1.bf16.msra.mxu0 0
          %919 = vmatprep.subr.bf16.mxu0 0
          %920 = vmatpush1.bf16.msra.mxu0 0
          %921 = vmatprep.subr.bf16.mxu0 0
          %922 = vmatpush1.bf16.msra.mxu0 0
          %923 = vmatprep.subr.bf16.mxu0 0
          %924 = vmatpush1.bf16.msra.mxu0 0
          %925 = vmatprep.subr.bf16.mxu0 0
          %926 = vmatpush1.bf16.msra.mxu0 0
          %927 = vmatprep.subr.bf16.mxu0 0
          %928 = vmatpush1.bf16.msra.mxu0 0
          %929 = vmatprep.subr.bf16.mxu0 0
          %930 = vmatpush1.bf16.msra.mxu0 0
          %931 = vmatprep.subr.bf16.mxu0 0
          %932 = vmatpush1.bf16.msra.mxu0 0
          %933 = vmatprep.subr.bf16.mxu0 0
          %934 = vmatpush1.bf16.msra.mxu0 0
          %935 = vmatprep.subr.bf16.mxu0 0
          %936 = vmatpush1.bf16.msra.mxu0 0
          %937 = vmatprep.subr.bf16.mxu0 0
          %938 = vmatpush1.bf16.msra.mxu0 0
          %939 = vmatprep.subr.bf16.mxu0 0
          %940 = vmatpush1.bf16.msra.mxu0 0
          %941 = vmatprep.subr.bf16.mxu0 0
          %942 = vmatpush1.bf16.msra.mxu0 0
          %943 = vmatprep.subr.bf16.mxu0 0
          %944 = vmatpush1.bf16.msra.mxu0 0
          %945 = vmatprep.mubr.bf16.mxu0 0
          %946 = vmatmul.mubr.bf16.gmra.mrb[0].mxu0 %v908
          %v947 = vpop.f32.mrb[0].mxu0
          %v948 = vadd.f32 0.0, %v947
          %v949 = vpop.f32.mrb[0].mxu0
          %v950 = vpop.f32.mrb[0].mxu0
          %v951 = vpop.f32.mrb[0].mxu0
          %952 = vdwg.mxu0
          %v953 = vadd.f32 %v760, %v810
          %v954 = vadd.f32 %v761, %v856
          %v955 = vadd.f32 %v762, %v902
          %v956 = vadd.f32 %v763, %v948
          %957 = vst.msk [vmem:[#allocation4] sm:$0xff] %vm404, %v953
          %958 = vst.msk [vmem:[#allocation4 + $0x8] sm:$0xff] %vm404, %v954
          %959 = vst.msk [vmem:[#allocation4 + $0x10] sm:$0xff] %vm404, %v955
          %960 = vst.msk [vmem:[#allocation4 + $0x18] sm:$0xff] %vm404, %v956
          %961 = vst.msk [vmem:[#allocation2] sm:$0xf] %vm726, %v643
        $region60: #{transformer_forward.36} parent=35 // pred_fallthru
          _
        // Predicated region
        $region61: #{transformer_forward.36} parent=35 // pred_check
          %p962 = pneg %p352
        $region62: #{transformer_forward.36} parent=35 // pred_check_branch
          %964 = sbr.rel (%p962) target = $region64
        $region63: #{transformer_forward.36} parent=35 // pred_region
          %v965 = vld [vmem:[#allocation3] sm:$0xf]
          %v966 = vrcp.pop %v965
          %v967 = vld [vmem:[#allocation4] sm:$0xff]
          %v968 = vld [vmem:[#allocation4 + $0x8] sm:$0xff]
          %v969 = vld [vmem:[#allocation4 + $0x10] sm:$0xff]
          %v970 = vld [vmem:[#allocation4 + $0x18] sm:$0xff]
          %v971 = vlaneseq
          %v972 = vshrl.u32 %v971, 7
          %v973 = vsub.s32 0, %v972
          %v974 = vrot.slane %v966, %v973
          %976 = vbcast.lane.b32.xlu0 %v974, 256
          %v977 = vpop.permute.xlu0 %976
          %v978 = vlaneseq
          %v979 = vshrl.u32 %v978, 7
          %v980 = vsub.s32 1, %v979
          %v981 = vrot.slane %v966, %v980
          %983 = vbcast.lane.b32.xlu0 %v981, 256
          %v984 = vpop.permute.xlu0 %983
          %v985 = vlaneseq
          %v986 = vshrl.u32 %v985, 7
          %v987 = vsub.s32 2, %v986
          %v988 = vrot.slane %v966, %v987
          %990 = vbcast.lane.b32.xlu0 %v988, 256
          %v991 = vpop.permute.xlu0 %990
          %v992 = vlaneseq
          %v993 = vshrl.u32 %v992, 7
          %v994 = vsub.s32 3, %v993
          %v995 = vrot.slane %v966, %v994
          %997 = vbcast.lane.b32.xlu0 %v995, 256
          %v998 = vpop.permute.xlu0 %997
          %v999 = vmul.f32 %v967, %v977
          %v1000 = vmul.f32 %v968, %v984
          %v1001 = vmul.f32 %v969, %v991
          %v1002 = vmul.f32 %v970, %v998
          %1004 = vrot.lane.b32.xlu0 %v1000, 8
          %v1005 = vpop.permute.xlu0 %1004
          %1008 = vrot.lane.b32.xlu0 %v1001, 16
          %v1009 = vpop.permute.xlu0 %1008
          %1012 = vrot.lane.b32.xlu0 %v1002, 24
          %v1013 = vpop.permute.xlu0 %1012
          %vm1015 = vcmask 64512
          %v1016 = vsel %vm1015, %v999, %v1005
          %vm1017 = vcmask 130048
          %v1018 = vsel %vm1017, %v1016, %v1009
          %vm1019 = vcmask 195584
          %v1020 = vsel %vm1019, %v1018, %v1013
          %v1021 = vpack.c.bf16 %v1020, %v1020
          %vm1022 = vcmask 257024
          %1023 = vst.msk [vmem:[%s350] sm:$0xf] %vm1022, %v1021
        $region64: #{transformer_forward.36} parent=35 // pred_fallthru
          _
        %s1024 = sand.u32 %s168, 1
        %s1025 = scalar_lea.sflag [#allocation7], %s1024
        %s1026 = sand.u32 %s168, 1
        %s1027 = smul.addr %s1026, 4
        %s1028 = scalar_lea.vmem [#allocation13], %s1027
        // Predicated region
        $region65: #{transformer_forward.36} parent=35 // pred_check
          %p1029 = pneg %p178
        $region66: #{transformer_forward.36} parent=35 // pred_check_branch
          %1031 = sbr.rel (%p1029) target = $region68
        $region67: #{transformer_forward.36} parent=35 // pred_region
          %s1033 = ssub.s32 64, 64
          %1034 = vsyncadd %s1025, %s1033
          %s1035 = sadd.s32 %s33, %s32
          %s1036 = smul.addr %s1035, 64
          %s1037 = scalar_lea.hbm %s4, %s1036
          %s1039 = sshll.u32 %s1028, 4
          %s1040 = int_to_ptr.vmem [resolvable:$true] %s1039
          %1042 = dma.vmem_to_hbm [thread:$0]  %s1040, 64, %s1037, %s1025
        $region68: #{transformer_forward.36} parent=35 // pred_fallthru
          _
      $region36: #{transformer_forward.36} parent=5 // pred_fallthru
        _
      %p1043 = scmp.le.s32.totalorder 2, %s22
      // Predicated region
      $region69: #{transformer_forward.36} parent=5 // pred_check
        %p1044 = pneg %p1043
      $region70: #{transformer_forward.36} parent=5 // pred_check_branch
        %1046 = sbr.rel (%p1044) target = $region72
      $region71: #{transformer_forward.36} parent=5 // pred_region
        %s1047 = ssub.s32 %s22, 2
        // Predicated region
        $region73: #{transformer_forward.36} parent=71 // pred_check
          %p1048 = pneg %p184
        $region74: #{transformer_forward.36} parent=71 // pred_check_branch
          %1050 = sbr.rel (%p1048) target = $region76
        $region75: #{transformer_forward.36} parent=71 // pred_region
          %s1051 = sand.u32 %s169, 1
          %s1052 = scalar_lea.sflag [#allocation7], %s1051
          %s1053 = sand.u32 %s169, 1
          %s1054 = smul.addr %s1053, 4
          %s1055 = scalar_lea.vmem [#allocation13], %s1054
          %1056 = dma.done %s1052, 64
        $region76: #{transformer_forward.36} parent=71 // pred_fallthru
          _
      $region72: #{transformer_forward.36} parent=5 // pred_fallthru
        _
    $region6: #{transformer_forward.36} parent=1 // loop_footer
      %s26 = sadd.s32 1, %s22
    $region7: #{transformer_forward.36} parent=1 // loop_footer_branch
      %21 = sbr.rel target = $region3
    $region8: #{transformer_forward.36} parent=1 // loop_exit
      _
    %1057 = vsyncpa [#allocation6], 1
    %s1058 = scalar_lea.sflag [#allocation6], 1
    %1059 = vsyncpa %s1058, 1
    %1060 = vsyncpa [#allocation9], 1
    %s1061 = scalar_lea.sflag [#allocation9], 1
    %1062 = vsyncpa %s1061, 1
    %1063 = vsyncpa [#allocation12], 1
    %s1064 = scalar_lea.sflag [#allocation12], 1
    %1065 = vsyncpa %s1064, 1
    %1066 = vsyncpa [#allocation7], 1
    %s1067 = scalar_lea.sflag [#allocation7], 1
    %1068 = vsyncpa %s1067, 1

</llo_original>
